<compile_context>
chip_gen: v7x
topology: tpu7x:2x2x1
jax: 0.10.0
libtpu: 0.0.40
codegen_flags: <defaults>
</compile_context>

<pallas_src>
import functools

import jax
import jax.numpy as jnp
from jax.experimental import pallas as pl
from jax.experimental.pallas import tpu as pltpu


def _layer_dims(H, W):
    ho1, wo1 = (H - 8) // 4 + 1, (W - 8) // 4 + 1
    ho2, wo2 = (ho1 - 4) // 2 + 1, (wo1 - 4) // 2 + 1
    ho3, wo3 = ho2 - 2, wo2 - 2
    return ho1, wo1, ho2, wo2, ho3, wo3


# ----------------------------------------------------------------------------
# Fused kernel: conv1 + conv2 + conv3 + fc for one batch block of B samples.
# All activation rows are ordered (spatial..., b) with b fastest, so with B a
# multiple of 8 every slice below is sublane-aligned and contiguous.
# ----------------------------------------------------------------------------
def _cnn_dqn_kernel(p1_ref, w1_ref, b1_ref, w2_ref, b2_ref, w3_ref, b3_ref,
                    wfc_ref, bfc_ref, q_ref, hid_ref,
                    h1_ref, s2_ref, h2_ref, s3_ref, h3_ref, *, dims, bblk):
    ho1, wo1, ho2, wo2, ho3, wo3 = dims
    B = bblk
    w1c = wo1 // 2                      # h1 columns (even/odd merged)

    def mm(x, w_ref, b_ref, relu=True):
        y = jnp.dot(x, w_ref[...], preferred_element_type=jnp.float32) + b_ref[...]
        return jnp.maximum(y, 0.0) if relu else y

    # conv1: ONE matmul over the whole batch block.  w1 is block-diagonal, so
    # channels 0-31 are the even output column and 32-63 the odd output column.
    h1_ref[...] = mm(p1_ref[...], w1_ref, b1_ref)            # (ho1*w1c*B, 64)

    # conv2 (4x4 / stride 2): build the patch slab with 8-aligned block copies
    # (the stride is absorbed by the even/odd channel merge), then ONE matmul.
    for oh2 in range(ho2):
        dst = oh2 * wo2 * B
        for dh in range(4):
            for j in range(2):                               # dw = 2*j + parity
                src = ((2 * oh2 + dh) * w1c + j) * B
                col = (dh * 2 + j) * 64
                s2_ref[dst:dst + wo2 * B, col:col + 64] = (
                    h1_ref[src:src + wo2 * B, :])
    h2_ref[...] = mm(s2_ref[...], w2_ref, b2_ref)            # (ho2*wo2*B, 64)

    # conv3 (3x3 / stride 1): same pattern, ONE matmul.
    for oh3 in range(ho3):
        dst = oh3 * wo3 * B
        for dh in range(3):
            for dw in range(3):
                src = ((oh3 + dh) * wo2 + dw) * B
                col = (dh * 3 + dw) * 64
                s3_ref[dst:dst + wo3 * B, col:col + 64] = (
                    h2_ref[src:src + wo3 * B, :])
    h3_ref[...] = mm(s3_ref[...], w3_ref, b3_ref)            # (ho3*wo3*B, 64)

    # Rearrange hidden to (b, (oh3, ow3, c)): lane-dense (512 lanes) output that
    # also serves directly as the fc LHS (fc weight is pre-permuted to match).
    for s in range(ho3 * wo3):
        hid_ref[:, s * 64:(s + 1) * 64] = h3_ref[s * B:(s + 1) * B, :]

    # fc: output channels zero-padded to 128 lanes -> dense stores.
    q_ref[...] = mm(hid_ref[...], wfc_ref, bfc_ref, relu=False)


# ----------------------------------------------------------------------------
# Forward wrapper (single pallas_call, grid over batch blocks)
# ----------------------------------------------------------------------------
def cnn_dqn_forward(kparams, x_nchw, *, num_actions, return_latent="last",
                    block_batch=8):
    N, C, H, W = x_nchw.shape
    dims = _layer_dims(H, W)
    ho1, wo1, ho2, wo2, ho3, wo3 = dims

    assert H % 4 == 0 and W % 4 == 0, "spatial dims must be multiples of 4"
    assert wo1 % 2 == 0, "conv1 output width must be even for conv2"
    assert 64 * ho3 * wo3 == 512, "flat conv features must match Linear(512, A)"
    assert block_batch % 8 == 0, "batch block must be a multiple of 8 sublanes"

    B = block_batch
    G = -(-N // B)                      # number of batch blocks (grid steps)
    Np = G * B
    k1 = 64 * C                         # conv1 patch size (8*8*C)

    x = x_nchw.astype(jnp.float32)
    if Np != N:                         # pad batch up to a whole block
        x = jnp.concatenate([x, jnp.zeros((Np - N, C, H, W), jnp.float32)], 0)

    # conv1 im2col in XLA: space-to-depth(4), 2x2 patch gather (K order
    # (dh, dw, bh, bw, c)), then pair even/odd output columns into one row.
    Hs, Ws = H // 4, W // 4
    xh = jnp.transpose(x, (0, 2, 3, 1))                         # NHWC
    xs = xh.reshape(Np, Hs, 4, Ws, 4, C)
    xs = jnp.transpose(xs, (0, 1, 3, 2, 4, 5)).reshape(Np, Hs, Ws, 16 * C)
    pieces = [xs[:, dh:dh + ho1, dw:dw + wo1, :]
              for dh in range(2) for dw in range(2)]
    p1 = jnp.concatenate(pieces, axis=-1)                       # (Np,ho1,wo1,k1)
    p1 = p1.reshape(Np, ho1, wo1 // 2, 2 * k1)                  # pair even|odd
    # Fold batch into M with batch fastest: per block rows are (oh1, w1col, b).
    S1 = ho1 * (wo1 // 2)
    p1 = jnp.transpose(p1, (1, 2, 0, 3)).reshape(S1, G, B, 2 * k1)
    p1 = jnp.transpose(p1, (1, 0, 2, 3)).reshape(G, S1 * B, 2 * k1)

    M1 = S1 * B
    M2 = ho2 * wo2 * B
    M3 = ho3 * wo3 * B
    F = 64 * ho3 * wo3                                          # 512
    Ap = kparams["wfc"].shape[1]                                # padded actions

    q, hid = pl.pallas_call(
        functools.partial(_cnn_dqn_kernel, dims=dims, bblk=B),
        out_shape=(jax.ShapeDtypeStruct((G, B, Ap), jnp.float32),
                   jax.ShapeDtypeStruct((G, B, F), jnp.float32)),
        grid=(G,),
        in_specs=[
            pl.BlockSpec((None, M1, 2 * k1), lambda g: (g, 0, 0)),
            pl.BlockSpec(kparams["w1"].shape, lambda g: (0, 0)),
            pl.BlockSpec(kparams["b1"].shape, lambda g: (0, 0)),
            pl.BlockSpec(kparams["w2"].shape, lambda g: (0, 0)),
            pl.BlockSpec(kparams["b2"].shape, lambda g: (0, 0)),
            pl.BlockSpec(kparams["w3"].shape, lambda g: (0, 0)),
            pl.BlockSpec(kparams["b3"].shape, lambda g: (0, 0)),
            pl.BlockSpec(kparams["wfc"].shape, lambda g: (0, 0)),
            pl.BlockSpec(kparams["bfc"].shape, lambda g: (0, 0)),
        ],
        out_specs=(
            pl.BlockSpec((None, B, Ap), lambda g: (g, 0, 0)),
            pl.BlockSpec((None, B, F), lambda g: (g, 0, 0)),
        ),
        scratch_shapes=[
            pltpu.VMEM((M1, 64), jnp.float32),      # h1 (even|odd merged)
            pltpu.VMEM((M2, 8 * 64), jnp.float32),  # conv2 patch slab
            pltpu.VMEM((M2, 64), jnp.float32),      # h2
            pltpu.VMEM((M3, 9 * 64), jnp.float32),  # conv3 patch slab
            pltpu.VMEM((M3, 64), jnp.float32),      # h3
        ],
        compiler_params=pltpu.CompilerParams(
            dimension_semantics=("parallel",)),     # batch blocks across TCs
    )(p1, kparams["w1"], kparams["b1"], kparams["w2"], kparams["b2"],
      kparams["w3"], kparams["b3"], kparams["wfc"], kparams["bfc"])

    out = q.reshape(Np, Ap)[:N, :num_actions]
    hid = hid.reshape(Np, ho3, wo3, 64)[:N]
    hidden = jnp.transpose(hid, (0, 3, 1, 2))       # NHWC -> NCHW
    if return_latent == "state":
        return out, x_nchw
    return out, hidden


# ----------------------------------------------------------------------------
# One-time (outside jit) repack of PyTorch-layout params into kernel layouts
# ----------------------------------------------------------------------------
def prepare_params(params, H, W):
    ho1, wo1, ho2, wo2, ho3, wo3 = _layer_dims(H, W)
    C = params["conv1_w"].shape[1]
    A = params["fc_w"].shape[0]
    k1 = 64 * C

    # conv1 OIHW (32,C,8,8) -> rows (dh, dw, bh, bw, c) matching the wrapper's
    # s2d(4) + 2x2 gather; duplicated block-diagonally so one matmul produces
    # even output columns in channels 0-31 and odd columns in 32-63.
    w1 = jnp.transpose(params["conv1_w"], (2, 3, 1, 0))         # (8,8,C,32)
    w1 = w1.reshape(2, 4, 2, 4, C, 32)
    w1 = jnp.transpose(w1, (0, 2, 1, 3, 4, 5)).reshape(k1, 32)
    w1m = jnp.zeros((2 * k1, 64), jnp.float32)
    w1m = w1m.at[:k1, :32].set(w1)
    w1m = w1m.at[k1:, 32:].set(w1)
    b1m = jnp.tile(params["conv1_b"], 2).reshape(1, 64)

    # conv2 / conv3 OIHW -> (kh*kw*cin, cout) with (kh, kw, cin) row order
    # (matches the slab column order (dh, dw-parity-pair, even|odd, c)).
    w2 = jnp.transpose(params["conv2_w"], (2, 3, 1, 0)).reshape(512, 64)
    w3 = jnp.transpose(params["conv3_w"], (2, 3, 1, 0)).reshape(576, 64)

    # fc (A, 512) over PyTorch NCHW flatten (c, oh3, ow3) -> rows ordered
    # (oh3, ow3, c) to match the kernel's lane-dense hidden; pad A to 128 lanes.
    F = 64 * ho3 * wo3
    Ap = ((A + 127) // 128) * 128
    wf = params["fc_w"].reshape(A, 64, ho3, wo3)
    wf = jnp.transpose(wf, (2, 3, 1, 0)).reshape(F, A)
    wfc = jnp.zeros((F, Ap), jnp.float32).at[:, :A].set(wf)
    bfc = jnp.zeros((1, Ap), jnp.float32).at[:, :A].set(
        params["fc_b"].reshape(1, A))

    return {
        "w1": w1m, "b1": b1m,
        "w2": w2, "b2": params["conv2_b"].reshape(1, 64),
        "w3": w3, "b3": params["conv3_b"].reshape(1, 64),
        "wfc": wfc, "bfc": bfc,
    }


# ----------------------------------------------------------------------------
# Deterministic parameter init (PyTorch-default-style uniform bounds)
# ----------------------------------------------------------------------------
def init_params(in_channels, num_actions, key):
    keys = jax.random.split(key, 8)

    def uni(k, shape, fan_in):
        bound = 1.0 / jnp.sqrt(jnp.float32(fan_in))
        return jax.random.uniform(k, shape, jnp.float32, -bound, bound)

    return {
        "conv1_w": uni(keys[0], (32, in_channels, 8, 8), in_channels * 8 * 8),
        "conv1_b": uni(keys[1], (32,), in_channels * 8 * 8),
        "conv2_w": uni(keys[2], (64, 32, 4, 4), 32 * 4 * 4),
        "conv2_b": uni(keys[3], (64,), 32 * 4 * 4),
        "conv3_w": uni(keys[4], (64, 64, 3, 3), 64 * 3 * 3),
        "conv3_b": uni(keys[5], (64,), 64 * 3 * 3),
        "fc_w": uni(keys[6], (num_actions, 512), 512),
        "fc_b": uni(keys[7], (num_actions,), 512),
    }


# ----------------------------------------------------------------------------
# Pure-XLA reference (the PyTorch module's intended forward) for verification
# ----------------------------------------------------------------------------
def _reference_forward(params, x_nchw):
    x = jnp.transpose(x_nchw.astype(jnp.float32), (0, 2, 3, 1))   # NHWC

    def conv(h, w_oihw, b, stride):
        y = jax.lax.conv_general_dilated(
            h, jnp.transpose(w_oihw, (2, 3, 1, 0)), (stride, stride), "VALID",
            dimension_numbers=("NHWC", "HWIO", "NHWC"),
            precision=jax.lax.Precision.HIGHEST)
        return jnp.maximum(y + b, 0.0)

    h = conv(x, params["conv1_w"], params["conv1_b"], 4)
    h = conv(h, params["conv2_w"], params["conv2_b"], 2)
    h = conv(h, params["conv3_w"], params["conv3_b"], 1)
    hidden = jnp.transpose(h, (0, 3, 1, 2))                        # NCHW
    flat = hidden.reshape(hidden.shape[0], -1)
    out = jnp.dot(flat, params["fc_w"].T,
                  precision=jax.lax.Precision.HIGHEST) + params["fc_b"]
    return out, hidden


if __name__ == "__main__":
    key = jax.random.PRNGKey(0)
    k_param, k_x = jax.random.split(key)

    num_actions = 6
    in_channels = 4
    # Spatial 44x60 -> conv stack yields (64, 2, 4) -> 512 flat features,
    # exactly matching nn.Linear(512, num_actions).  batch=16 with B=8 gives
    # two grid steps (both v7x TensorCores busy).
    batch, H, W = 16, 44, 60

    params = init_params(in_channels, num_actions, k_param)
    kparams = prepare_params(params, H, W)
    x = jax.random.normal(k_x, (batch, in_channels, H, W), dtype=jnp.float32)

    fwd = jax.jit(functools.partial(cnn_dqn_forward, num_actions=num_actions,
                                    return_latent="last", block_batch=8))
    out, hidden = fwd(kparams, x)
    jax.block_until_ready((out, hidden))

    assert out.shape == (batch, num_actions), out.shape
    assert hidden.shape == (batch, 64, 2, 4), hidden.shape
    assert out.dtype == jnp.float32

    # Numerical check against the pure-XLA reference of the same module.
    out_ref, hidden_ref = _reference_forward(params, x)
    assert jnp.allclose(out, out_ref, atol=2e-2, rtol=2e-2), (
        float(jnp.max(jnp.abs(out - out_ref))))
    assert jnp.allclose(hidden, hidden_ref, atol=2e-2, rtol=2e-2), (
        float(jnp.max(jnp.abs(hidden - hidden_ref))))

    print("KERNEL_OK")
</pallas_src>

<mosaic_0001>
module attributes {stable_mosaic.version = 11 : i64} {
  func.func @_cnn_dqn_kernel(%arg0: i32, %arg1: memref<1x560x512xf32, #tpu.memory_space<vmem>>, %arg2: memref<512x64xf32, #tpu.memory_space<vmem>>, %arg3: memref<1x64xf32, #tpu.memory_space<vmem>>, %arg4: memref<512x64xf32, #tpu.memory_space<vmem>>, %arg5: memref<1x64xf32, #tpu.memory_space<vmem>>, %arg6: memref<576x64xf32, #tpu.memory_space<vmem>>, %arg7: memref<1x64xf32, #tpu.memory_space<vmem>>, %arg8: memref<512x128xf32, #tpu.memory_space<vmem>>, %arg9: memref<1x128xf32, #tpu.memory_space<vmem>>, %arg10: memref<1x8x128xf32, #tpu.memory_space<vmem>>, %arg11: memref<1x8x512xf32, #tpu.memory_space<vmem>>, %arg12: memref<560x64xf32, #tpu.memory_space<vmem>>, %arg13: memref<192x512xf32, #tpu.memory_space<vmem>>, %arg14: memref<192x64xf32, #tpu.memory_space<vmem>>, %arg15: memref<64x576xf32, #tpu.memory_space<vmem>>, %arg16: memref<64x64xf32, #tpu.memory_space<vmem>>) attributes {dimension_semantics = [#tpu.dimension_semantics<parallel>], iteration_bounds = array<i64: 2>, scalar_prefetch = 0 : i64, scratch_operands = 5 : i64, tpu.core_type = #tpu.core_type<tc>, window_params = [{transform_indices = @transform_0, window_bounds = array<i64: 1, 560, 512>}, {pipeline_mode = #tpu.pipeline_mode<synchronous>, transform_indices = @transform_1, window_bounds = array<i64: 512, 64>}, {pipeline_mode = #tpu.pipeline_mode<synchronous>, transform_indices = @transform_2, window_bounds = array<i64: 1, 64>}, {pipeline_mode = #tpu.pipeline_mode<synchronous>, transform_indices = @transform_3, window_bounds = array<i64: 512, 64>}, {pipeline_mode = #tpu.pipeline_mode<synchronous>, transform_indices = @transform_4, window_bounds = array<i64: 1, 64>}, {pipeline_mode = #tpu.pipeline_mode<synchronous>, transform_indices = @transform_5, window_bounds = array<i64: 576, 64>}, {pipeline_mode = #tpu.pipeline_mode<synchronous>, transform_indices = @transform_6, window_bounds = array<i64: 1, 64>}, {pipeline_mode = #tpu.pipeline_mode<synchronous>, transform_indices = @transform_7, window_bounds = array<i64: 512, 128>}, {pipeline_mode = #tpu.pipeline_mode<synchronous>, transform_indices = @transform_8, window_bounds = array<i64: 1, 128>}, {transform_indices = @transform_9, window_bounds = array<i64: 1, 8, 128>}, {transform_indices = @transform_10, window_bounds = array<i64: 1, 8, 512>}]} {
    %c0 = arith.constant 0 : index
    %c0_0 = arith.constant 0 : index
    %c0_1 = arith.constant 0 : index
    %0 = vector.load %arg1[%c0, %c0_0, %c0_1] : memref<1x560x512xf32, #tpu.memory_space<vmem>>, vector<1x560x512xf32>
    %1 = vector.shape_cast %0 : vector<1x560x512xf32> to vector<560x512xf32>
    %c0_2 = arith.constant 0 : index
    %c0_3 = arith.constant 0 : index
    %2 = vector.load %arg2[%c0_2, %c0_3] : memref<512x64xf32, #tpu.memory_space<vmem>>, vector<512x64xf32>
    %cst = arith.constant dense<0.000000e+00> : vector<560x64xf32>
    %3 = tpu.matmul %1, %2, %cst {dimension_numbers = #tpu.dot_dimension_numbers<[1], [0], [0], [1], [0, 0, 1, 1], [], []>} : vector<560x512xf32>, vector<512x64xf32>, vector<560x64xf32> -> vector<560x64xf32>
    %c0_4 = arith.constant 0 : index
    %c0_5 = arith.constant 0 : index
    %4 = vector.load %arg3[%c0_4, %c0_5] : memref<1x64xf32, #tpu.memory_space<vmem>>, vector<1x64xf32>
    %5 = vector.broadcast %4 : vector<1x64xf32> to vector<560x64xf32>
    %6 = arith.addf %3, %5 : vector<560x64xf32>
    %cst_6 = arith.constant 0.000000e+00 : f32
    %7 = vector.broadcast %cst_6 : f32 to vector<560x64xf32>
    %8 = arith.maximumf %6, %7 : vector<560x64xf32>
    %c0_7 = arith.constant 0 : index
    %c0_8 = arith.constant 0 : index
    %9 = vector.load %arg12[%c0_7, %c0_8] : memref<560x64xf32, #tpu.memory_space<vmem>>, vector<560x64xf32>
    tpu.vector_store %arg12[%c0_7, %c0_8], %8 {strides = array<i32>} : memref<560x64xf32, #tpu.memory_space<vmem>>, vector<560x64xf32>,
    %c0_9 = arith.constant 0 : index
    %c0_10 = arith.constant 0 : index
    %10 = vector.load %arg12[%c0_9, %c0_10] : memref<560x64xf32, #tpu.memory_space<vmem>>, vector<48x64xf32>
    %c0_11 = arith.constant 0 : index
    %c0_12 = arith.constant 0 : index
    %11 = vector.load %arg13[%c0_11, %c0_12] : memref<192x512xf32, #tpu.memory_space<vmem>>, vector<48x64xf32>
    tpu.vector_store %arg13[%c0_11, %c0_12], %10 {strides = array<i32>} : memref<192x512xf32, #tpu.memory_space<vmem>>, vector<48x64xf32>,
    %c8 = arith.constant 8 : index
    %c0_13 = arith.constant 0 : index
    %12 = vector.load %arg12[%c8, %c0_13] : memref<560x64xf32, #tpu.memory_space<vmem>>, vector<48x64xf32>
    %c0_14 = arith.constant 0 : index
    %c64 = arith.constant 64 : index
    %13 = vector.load %arg13[%c0_14, %c64] : memref<192x512xf32, #tpu.memory_space<vmem>>, vector<48x64xf32>
    tpu.vector_store %arg13[%c0_14, %c64], %12 {strides = array<i32>} : memref<192x512xf32, #tpu.memory_space<vmem>>, vector<48x64xf32>,
    %c56 = arith.constant 56 : index
    %c0_15 = arith.constant 0 : index
    %14 = vector.load %arg12[%c56, %c0_15] : memref<560x64xf32, #tpu.memory_space<vmem>>, vector<48x64xf32>
    %c0_16 = arith.constant 0 : index
    %c128 = arith.constant 128 : index
    %15 = vector.load %arg13[%c0_16, %c128] : memref<192x512xf32, #tpu.memory_space<vmem>>, vector<48x64xf32>
    tpu.vector_store %arg13[%c0_16, %c128], %14 {strides = array<i32>} : memref<192x512xf32, #tpu.memory_space<vmem>>, vector<48x64xf32>,
    %c64_17 = arith.constant 64 : index
    %c0_18 = arith.constant 0 : index
    %16 = vector.load %arg12[%c64_17, %c0_18] : memref<560x64xf32, #tpu.memory_space<vmem>>, vector<48x64xf32>
    %c0_19 = arith.constant 0 : index
    %c192 = arith.constant 192 : index
    %17 = vector.load %arg13[%c0_19, %c192] : memref<192x512xf32, #tpu.memory_space<vmem>>, vector<48x64xf32>
    tpu.vector_store %arg13[%c0_19, %c192], %16 {strides = array<i32>} : memref<192x512xf32, #tpu.memory_space<vmem>>, vector<48x64xf32>,
    %c112 = arith.constant 112 : index
    %c0_20 = arith.constant 0 : index
    %18 = vector.load %arg12[%c112, %c0_20] : memref<560x64xf32, #tpu.memory_space<vmem>>, vector<48x64xf32>
    %c0_21 = arith.constant 0 : index
    %c256 = arith.constant 256 : index
    %19 = vector.load %arg13[%c0_21, %c256] : memref<192x512xf32, #tpu.memory_space<vmem>>, vector<48x64xf32>
    tpu.vector_store %arg13[%c0_21, %c256], %18 {strides = array<i32>} : memref<192x512xf32, #tpu.memory_space<vmem>>, vector<48x64xf32>,
    %c120 = arith.constant 120 : index
    %c0_22 = arith.constant 0 : index
    %20 = vector.load %arg12[%c120, %c0_22] : memref<560x64xf32, #tpu.memory_space<vmem>>, vector<48x64xf32>
    %c0_23 = arith.constant 0 : index
    %c320 = arith.constant 320 : index
    %21 = vector.load %arg13[%c0_23, %c320] : memref<192x512xf32, #tpu.memory_space<vmem>>, vector<48x64xf32>
    tpu.vector_store %arg13[%c0_23, %c320], %20 {strides = array<i32>} : memref<192x512xf32, #tpu.memory_space<vmem>>, vector<48x64xf32>,
    %c168 = arith.constant 168 : index
    %c0_24 = arith.constant 0 : index
    %22 = vector.load %arg12[%c168, %c0_24] : memref<560x64xf32, #tpu.memory_space<vmem>>, vector<48x64xf32>
    %c0_25 = arith.constant 0 : index
    %c384 = arith.constant 384 : index
    %23 = vector.load %arg13[%c0_25, %c384] : memref<192x512xf32, #tpu.memory_space<vmem>>, vector<48x64xf32>
    tpu.vector_store %arg13[%c0_25, %c384], %22 {strides = array<i32>} : memref<192x512xf32, #tpu.memory_space<vmem>>, vector<48x64xf32>,
    %c176 = arith.constant 176 : index
    %c0_26 = arith.constant 0 : index
    %24 = vector.load %arg12[%c176, %c0_26] : memref<560x64xf32, #tpu.memory_space<vmem>>, vector<48x64xf32>
    %c0_27 = arith.constant 0 : index
    %c448 = arith.constant 448 : index
    %25 = vector.load %arg13[%c0_27, %c448] : memref<192x512xf32, #tpu.memory_space<vmem>>, vector<48x64xf32>
    tpu.vector_store %arg13[%c0_27, %c448], %24 {strides = array<i32>} : memref<192x512xf32, #tpu.memory_space<vmem>>, vector<48x64xf32>,
    %c112_28 = arith.constant 112 : index
    %c0_29 = arith.constant 0 : index
    %26 = vector.load %arg12[%c112_28, %c0_29] : memref<560x64xf32, #tpu.memory_space<vmem>>, vector<48x64xf32>
    %c48 = arith.constant 48 : index
    %c0_30 = arith.constant 0 : index
    %27 = vector.load %arg13[%c48, %c0_30] : memref<192x512xf32, #tpu.memory_space<vmem>>, vector<48x64xf32>
    tpu.vector_store %arg13[%c48, %c0_30], %26 {strides = array<i32>} : memref<192x512xf32, #tpu.memory_space<vmem>>, vector<48x64xf32>,
    %c120_31 = arith.constant 120 : index
    %c0_32 = arith.constant 0 : index
    %28 = vector.load %arg12[%c120_31, %c0_32] : memref<560x64xf32, #tpu.memory_space<vmem>>, vector<48x64xf32>
    %c48_33 = arith.constant 48 : index
    %c64_34 = arith.constant 64 : index
    %29 = vector.load %arg13[%c48_33, %c64_34] : memref<192x512xf32, #tpu.memory_space<vmem>>, vector<48x64xf32>
    tpu.vector_store %arg13[%c48_33, %c64_34], %28 {strides = array<i32>} : memref<192x512xf32, #tpu.memory_space<vmem>>, vector<48x64xf32>,
    %c168_35 = arith.constant 168 : index
    %c0_36 = arith.constant 0 : index
    %30 = vector.load %arg12[%c168_35, %c0_36] : memref<560x64xf32, #tpu.memory_space<vmem>>, vector<48x64xf32>
    %c48_37 = arith.constant 48 : index
    %c128_38 = arith.constant 128 : index
    %31 = vector.load %arg13[%c48_37, %c128_38] : memref<192x512xf32, #tpu.memory_space<vmem>>, vector<48x64xf32>
    tpu.vector_store %arg13[%c48_37, %c128_38], %30 {strides = array<i32>} : memref<192x512xf32, #tpu.memory_space<vmem>>, vector<48x64xf32>,
    %c176_39 = arith.constant 176 : index
    %c0_40 = arith.constant 0 : index
    %32 = vector.load %arg12[%c176_39, %c0_40] : memref<560x64xf32, #tpu.memory_space<vmem>>, vector<48x64xf32>
    %c48_41 = arith.constant 48 : index
    %c192_42 = arith.constant 192 : index
    %33 = vector.load %arg13[%c48_41, %c192_42] : memref<192x512xf32, #tpu.memory_space<vmem>>, vector<48x64xf32>
    tpu.vector_store %arg13[%c48_41, %c192_42], %32 {strides = array<i32>} : memref<192x512xf32, #tpu.memory_space<vmem>>, vector<48x64xf32>,
    %c224 = arith.constant 224 : index
    %c0_43 = arith.constant 0 : index
    %34 = vector.load %arg12[%c224, %c0_43] : memref<560x64xf32, #tpu.memory_space<vmem>>, vector<48x64xf32>
    %c48_44 = arith.constant 48 : index
    %c256_45 = arith.constant 256 : index
    %35 = vector.load %arg13[%c48_44, %c256_45] : memref<192x512xf32, #tpu.memory_space<vmem>>, vector<48x64xf32>
    tpu.vector_store %arg13[%c48_44, %c256_45], %34 {strides = array<i32>} : memref<192x512xf32, #tpu.memory_space<vmem>>, vector<48x64xf32>,
    %c232 = arith.constant 232 : index
    %c0_46 = arith.constant 0 : index
    %36 = vector.load %arg12[%c232, %c0_46] : memref<560x64xf32, #tpu.memory_space<vmem>>, vector<48x64xf32>
    %c48_47 = arith.constant 48 : index
    %c320_48 = arith.constant 320 : index
    %37 = vector.load %arg13[%c48_47, %c320_48] : memref<192x512xf32, #tpu.memory_space<vmem>>, vector<48x64xf32>
    tpu.vector_store %arg13[%c48_47, %c320_48], %36 {strides = array<i32>} : memref<192x512xf32, #tpu.memory_space<vmem>>, vector<48x64xf32>,
    %c280 = arith.constant 280 : index
    %c0_49 = arith.constant 0 : index
    %38 = vector.load %arg12[%c280, %c0_49] : memref<560x64xf32, #tpu.memory_space<vmem>>, vector<48x64xf32>
    %c48_50 = arith.constant 48 : index
    %c384_51 = arith.constant 384 : index
    %39 = vector.load %arg13[%c48_50, %c384_51] : memref<192x512xf32, #tpu.memory_space<vmem>>, vector<48x64xf32>
    tpu.vector_store %arg13[%c48_50, %c384_51], %38 {strides = array<i32>} : memref<192x512xf32, #tpu.memory_space<vmem>>, vector<48x64xf32>,
    %c288 = arith.constant 288 : index
    %c0_52 = arith.constant 0 : index
    %40 = vector.load %arg12[%c288, %c0_52] : memref<560x64xf32, #tpu.memory_space<vmem>>, vector<48x64xf32>
    %c48_53 = arith.constant 48 : index
    %c448_54 = arith.constant 448 : index
    %41 = vector.load %arg13[%c48_53, %c448_54] : memref<192x512xf32, #tpu.memory_space<vmem>>, vector<48x64xf32>
    tpu.vector_store %arg13[%c48_53, %c448_54], %40 {strides = array<i32>} : memref<192x512xf32, #tpu.memory_space<vmem>>, vector<48x64xf32>,
    %c224_55 = arith.constant 224 : index
    %c0_56 = arith.constant 0 : index
    %42 = vector.load %arg12[%c224_55, %c0_56] : memref<560x64xf32, #tpu.memory_space<vmem>>, vector<48x64xf32>
    %c96 = arith.constant 96 : index
    %c0_57 = arith.constant 0 : index
    %43 = vector.load %arg13[%c96, %c0_57] : memref<192x512xf32, #tpu.memory_space<vmem>>, vector<48x64xf32>
    tpu.vector_store %arg13[%c96, %c0_57], %42 {strides = array<i32>} : memref<192x512xf32, #tpu.memory_space<vmem>>, vector<48x64xf32>,
    %c232_58 = arith.constant 232 : index
    %c0_59 = arith.constant 0 : index
    %44 = vector.load %arg12[%c232_58, %c0_59] : memref<560x64xf32, #tpu.memory_space<vmem>>, vector<48x64xf32>
    %c96_60 = arith.constant 96 : index
    %c64_61 = arith.constant 64 : index
    %45 = vector.load %arg13[%c96_60, %c64_61] : memref<192x512xf32, #tpu.memory_space<vmem>>, vector<48x64xf32>
    tpu.vector_store %arg13[%c96_60, %c64_61], %44 {strides = array<i32>} : memref<192x512xf32, #tpu.memory_space<vmem>>, vector<48x64xf32>,
    %c280_62 = arith.constant 280 : index
    %c0_63 = arith.constant 0 : index
    %46 = vector.load %arg12[%c280_62, %c0_63] : memref<560x64xf32, #tpu.memory_space<vmem>>, vector<48x64xf32>
    %c96_64 = arith.constant 96 : index
    %c128_65 = arith.constant 128 : index
    %47 = vector.load %arg13[%c96_64, %c128_65] : memref<192x512xf32, #tpu.memory_space<vmem>>, vector<48x64xf32>
    tpu.vector_store %arg13[%c96_64, %c128_65], %46 {strides = array<i32>} : memref<192x512xf32, #tpu.memory_space<vmem>>, vector<48x64xf32>,
    %c288_66 = arith.constant 288 : index
    %c0_67 = arith.constant 0 : index
    %48 = vector.load %arg12[%c288_66, %c0_67] : memref<560x64xf32, #tpu.memory_space<vmem>>, vector<48x64xf32>
    %c96_68 = arith.constant 96 : index
    %c192_69 = arith.constant 192 : index
    %49 = vector.load %arg13[%c96_68, %c192_69] : memref<192x512xf32, #tpu.memory_space<vmem>>, vector<48x64xf32>
    tpu.vector_store %arg13[%c96_68, %c192_69], %48 {strides = array<i32>} : memref<192x512xf32, #tpu.memory_space<vmem>>, vector<48x64xf32>,
    %c336 = arith.constant 336 : index
    %c0_70 = arith.constant 0 : index
    %50 = vector.load %arg12[%c336, %c0_70] : memref<560x64xf32, #tpu.memory_space<vmem>>, vector<48x64xf32>
    %c96_71 = arith.constant 96 : index
    %c256_72 = arith.constant 256 : index
    %51 = vector.load %arg13[%c96_71, %c256_72] : memref<192x512xf32, #tpu.memory_space<vmem>>, vector<48x64xf32>
    tpu.vector_store %arg13[%c96_71, %c256_72], %50 {strides = array<i32>} : memref<192x512xf32, #tpu.memory_space<vmem>>, vector<48x64xf32>,
    %c344 = arith.constant 344 : index
    %c0_73 = arith.constant 0 : index
    %52 = vector.load %arg12[%c344, %c0_73] : memref<560x64xf32, #tpu.memory_space<vmem>>, vector<48x64xf32>
    %c96_74 = arith.constant 96 : index
    %c320_75 = arith.constant 320 : index
    %53 = vector.load %arg13[%c96_74, %c320_75] : memref<192x512xf32, #tpu.memory_space<vmem>>, vector<48x64xf32>
    tpu.vector_store %arg13[%c96_74, %c320_75], %52 {strides = array<i32>} : memref<192x512xf32, #tpu.memory_space<vmem>>, vector<48x64xf32>,
    %c392 = arith.constant 392 : index
    %c0_76 = arith.constant 0 : index
    %54 = vector.load %arg12[%c392, %c0_76] : memref<560x64xf32, #tpu.memory_space<vmem>>, vector<48x64xf32>
    %c96_77 = arith.constant 96 : index
    %c384_78 = arith.constant 384 : index
    %55 = vector.load %arg13[%c96_77, %c384_78] : memref<192x512xf32, #tpu.memory_space<vmem>>, vector<48x64xf32>
    tpu.vector_store %arg13[%c96_77, %c384_78], %54 {strides = array<i32>} : memref<192x512xf32, #tpu.memory_space<vmem>>, vector<48x64xf32>,
    %c400 = arith.constant 400 : index
    %c0_79 = arith.constant 0 : index
    %56 = vector.load %arg12[%c400, %c0_79] : memref<560x64xf32, #tpu.memory_space<vmem>>, vector<48x64xf32>
    %c96_80 = arith.constant 96 : index
    %c448_81 = arith.constant 448 : index
    %57 = vector.load %arg13[%c96_80, %c448_81] : memref<192x512xf32, #tpu.memory_space<vmem>>, vector<48x64xf32>
    tpu.vector_store %arg13[%c96_80, %c448_81], %56 {strides = array<i32>} : memref<192x512xf32, #tpu.memory_space<vmem>>, vector<48x64xf32>,
    %c336_82 = arith.constant 336 : index
    %c0_83 = arith.constant 0 : index
    %58 = vector.load %arg12[%c336_82, %c0_83] : memref<560x64xf32, #tpu.memory_space<vmem>>, vector<48x64xf32>
    %c144 = arith.constant 144 : index
    %c0_84 = arith.constant 0 : index
    %59 = vector.load %arg13[%c144, %c0_84] : memref<192x512xf32, #tpu.memory_space<vmem>>, vector<48x64xf32>
    tpu.vector_store %arg13[%c144, %c0_84], %58 {strides = array<i32>} : memref<192x512xf32, #tpu.memory_space<vmem>>, vector<48x64xf32>,
    %c344_85 = arith.constant 344 : index
    %c0_86 = arith.constant 0 : index
    %60 = vector.load %arg12[%c344_85, %c0_86] : memref<560x64xf32, #tpu.memory_space<vmem>>, vector<48x64xf32>
    %c144_87 = arith.constant 144 : index
    %c64_88 = arith.constant 64 : index
    %61 = vector.load %arg13[%c144_87, %c64_88] : memref<192x512xf32, #tpu.memory_space<vmem>>, vector<48x64xf32>
    tpu.vector_store %arg13[%c144_87, %c64_88], %60 {strides = array<i32>} : memref<192x512xf32, #tpu.memory_space<vmem>>, vector<48x64xf32>,
    %c392_89 = arith.constant 392 : index
    %c0_90 = arith.constant 0 : index
    %62 = vector.load %arg12[%c392_89, %c0_90] : memref<560x64xf32, #tpu.memory_space<vmem>>, vector<48x64xf32>
    %c144_91 = arith.constant 144 : index
    %c128_92 = arith.constant 128 : index
    %63 = vector.load %arg13[%c144_91, %c128_92] : memref<192x512xf32, #tpu.memory_space<vmem>>, vector<48x64xf32>
    tpu.vector_store %arg13[%c144_91, %c128_92], %62 {strides = array<i32>} : memref<192x512xf32, #tpu.memory_space<vmem>>, vector<48x64xf32>,
    %c400_93 = arith.constant 400 : index
    %c0_94 = arith.constant 0 : index
    %64 = vector.load %arg12[%c400_93, %c0_94] : memref<560x64xf32, #tpu.memory_space<vmem>>, vector<48x64xf32>
    %c144_95 = arith.constant 144 : index
    %c192_96 = arith.constant 192 : index
    %65 = vector.load %arg13[%c144_95, %c192_96] : memref<192x512xf32, #tpu.memory_space<vmem>>, vector<48x64xf32>
    tpu.vector_store %arg13[%c144_95, %c192_96], %64 {strides = array<i32>} : memref<192x512xf32, #tpu.memory_space<vmem>>, vector<48x64xf32>,
    %c448_97 = arith.constant 448 : index
    %c0_98 = arith.constant 0 : index
    %66 = vector.load %arg12[%c448_97, %c0_98] : memref<560x64xf32, #tpu.memory_space<vmem>>, vector<48x64xf32>
    %c144_99 = arith.constant 144 : index
    %c256_100 = arith.constant 256 : index
    %67 = vector.load %arg13[%c144_99, %c256_100] : memref<192x512xf32, #tpu.memory_space<vmem>>, vector<48x64xf32>
    tpu.vector_store %arg13[%c144_99, %c256_100], %66 {strides = array<i32>} : memref<192x512xf32, #tpu.memory_space<vmem>>, vector<48x64xf32>,
    %c456 = arith.constant 456 : index
    %c0_101 = arith.constant 0 : index
    %68 = vector.load %arg12[%c456, %c0_101] : memref<560x64xf32, #tpu.memory_space<vmem>>, vector<48x64xf32>
    %c144_102 = arith.constant 144 : index
    %c320_103 = arith.constant 320 : index
    %69 = vector.load %arg13[%c144_102, %c320_103] : memref<192x512xf32, #tpu.memory_space<vmem>>, vector<48x64xf32>
    tpu.vector_store %arg13[%c144_102, %c320_103], %68 {strides = array<i32>} : memref<192x512xf32, #tpu.memory_space<vmem>>, vector<48x64xf32>,
    %c504 = arith.constant 504 : index
    %c0_104 = arith.constant 0 : index
    %70 = vector.load %arg12[%c504, %c0_104] : memref<560x64xf32, #tpu.memory_space<vmem>>, vector<48x64xf32>
    %c144_105 = arith.constant 144 : index
    %c384_106 = arith.constant 384 : index
    %71 = vector.load %arg13[%c144_105, %c384_106] : memref<192x512xf32, #tpu.memory_space<vmem>>, vector<48x64xf32>
    tpu.vector_store %arg13[%c144_105, %c384_106], %70 {strides = array<i32>} : memref<192x512xf32, #tpu.memory_space<vmem>>, vector<48x64xf32>,
    %c512 = arith.constant 512 : index
    %c0_107 = arith.constant 0 : index
    %72 = vector.load %arg12[%c512, %c0_107] : memref<560x64xf32, #tpu.memory_space<vmem>>, vector<48x64xf32>
    %c144_108 = arith.constant 144 : index
    %c448_109 = arith.constant 448 : index
    %73 = vector.load %arg13[%c144_108, %c448_109] : memref<192x512xf32, #tpu.memory_space<vmem>>, vector<48x64xf32>
    tpu.vector_store %arg13[%c144_108, %c448_109], %72 {strides = array<i32>} : memref<192x512xf32, #tpu.memory_space<vmem>>, vector<48x64xf32>,
    %c0_110 = arith.constant 0 : index
    %c0_111 = arith.constant 0 : index
    %74 = vector.load %arg13[%c0_110, %c0_111] : memref<192x512xf32, #tpu.memory_space<vmem>>, vector<192x512xf32>
    %c0_112 = arith.constant 0 : index
    %c0_113 = arith.constant 0 : index
    %75 = vector.load %arg4[%c0_112, %c0_113] : memref<512x64xf32, #tpu.memory_space<vmem>>, vector<512x64xf32>
    %cst_114 = arith.constant dense<0.000000e+00> : vector<192x64xf32>
    %76 = tpu.matmul %74, %75, %cst_114 {dimension_numbers = #tpu.dot_dimension_numbers<[1], [0], [0], [1], [0, 0, 1, 1], [], []>} : vector<192x512xf32>, vector<512x64xf32>, vector<192x64xf32> -> vector<192x64xf32>
    %c0_115 = arith.constant 0 : index
    %c0_116 = arith.constant 0 : index
    %77 = vector.load %arg5[%c0_115, %c0_116] : memref<1x64xf32, #tpu.memory_space<vmem>>, vector<1x64xf32>
    %78 = vector.broadcast %77 : vector<1x64xf32> to vector<192x64xf32>
    %79 = arith.addf %76, %78 : vector<192x64xf32>
    %cst_117 = arith.constant 0.000000e+00 : f32
    %80 = vector.broadcast %cst_117 : f32 to vector<192x64xf32>
    %81 = arith.maximumf %79, %80 : vector<192x64xf32>
    %c0_118 = arith.constant 0 : index
    %c0_119 = arith.constant 0 : index
    %82 = vector.load %arg14[%c0_118, %c0_119] : memref<192x64xf32, #tpu.memory_space<vmem>>, vector<192x64xf32>
    tpu.vector_store %arg14[%c0_118, %c0_119], %81 {strides = array<i32>} : memref<192x64xf32, #tpu.memory_space<vmem>>, vector<192x64xf32>,
    %c0_120 = arith.constant 0 : index
    %c0_121 = arith.constant 0 : index
    %83 = vector.load %arg14[%c0_120, %c0_121] : memref<192x64xf32, #tpu.memory_space<vmem>>, vector<32x64xf32>
    %c0_122 = arith.constant 0 : index
    %c0_123 = arith.constant 0 : index
    %84 = vector.load %arg15[%c0_122, %c0_123] : memref<64x576xf32, #tpu.memory_space<vmem>>, vector<32x64xf32>
    tpu.vector_store %arg15[%c0_122, %c0_123], %83 {strides = array<i32>} : memref<64x576xf32, #tpu.memory_space<vmem>>, vector<32x64xf32>,
    %c8_124 = arith.constant 8 : index
    %c0_125 = arith.constant 0 : index
    %85 = vector.load %arg14[%c8_124, %c0_125] : memref<192x64xf32, #tpu.memory_space<vmem>>, vector<32x64xf32>
    %c0_126 = arith.constant 0 : index
    %c64_127 = arith.constant 64 : index
    %86 = vector.load %arg15[%c0_126, %c64_127] : memref<64x576xf32, #tpu.memory_space<vmem>>, vector<32x64xf32>
    tpu.vector_store %arg15[%c0_126, %c64_127], %85 {strides = array<i32>} : memref<64x576xf32, #tpu.memory_space<vmem>>, vector<32x64xf32>,
    %c16 = arith.constant 16 : index
    %c0_128 = arith.constant 0 : index
    %87 = vector.load %arg14[%c16, %c0_128] : memref<192x64xf32, #tpu.memory_space<vmem>>, vector<32x64xf32>
    %c0_129 = arith.constant 0 : index
    %c128_130 = arith.constant 128 : index
    %88 = vector.load %arg15[%c0_129, %c128_130] : memref<64x576xf32, #tpu.memory_space<vmem>>, vector<32x64xf32>
    tpu.vector_store %arg15[%c0_129, %c128_130], %87 {strides = array<i32>} : memref<64x576xf32, #tpu.memory_space<vmem>>, vector<32x64xf32>,
    %c48_131 = arith.constant 48 : index
    %c0_132 = arith.constant 0 : index
    %89 = vector.load %arg14[%c48_131, %c0_132] : memref<192x64xf32, #tpu.memory_space<vmem>>, vector<32x64xf32>
    %c0_133 = arith.constant 0 : index
    %c192_134 = arith.constant 192 : index
    %90 = vector.load %arg15[%c0_133, %c192_134] : memref<64x576xf32, #tpu.memory_space<vmem>>, vector<32x64xf32>
    tpu.vector_store %arg15[%c0_133, %c192_134], %89 {strides = array<i32>} : memref<64x576xf32, #tpu.memory_space<vmem>>, vector<32x64xf32>,
    %c56_135 = arith.constant 56 : index
    %c0_136 = arith.constant 0 : index
    %91 = vector.load %arg14[%c56_135, %c0_136] : memref<192x64xf32, #tpu.memory_space<vmem>>, vector<32x64xf32>
    %c0_137 = arith.constant 0 : index
    %c256_138 = arith.constant 256 : index
    %92 = vector.load %arg15[%c0_137, %c256_138] : memref<64x576xf32, #tpu.memory_space<vmem>>, vector<32x64xf32>
    tpu.vector_store %arg15[%c0_137, %c256_138], %91 {strides = array<i32>} : memref<64x576xf32, #tpu.memory_space<vmem>>, vector<32x64xf32>,
    %c64_139 = arith.constant 64 : index
    %c0_140 = arith.constant 0 : index
    %93 = vector.load %arg14[%c64_139, %c0_140] : memref<192x64xf32, #tpu.memory_space<vmem>>, vector<32x64xf32>
    %c0_141 = arith.constant 0 : index
    %c320_142 = arith.constant 320 : index
    %94 = vector.load %arg15[%c0_141, %c320_142] : memref<64x576xf32, #tpu.memory_space<vmem>>, vector<32x64xf32>
    tpu.vector_store %arg15[%c0_141, %c320_142], %93 {strides = array<i32>} : memref<64x576xf32, #tpu.memory_space<vmem>>, vector<32x64xf32>,
    %c96_143 = arith.constant 96 : index
    %c0_144 = arith.constant 0 : index
    %95 = vector.load %arg14[%c96_143, %c0_144] : memref<192x64xf32, #tpu.memory_space<vmem>>, vector<32x64xf32>
    %c0_145 = arith.constant 0 : index
    %c384_146 = arith.constant 384 : index
    %96 = vector.load %arg15[%c0_145, %c384_146] : memref<64x576xf32, #tpu.memory_space<vmem>>, vector<32x64xf32>
    tpu.vector_store %arg15[%c0_145, %c384_146], %95 {strides = array<i32>} : memref<64x576xf32, #tpu.memory_space<vmem>>, vector<32x64xf32>,
    %c104 = arith.constant 104 : index
    %c0_147 = arith.constant 0 : index
    %97 = vector.load %arg14[%c104, %c0_147] : memref<192x64xf32, #tpu.memory_space<vmem>>, vector<32x64xf32>
    %c0_148 = arith.constant 0 : index
    %c448_149 = arith.constant 448 : index
    %98 = vector.load %arg15[%c0_148, %c448_149] : memref<64x576xf32, #tpu.memory_space<vmem>>, vector<32x64xf32>
    tpu.vector_store %arg15[%c0_148, %c448_149], %97 {strides = array<i32>} : memref<64x576xf32, #tpu.memory_space<vmem>>, vector<32x64xf32>,
    %c112_150 = arith.constant 112 : index
    %c0_151 = arith.constant 0 : index
    %99 = vector.load %arg14[%c112_150, %c0_151] : memref<192x64xf32, #tpu.memory_space<vmem>>, vector<32x64xf32>
    %c0_152 = arith.constant 0 : index
    %c512_153 = arith.constant 512 : index
    %100 = vector.load %arg15[%c0_152, %c512_153] : memref<64x576xf32, #tpu.memory_space<vmem>>, vector<32x64xf32>
    tpu.vector_store %arg15[%c0_152, %c512_153], %99 {strides = array<i32>} : memref<64x576xf32, #tpu.memory_space<vmem>>, vector<32x64xf32>,
    %c48_154 = arith.constant 48 : index
    %c0_155 = arith.constant 0 : index
    %101 = vector.load %arg14[%c48_154, %c0_155] : memref<192x64xf32, #tpu.memory_space<vmem>>, vector<32x64xf32>
    %c32 = arith.constant 32 : index
    %c0_156 = arith.constant 0 : index
    %102 = vector.load %arg15[%c32, %c0_156] : memref<64x576xf32, #tpu.memory_space<vmem>>, vector<32x64xf32>
    tpu.vector_store %arg15[%c32, %c0_156], %101 {strides = array<i32>} : memref<64x576xf32, #tpu.memory_space<vmem>>, vector<32x64xf32>,
    %c56_157 = arith.constant 56 : index
    %c0_158 = arith.constant 0 : index
    %103 = vector.load %arg14[%c56_157, %c0_158] : memref<192x64xf32, #tpu.memory_space<vmem>>, vector<32x64xf32>
    %c32_159 = arith.constant 32 : index
    %c64_160 = arith.constant 64 : index
    %104 = vector.load %arg15[%c32_159, %c64_160] : memref<64x576xf32, #tpu.memory_space<vmem>>, vector<32x64xf32>
    tpu.vector_store %arg15[%c32_159, %c64_160], %103 {strides = array<i32>} : memref<64x576xf32, #tpu.memory_space<vmem>>, vector<32x64xf32>,
    %c64_161 = arith.constant 64 : index
    %c0_162 = arith.constant 0 : index
    %105 = vector.load %arg14[%c64_161, %c0_162] : memref<192x64xf32, #tpu.memory_space<vmem>>, vector<32x64xf32>
    %c32_163 = arith.constant 32 : index
    %c128_164 = arith.constant 128 : index
    %106 = vector.load %arg15[%c32_163, %c128_164] : memref<64x576xf32, #tpu.memory_space<vmem>>, vector<32x64xf32>
    tpu.vector_store %arg15[%c32_163, %c128_164], %105 {strides = array<i32>} : memref<64x576xf32, #tpu.memory_space<vmem>>, vector<32x64xf32>,
    %c96_165 = arith.constant 96 : index
    %c0_166 = arith.constant 0 : index
    %107 = vector.load %arg14[%c96_165, %c0_166] : memref<192x64xf32, #tpu.memory_space<vmem>>, vector<32x64xf32>
    %c32_167 = arith.constant 32 : index
    %c192_168 = arith.constant 192 : index
    %108 = vector.load %arg15[%c32_167, %c192_168] : memref<64x576xf32, #tpu.memory_space<vmem>>, vector<32x64xf32>
    tpu.vector_store %arg15[%c32_167, %c192_168], %107 {strides = array<i32>} : memref<64x576xf32, #tpu.memory_space<vmem>>, vector<32x64xf32>,
    %c104_169 = arith.constant 104 : index
    %c0_170 = arith.constant 0 : index
    %109 = vector.load %arg14[%c104_169, %c0_170] : memref<192x64xf32, #tpu.memory_space<vmem>>, vector<32x64xf32>
    %c32_171 = arith.constant 32 : index
    %c256_172 = arith.constant 256 : index
    %110 = vector.load %arg15[%c32_171, %c256_172] : memref<64x576xf32, #tpu.memory_space<vmem>>, vector<32x64xf32>
    tpu.vector_store %arg15[%c32_171, %c256_172], %109 {strides = array<i32>} : memref<64x576xf32, #tpu.memory_space<vmem>>, vector<32x64xf32>,
    %c112_173 = arith.constant 112 : index
    %c0_174 = arith.constant 0 : index
    %111 = vector.load %arg14[%c112_173, %c0_174] : memref<192x64xf32, #tpu.memory_space<vmem>>, vector<32x64xf32>
    %c32_175 = arith.constant 32 : index
    %c320_176 = arith.constant 320 : index
    %112 = vector.load %arg15[%c32_175, %c320_176] : memref<64x576xf32, #tpu.memory_space<vmem>>, vector<32x64xf32>
    tpu.vector_store %arg15[%c32_175, %c320_176], %111 {strides = array<i32>} : memref<64x576xf32, #tpu.memory_space<vmem>>, vector<32x64xf32>,
    %c144_177 = arith.constant 144 : index
    %c0_178 = arith.constant 0 : index
    %113 = vector.load %arg14[%c144_177, %c0_178] : memref<192x64xf32, #tpu.memory_space<vmem>>, vector<32x64xf32>
    %c32_179 = arith.constant 32 : index
    %c384_180 = arith.constant 384 : index
    %114 = vector.load %arg15[%c32_179, %c384_180] : memref<64x576xf32, #tpu.memory_space<vmem>>, vector<32x64xf32>
    tpu.vector_store %arg15[%c32_179, %c384_180], %113 {strides = array<i32>} : memref<64x576xf32, #tpu.memory_space<vmem>>, vector<32x64xf32>,
    %c152 = arith.constant 152 : index
    %c0_181 = arith.constant 0 : index
    %115 = vector.load %arg14[%c152, %c0_181] : memref<192x64xf32, #tpu.memory_space<vmem>>, vector<32x64xf32>
    %c32_182 = arith.constant 32 : index
    %c448_183 = arith.constant 448 : index
    %116 = vector.load %arg15[%c32_182, %c448_183] : memref<64x576xf32, #tpu.memory_space<vmem>>, vector<32x64xf32>
    tpu.vector_store %arg15[%c32_182, %c448_183], %115 {strides = array<i32>} : memref<64x576xf32, #tpu.memory_space<vmem>>, vector<32x64xf32>,
    %c160 = arith.constant 160 : index
    %c0_184 = arith.constant 0 : index
    %117 = vector.load %arg14[%c160, %c0_184] : memref<192x64xf32, #tpu.memory_space<vmem>>, vector<32x64xf32>
    %c32_185 = arith.constant 32 : index
    %c512_186 = arith.constant 512 : index
    %118 = vector.load %arg15[%c32_185, %c512_186] : memref<64x576xf32, #tpu.memory_space<vmem>>, vector<32x64xf32>
    tpu.vector_store %arg15[%c32_185, %c512_186], %117 {strides = array<i32>} : memref<64x576xf32, #tpu.memory_space<vmem>>, vector<32x64xf32>,
    %c0_187 = arith.constant 0 : index
    %c0_188 = arith.constant 0 : index
    %119 = vector.load %arg15[%c0_187, %c0_188] : memref<64x576xf32, #tpu.memory_space<vmem>>, vector<64x576xf32>
    %c0_189 = arith.constant 0 : index
    %c0_190 = arith.constant 0 : index
    %120 = vector.load %arg6[%c0_189, %c0_190] : memref<576x64xf32, #tpu.memory_space<vmem>>, vector<576x64xf32>
    %cst_191 = arith.constant dense<0.000000e+00> : vector<64x64xf32>
    %121 = tpu.matmul %119, %120, %cst_191 {dimension_numbers = #tpu.dot_dimension_numbers<[1], [0], [0], [1], [0, 0, 1, 1], [], []>} : vector<64x576xf32>, vector<576x64xf32>, vector<64x64xf32> -> vector<64x64xf32>
    %c0_192 = arith.constant 0 : index
    %c0_193 = arith.constant 0 : index
    %122 = vector.load %arg7[%c0_192, %c0_193] : memref<1x64xf32, #tpu.memory_space<vmem>>, vector<1x64xf32>
    %123 = vector.broadcast %122 : vector<1x64xf32> to vector<64x64xf32>
    %124 = arith.addf %121, %123 : vector<64x64xf32>
    %cst_194 = arith.constant 0.000000e+00 : f32
    %125 = vector.broadcast %cst_194 : f32 to vector<64x64xf32>
    %126 = arith.maximumf %124, %125 : vector<64x64xf32>
    %c0_195 = arith.constant 0 : index
    %c0_196 = arith.constant 0 : index
    %127 = vector.load %arg16[%c0_195, %c0_196] : memref<64x64xf32, #tpu.memory_space<vmem>>, vector<64x64xf32>
    tpu.vector_store %arg16[%c0_195, %c0_196], %126 {strides = array<i32>} : memref<64x64xf32, #tpu.memory_space<vmem>>, vector<64x64xf32>,
    %c0_197 = arith.constant 0 : index
    %c0_198 = arith.constant 0 : index
    %128 = vector.load %arg16[%c0_197, %c0_198] : memref<64x64xf32, #tpu.memory_space<vmem>>, vector<8x64xf32>
    %c0_199 = arith.constant 0 : index
    %c0_200 = arith.constant 0 : index
    %c0_201 = arith.constant 0 : index
    %129 = vector.load %arg11[%c0_199, %c0_200, %c0_201] : memref<1x8x512xf32, #tpu.memory_space<vmem>>, vector<1x8x64xf32>
    %130 = vector.shape_cast %129 : vector<1x8x64xf32> to vector<8x64xf32>
    %131 = vector.shape_cast %128 : vector<8x64xf32> to vector<1x8x64xf32>
    tpu.vector_store %arg11[%c0_199, %c0_200, %c0_201], %131 {strides = array<i32>} : memref<1x8x512xf32, #tpu.memory_space<vmem>>, vector<1x8x64xf32>,
    %c8_202 = arith.constant 8 : index
    %c0_203 = arith.constant 0 : index
    %132 = vector.load %arg16[%c8_202, %c0_203] : memref<64x64xf32, #tpu.memory_space<vmem>>, vector<8x64xf32>
    %c0_204 = arith.constant 0 : index
    %c0_205 = arith.constant 0 : index
    %c64_206 = arith.constant 64 : index
    %133 = vector.load %arg11[%c0_204, %c0_205, %c64_206] : memref<1x8x512xf32, #tpu.memory_space<vmem>>, vector<1x8x64xf32>
    %134 = vector.shape_cast %133 : vector<1x8x64xf32> to vector<8x64xf32>
    %135 = vector.shape_cast %132 : vector<8x64xf32> to vector<1x8x64xf32>
    tpu.vector_store %arg11[%c0_204, %c0_205, %c64_206], %135 {strides = array<i32>} : memref<1x8x512xf32, #tpu.memory_space<vmem>>, vector<1x8x64xf32>,
    %c16_207 = arith.constant 16 : index
    %c0_208 = arith.constant 0 : index
    %136 = vector.load %arg16[%c16_207, %c0_208] : memref<64x64xf32, #tpu.memory_space<vmem>>, vector<8x64xf32>
    %c0_209 = arith.constant 0 : index
    %c0_210 = arith.constant 0 : index
    %c128_211 = arith.constant 128 : index
    %137 = vector.load %arg11[%c0_209, %c0_210, %c128_211] : memref<1x8x512xf32, #tpu.memory_space<vmem>>, vector<1x8x64xf32>
    %138 = vector.shape_cast %137 : vector<1x8x64xf32> to vector<8x64xf32>
    %139 = vector.shape_cast %136 : vector<8x64xf32> to vector<1x8x64xf32>
    tpu.vector_store %arg11[%c0_209, %c0_210, %c128_211], %139 {strides = array<i32>} : memref<1x8x512xf32, #tpu.memory_space<vmem>>, vector<1x8x64xf32>,
    %c24 = arith.constant 24 : index
    %c0_212 = arith.constant 0 : index
    %140 = vector.load %arg16[%c24, %c0_212] : memref<64x64xf32, #tpu.memory_space<vmem>>, vector<8x64xf32>
    %c0_213 = arith.constant 0 : index
    %c0_214 = arith.constant 0 : index
    %c192_215 = arith.constant 192 : index
    %141 = vector.load %arg11[%c0_213, %c0_214, %c192_215] : memref<1x8x512xf32, #tpu.memory_space<vmem>>, vector<1x8x64xf32>
    %142 = vector.shape_cast %141 : vector<1x8x64xf32> to vector<8x64xf32>
    %143 = vector.shape_cast %140 : vector<8x64xf32> to vector<1x8x64xf32>
    tpu.vector_store %arg11[%c0_213, %c0_214, %c192_215], %143 {strides = array<i32>} : memref<1x8x512xf32, #tpu.memory_space<vmem>>, vector<1x8x64xf32>,
    %c32_216 = arith.constant 32 : index
    %c0_217 = arith.constant 0 : index
    %144 = vector.load %arg16[%c32_216, %c0_217] : memref<64x64xf32, #tpu.memory_space<vmem>>, vector<8x64xf32>
    %c0_218 = arith.constant 0 : index
    %c0_219 = arith.constant 0 : index
    %c256_220 = arith.constant 256 : index
    %145 = vector.load %arg11[%c0_218, %c0_219, %c256_220] : memref<1x8x512xf32, #tpu.memory_space<vmem>>, vector<1x8x64xf32>
    %146 = vector.shape_cast %145 : vector<1x8x64xf32> to vector<8x64xf32>
    %147 = vector.shape_cast %144 : vector<8x64xf32> to vector<1x8x64xf32>
    tpu.vector_store %arg11[%c0_218, %c0_219, %c256_220], %147 {strides = array<i32>} : memref<1x8x512xf32, #tpu.memory_space<vmem>>, vector<1x8x64xf32>,
    %c40 = arith.constant 40 : index
    %c0_221 = arith.constant 0 : index
    %148 = vector.load %arg16[%c40, %c0_221] : memref<64x64xf32, #tpu.memory_space<vmem>>, vector<8x64xf32>
    %c0_222 = arith.constant 0 : index
    %c0_223 = arith.constant 0 : index
    %c320_224 = arith.constant 320 : index
    %149 = vector.load %arg11[%c0_222, %c0_223, %c320_224] : memref<1x8x512xf32, #tpu.memory_space<vmem>>, vector<1x8x64xf32>
    %150 = vector.shape_cast %149 : vector<1x8x64xf32> to vector<8x64xf32>
    %151 = vector.shape_cast %148 : vector<8x64xf32> to vector<1x8x64xf32>
    tpu.vector_store %arg11[%c0_222, %c0_223, %c320_224], %151 {strides = array<i32>} : memref<1x8x512xf32, #tpu.memory_space<vmem>>, vector<1x8x64xf32>,
    %c48_225 = arith.constant 48 : index
    %c0_226 = arith.constant 0 : index
    %152 = vector.load %arg16[%c48_225, %c0_226] : memref<64x64xf32, #tpu.memory_space<vmem>>, vector<8x64xf32>
    %c0_227 = arith.constant 0 : index
    %c0_228 = arith.constant 0 : index
    %c384_229 = arith.constant 384 : index
    %153 = vector.load %arg11[%c0_227, %c0_228, %c384_229] : memref<1x8x512xf32, #tpu.memory_space<vmem>>, vector<1x8x64xf32>
    %154 = vector.shape_cast %153 : vector<1x8x64xf32> to vector<8x64xf32>
    %155 = vector.shape_cast %152 : vector<8x64xf32> to vector<1x8x64xf32>
    tpu.vector_store %arg11[%c0_227, %c0_228, %c384_229], %155 {strides = array<i32>} : memref<1x8x512xf32, #tpu.memory_space<vmem>>, vector<1x8x64xf32>,
    %c56_230 = arith.constant 56 : index
    %c0_231 = arith.constant 0 : index
    %156 = vector.load %arg16[%c56_230, %c0_231] : memref<64x64xf32, #tpu.memory_space<vmem>>, vector<8x64xf32>
    %c0_232 = arith.constant 0 : index
    %c0_233 = arith.constant 0 : index
    %c448_234 = arith.constant 448 : index
    %157 = vector.load %arg11[%c0_232, %c0_233, %c448_234] : memref<1x8x512xf32, #tpu.memory_space<vmem>>, vector<1x8x64xf32>
    %158 = vector.shape_cast %157 : vector<1x8x64xf32> to vector<8x64xf32>
    %159 = vector.shape_cast %156 : vector<8x64xf32> to vector<1x8x64xf32>
    tpu.vector_store %arg11[%c0_232, %c0_233, %c448_234], %159 {strides = array<i32>} : memref<1x8x512xf32, #tpu.memory_space<vmem>>, vector<1x8x64xf32>,
    %c0_235 = arith.constant 0 : index
    %c0_236 = arith.constant 0 : index
    %c0_237 = arith.constant 0 : index
    %160 = vector.load %arg11[%c0_235, %c0_236, %c0_237] : memref<1x8x512xf32, #tpu.memory_space<vmem>>, vector<1x8x512xf32>
    %161 = vector.shape_cast %160 : vector<1x8x512xf32> to vector<8x512xf32>
    %c0_238 = arith.constant 0 : index
    %c0_239 = arith.constant 0 : index
    %162 = vector.load %arg8[%c0_238, %c0_239] : memref<512x128xf32, #tpu.memory_space<vmem>>, vector<512x128xf32>
    %cst_240 = arith.constant dense<0.000000e+00> : vector<8x128xf32>
    %163 = tpu.matmul %161, %162, %cst_240 {dimension_numbers = #tpu.dot_dimension_numbers<[1], [0], [0], [1], [0, 0, 1, 1], [], []>} : vector<8x512xf32>, vector<512x128xf32>, vector<8x128xf32> -> vector<8x128xf32>
    %c0_241 = arith.constant 0 : index
    %c0_242 = arith.constant 0 : index
    %164 = vector.load %arg9[%c0_241, %c0_242] : memref<1x128xf32, #tpu.memory_space<vmem>>, vector<1x128xf32>
    %165 = vector.broadcast %164 : vector<1x128xf32> to vector<8x128xf32>
    %166 = arith.addf %163, %165 : vector<8x128xf32>
    %c0_243 = arith.constant 0 : index
    %c0_244 = arith.constant 0 : index
    %c0_245 = arith.constant 0 : index
    %167 = vector.load %arg10[%c0_243, %c0_244, %c0_245] : memref<1x8x128xf32, #tpu.memory_space<vmem>>, vector<1x8x128xf32>
    %168 = vector.shape_cast %167 : vector<1x8x128xf32> to vector<8x128xf32>
    %169 = vector.shape_cast %166 : vector<8x128xf32> to vector<1x8x128xf32>
    tpu.vector_store %arg10[%c0_243, %c0_244, %c0_245], %169 {strides = array<i32>} : memref<1x8x128xf32, #tpu.memory_space<vmem>>, vector<1x8x128xf32>,
    return
  }
  func.func @transform_0(%arg0: i32) -> (i32, i32, i32) {
    %c0_i32 = arith.constant 0 : i32
    %c0_i32_0 = arith.constant 0 : i32
    %c0_i32_1 = arith.constant 0 : i32
    return %arg0, %c0_i32, %c0_i32_0 : i32, i32, i32
  }
  func.func @transform_1(%arg0: i32) -> (i32, i32) {
    %c0_i32 = arith.constant 0 : i32
    %c0_i32_0 = arith.constant 0 : i32
    %c0_i32_1 = arith.constant 0 : i32
    return %c0_i32, %c0_i32_0 : i32, i32
  }
  func.func @transform_2(%arg0: i32) -> (i32, i32) {
    %c0_i32 = arith.constant 0 : i32
    %c0_i32_0 = arith.constant 0 : i32
    %c0_i32_1 = arith.constant 0 : i32
    return %c0_i32, %c0_i32_0 : i32, i32
  }
  func.func @transform_3(%arg0: i32) -> (i32, i32) {
    %c0_i32 = arith.constant 0 : i32
    %c0_i32_0 = arith.constant 0 : i32
    %c0_i32_1 = arith.constant 0 : i32
    return %c0_i32, %c0_i32_0 : i32, i32
  }
  func.func @transform_4(%arg0: i32) -> (i32, i32) {
    %c0_i32 = arith.constant 0 : i32
    %c0_i32_0 = arith.constant 0 : i32
    %c0_i32_1 = arith.constant 0 : i32
    return %c0_i32, %c0_i32_0 : i32, i32
  }
  func.func @transform_5(%arg0: i32) -> (i32, i32) {
    %c0_i32 = arith.constant 0 : i32
    %c0_i32_0 = arith.constant 0 : i32
    %c0_i32_1 = arith.constant 0 : i32
    return %c0_i32, %c0_i32_0 : i32, i32
  }
  func.func @transform_6(%arg0: i32) -> (i32, i32) {
    %c0_i32 = arith.constant 0 : i32
    %c0_i32_0 = arith.constant 0 : i32
    %c0_i32_1 = arith.constant 0 : i32
    return %c0_i32, %c0_i32_0 : i32, i32
  }
  func.func @transform_7(%arg0: i32) -> (i32, i32) {
    %c0_i32 = arith.constant 0 : i32
    %c0_i32_0 = arith.constant 0 : i32
    %c0_i32_1 = arith.constant 0 : i32
    return %c0_i32, %c0_i32_0 : i32, i32
  }
  func.func @transform_8(%arg0: i32) -> (i32, i32) {
    %c0_i32 = arith.constant 0 : i32
    %c0_i32_0 = arith.constant 0 : i32
    %c0_i32_1 = arith.constant 0 : i32
    return %c0_i32, %c0_i32_0 : i32, i32
  }
  func.func @transform_9(%arg0: i32) -> (i32, i32, i32) {
    %c0_i32 = arith.constant 0 : i32
    %c0_i32_0 = arith.constant 0 : i32
    %c0_i32_1 = arith.constant 0 : i32
    return %arg0, %c0_i32, %c0_i32_0 : i32, i32, i32
  }
  func.func @transform_10(%arg0: i32) -> (i32, i32, i32) {
    %c0_i32 = arith.constant 0 : i32
    %c0_i32_0 = arith.constant 0 : i32
    %c0_i32_1 = arith.constant 0 : i32
    return %arg0, %c0_i32, %c0_i32_0 : i32, i32, i32
  }
}

</mosaic_0001>

<llo_original>
// kernel: cnn_dqn_forward.1
$region0: #{cnn_dqn_forward.1}
  #allocation0 [shape = 'u32[]', space=smem, size = 0x4, offset = 0x4, fixed_abs, tag = 'smem constant byte address 0x4 - core index']
  #allocation1 [shape = 'u32[144,128]{1,0:T(1,128)}', space=vmem, size = 0x12000, scoped, tag = 'internal scratch']
  #allocation2 [shape = 'f32[560,64]{1,0:T(8,128)}', space=vmem, size = 0x46000, scoped, tag = 'scratch operand']
  #allocation3 [shape = 'f32[192,512]{1,0:T(8,128)}', space=vmem, size = 0x60000, scoped, tag = 'scratch operand']
  #allocation4 [shape = 'f32[192,64]{1,0:T(8,128)}', space=vmem, size = 0x18000, scoped, tag = 'scratch operand']
  #allocation5 [shape = 'f32[64,576]{1,0:T(8,128)}', space=vmem, size = 0x28000, scoped, tag = 'scratch operand']
  #allocation6 [shape = 'f32[64,64]{1,0:T(8,128)}', space=vmem, size = 0x8000, scoped, tag = 'scratch operand']
  %s0 = inlined_call_operand.vmem [shape: f32[2,560,512], index: 0, kind: input, shape index: {}]
  %s1 = inlined_call_operand.vmem [shape: f32[512,64], index: 1, kind: input, shape index: {}]
  %s2 = inlined_call_operand.vmem [shape: f32[1,64], index: 2, kind: input, shape index: {}]
  %s3 = inlined_call_operand.vmem [shape: f32[512,64], index: 3, kind: input, shape index: {}]
  %s4 = inlined_call_operand.vmem [shape: f32[1,64], index: 4, kind: input, shape index: {}]
  %s5 = inlined_call_operand.vmem [shape: f32[576,64], index: 5, kind: input, shape index: {}]
  %s6 = inlined_call_operand.vmem [shape: f32[1,64], index: 6, kind: input, shape index: {}]
  %s7 = inlined_call_operand.vmem [shape: f32[512,128], index: 7, kind: input, shape index: {}]
  %s8 = inlined_call_operand.vmem [shape: f32[1,128], index: 8, kind: input, shape index: {}]
  %s9 = inlined_call_operand.vmem [shape: f32[2,8,128], index: 9, kind: output, shape index: {0}]
  %s10 = inlined_call_operand.vmem [shape: f32[2,8,512], index: 10, kind: output, shape index: {1}]
  %11 = xla_tuple %s9, %s10
  %s12 = sld [smem:[#allocation0]]
  $region77: #{cnn_dqn_forward.1} parent=0
    _
  %s14 = ssub.s32 1, %s12
  %s15 = scalar_select 0, %s14, %s12
  loop: start=0, step=1, limit=4
  $region2: #{cnn_dqn_forward.1} parent=0 // loop_pre_header
    _
  $region3: #{cnn_dqn_forward.1} parent=0 // loop_header
    %s17 = sphi 0, %s21
    %p18 = scmp.ge.s32.totalorder %s17, 4
    %s27 = sphi 0, %s29
    %s30 = sphi 0, %s27
    %s31 = sphi 0, %s30
    %s47 = sphi 0, %s31
    %s51 = sphi 0, %s51
    %s53 = sphi 0, %s51
    %s54 = sphi 0, %s53
    %s68 = sphi 0, %s54
    %s72 = sphi 0, %s72
    %s74 = sphi 0, %s72
    %s75 = sphi 0, %s74
    %s89 = sphi 0, %s75
    %s93 = sphi 0, %s93
    %s95 = sphi 0, %s93
    %s96 = sphi 0, %s95
    %s110 = sphi 0, %s96
    %s114 = sphi 0, %s114
    %s116 = sphi 0, %s114
    %s117 = sphi 0, %s116
    %s131 = sphi 0, %s117
    %s135 = sphi 0, %s135
    %s137 = sphi 0, %s135
    %s138 = sphi 0, %s137
    %s152 = sphi 0, %s138
    %s156 = sphi 0, %s156
    %s158 = sphi 0, %s156
    %s159 = sphi 0, %s158
    %s173 = sphi 0, %s159
    %s177 = sphi 0, %s177
    %s179 = sphi 0, %s177
    %s180 = sphi 0, %s179
    %s194 = sphi 0, %s180
    %s198 = sphi 0, %s198
    %s200 = sphi 0, %s198
    %s201 = sphi 0, %s200
    %s215 = sphi 0, %s201
    %s221 = sphi 0, %s223
    %s224 = sphi 0, %s221
    %s225 = sphi 0, %s224
    %s241 = sphi 0, %s225
    %s247 = sphi 0, %s249
    %s250 = sphi 0, %s247
    %s251 = sphi 0, %s250
    %s267 = sphi 0, %s251
  $region4: #{cnn_dqn_forward.1} parent=0 // loop_header_branch
    %20 = sbr.rel (%p18) target = $region8
  $region5: #{cnn_dqn_forward.1} parent=0 // loop_body
    %s22 = ssub.s32 %s17, 1
    %s23 = ssub.s32 %s17, 2
    %s24 = sadd.s32 %s17, 1
    %s25 = ssub.s32 %s17, %s24
    %p26 = scmp.eq.s32.totalorder %s25, 0
    %s28 = sadd.s32 %s27, 1
    %s29 = scalar_select %p26, %s27, %s28
    %p32 = pneg %p26
    %p33 = scmp.eq.s32.totalorder %s17, 1
    %p34 = por %p32, %p33
    %p35 = scmp.ne.s32.totalorder %s27, %s30
    %p36 = scmp.eq.s32.totalorder %s17, 0
    %p37 = por %p35, %p36
    %p38 = scmp.ne.s32.totalorder %s27, %s30
    %p39 = scmp.eq.s32.totalorder %s22, 1
    %p40 = por %p38, %p39
    %p41 = scmp.ne.s32.totalorder %s30, %s31
    %p42 = scmp.eq.s32.totalorder %s22, 0
    %p43 = por %p41, %p42
    %p44 = scmp.ne.s32.totalorder %s30, %s31
    %p45 = scmp.eq.s32.totalorder %s23, 1
    %p46 = por %p44, %p45
    %p48 = scmp.ne.s32.totalorder %s31, %s47
    %p49 = scmp.eq.s32.totalorder %s23, 0
    %p50 = por %p48, %p49
    %s52 = sadd.s32 %s51, 1
    %p55 = scmp.eq.s32.totalorder %s17, 1
    %p56 = scmp.ne.s32.totalorder %s51, %s53
    %p57 = scmp.eq.s32.totalorder %s17, 0
    %p58 = por %p56, %p57
    %p59 = scmp.ne.s32.totalorder %s51, %s53
    %p60 = scmp.eq.s32.totalorder %s22, 1
    %p61 = por %p59, %p60
    %p62 = scmp.ne.s32.totalorder %s53, %s54
    %p63 = scmp.eq.s32.totalorder %s22, 0
    %p64 = por %p62, %p63
    %p65 = scmp.ne.s32.totalorder %s53, %s54
    %p66 = scmp.eq.s32.totalorder %s23, 1
    %p67 = por %p65, %p66
    %p69 = scmp.ne.s32.totalorder %s54, %s68
    %p70 = scmp.eq.s32.totalorder %s23, 0
    %p71 = por %p69, %p70
    %s73 = sadd.s32 %s72, 1
    %p76 = scmp.eq.s32.totalorder %s17, 1
    %p77 = scmp.ne.s32.totalorder %s72, %s74
    %p78 = scmp.eq.s32.totalorder %s17, 0
    %p79 = por %p77, %p78
    %p80 = scmp.ne.s32.totalorder %s72, %s74
    %p81 = scmp.eq.s32.totalorder %s22, 1
    %p82 = por %p80, %p81
    %p83 = scmp.ne.s32.totalorder %s74, %s75
    %p84 = scmp.eq.s32.totalorder %s22, 0
    %p85 = por %p83, %p84
    %p86 = scmp.ne.s32.totalorder %s74, %s75
    %p87 = scmp.eq.s32.totalorder %s23, 1
    %p88 = por %p86, %p87
    %p90 = scmp.ne.s32.totalorder %s75, %s89
    %p91 = scmp.eq.s32.totalorder %s23, 0
    %p92 = por %p90, %p91
    %s94 = sadd.s32 %s93, 1
    %p97 = scmp.eq.s32.totalorder %s17, 1
    %p98 = scmp.ne.s32.totalorder %s93, %s95
    %p99 = scmp.eq.s32.totalorder %s17, 0
    %p100 = por %p98, %p99
    %p101 = scmp.ne.s32.totalorder %s93, %s95
    %p102 = scmp.eq.s32.totalorder %s22, 1
    %p103 = por %p101, %p102
    %p104 = scmp.ne.s32.totalorder %s95, %s96
    %p105 = scmp.eq.s32.totalorder %s22, 0
    %p106 = por %p104, %p105
    %p107 = scmp.ne.s32.totalorder %s95, %s96
    %p108 = scmp.eq.s32.totalorder %s23, 1
    %p109 = por %p107, %p108
    %p111 = scmp.ne.s32.totalorder %s96, %s110
    %p112 = scmp.eq.s32.totalorder %s23, 0
    %p113 = por %p111, %p112
    %s115 = sadd.s32 %s114, 1
    %p118 = scmp.eq.s32.totalorder %s17, 1
    %p119 = scmp.ne.s32.totalorder %s114, %s116
    %p120 = scmp.eq.s32.totalorder %s17, 0
    %p121 = por %p119, %p120
    %p122 = scmp.ne.s32.totalorder %s114, %s116
    %p123 = scmp.eq.s32.totalorder %s22, 1
    %p124 = por %p122, %p123
    %p125 = scmp.ne.s32.totalorder %s116, %s117
    %p126 = scmp.eq.s32.totalorder %s22, 0
    %p127 = por %p125, %p126
    %p128 = scmp.ne.s32.totalorder %s116, %s117
    %p129 = scmp.eq.s32.totalorder %s23, 1
    %p130 = por %p128, %p129
    %p132 = scmp.ne.s32.totalorder %s117, %s131
    %p133 = scmp.eq.s32.totalorder %s23, 0
    %p134 = por %p132, %p133
    %s136 = sadd.s32 %s135, 1
    %p139 = scmp.eq.s32.totalorder %s17, 1
    %p140 = scmp.ne.s32.totalorder %s135, %s137
    %p141 = scmp.eq.s32.totalorder %s17, 0
    %p142 = por %p140, %p141
    %p143 = scmp.ne.s32.totalorder %s135, %s137
    %p144 = scmp.eq.s32.totalorder %s22, 1
    %p145 = por %p143, %p144
    %p146 = scmp.ne.s32.totalorder %s137, %s138
    %p147 = scmp.eq.s32.totalorder %s22, 0
    %p148 = por %p146, %p147
    %p149 = scmp.ne.s32.totalorder %s137, %s138
    %p150 = scmp.eq.s32.totalorder %s23, 1
    %p151 = por %p149, %p150
    %p153 = scmp.ne.s32.totalorder %s138, %s152
    %p154 = scmp.eq.s32.totalorder %s23, 0
    %p155 = por %p153, %p154
    %s157 = sadd.s32 %s156, 1
    %p160 = scmp.eq.s32.totalorder %s17, 1
    %p161 = scmp.ne.s32.totalorder %s156, %s158
    %p162 = scmp.eq.s32.totalorder %s17, 0
    %p163 = por %p161, %p162
    %p164 = scmp.ne.s32.totalorder %s156, %s158
    %p165 = scmp.eq.s32.totalorder %s22, 1
    %p166 = por %p164, %p165
    %p167 = scmp.ne.s32.totalorder %s158, %s159
    %p168 = scmp.eq.s32.totalorder %s22, 0
    %p169 = por %p167, %p168
    %p170 = scmp.ne.s32.totalorder %s158, %s159
    %p171 = scmp.eq.s32.totalorder %s23, 1
    %p172 = por %p170, %p171
    %p174 = scmp.ne.s32.totalorder %s159, %s173
    %p175 = scmp.eq.s32.totalorder %s23, 0
    %p176 = por %p174, %p175
    %s178 = sadd.s32 %s177, 1
    %p181 = scmp.eq.s32.totalorder %s17, 1
    %p182 = scmp.ne.s32.totalorder %s177, %s179
    %p183 = scmp.eq.s32.totalorder %s17, 0
    %p184 = por %p182, %p183
    %p185 = scmp.ne.s32.totalorder %s177, %s179
    %p186 = scmp.eq.s32.totalorder %s22, 1
    %p187 = por %p185, %p186
    %p188 = scmp.ne.s32.totalorder %s179, %s180
    %p189 = scmp.eq.s32.totalorder %s22, 0
    %p190 = por %p188, %p189
    %p191 = scmp.ne.s32.totalorder %s179, %s180
    %p192 = scmp.eq.s32.totalorder %s23, 1
    %p193 = por %p191, %p192
    %p195 = scmp.ne.s32.totalorder %s180, %s194
    %p196 = scmp.eq.s32.totalorder %s23, 0
    %p197 = por %p195, %p196
    %s199 = sadd.s32 %s198, 1
    %p202 = scmp.eq.s32.totalorder %s17, 1
    %p203 = scmp.ne.s32.totalorder %s198, %s200
    %p204 = scmp.eq.s32.totalorder %s17, 0
    %p205 = por %p203, %p204
    %p206 = scmp.ne.s32.totalorder %s198, %s200
    %p207 = scmp.eq.s32.totalorder %s22, 1
    %p208 = por %p206, %p207
    %p209 = scmp.ne.s32.totalorder %s200, %s201
    %p210 = scmp.eq.s32.totalorder %s22, 0
    %p211 = por %p209, %p210
    %p212 = scmp.ne.s32.totalorder %s200, %s201
    %p213 = scmp.eq.s32.totalorder %s23, 1
    %p214 = por %p212, %p213
    %p216 = scmp.ne.s32.totalorder %s201, %s215
    %p217 = scmp.eq.s32.totalorder %s23, 0
    %p218 = por %p216, %p217
    %s219 = ssub.s32 %s17, %s24
    %p220 = scmp.eq.s32.totalorder %s219, 0
    %s222 = sadd.s32 %s221, 1
    %s223 = scalar_select %p220, %s221, %s222
    %p226 = pneg %p220
    %p227 = scmp.eq.s32.totalorder %s17, 1
    %p228 = por %p226, %p227
    %p229 = scmp.ne.s32.totalorder %s221, %s224
    %p230 = scmp.eq.s32.totalorder %s17, 0
    %p231 = por %p229, %p230
    %p232 = scmp.ne.s32.totalorder %s221, %s224
    %p233 = scmp.eq.s32.totalorder %s22, 1
    %p234 = por %p232, %p233
    %p235 = scmp.ne.s32.totalorder %s224, %s225
    %p236 = scmp.eq.s32.totalorder %s22, 0
    %p237 = por %p235, %p236
    %p238 = scmp.ne.s32.totalorder %s224, %s225
    %p239 = scmp.eq.s32.totalorder %s23, 1
    %p240 = por %p238, %p239
    %p242 = scmp.ne.s32.totalorder %s225, %s241
    %p243 = scmp.eq.s32.totalorder %s23, 0
    %p244 = por %p242, %p243
    %s245 = ssub.s32 %s17, %s24
    %p246 = scmp.eq.s32.totalorder %s245, 0
    %s248 = sadd.s32 %s247, 1
    %s249 = scalar_select %p246, %s247, %s248
    %p252 = pneg %p246
    %p253 = scmp.eq.s32.totalorder %s17, 1
    %p254 = por %p252, %p253
    %p255 = scmp.ne.s32.totalorder %s247, %s250
    %p256 = scmp.eq.s32.totalorder %s17, 0
    %p257 = por %p255, %p256
    %p258 = scmp.ne.s32.totalorder %s247, %s250
    %p259 = scmp.eq.s32.totalorder %s22, 1
    %p260 = por %p258, %p259
    %p261 = scmp.ne.s32.totalorder %s250, %s251
    %p262 = scmp.eq.s32.totalorder %s22, 0
    %p263 = por %p261, %p262
    %p264 = scmp.ne.s32.totalorder %s250, %s251
    %p265 = scmp.eq.s32.totalorder %s23, 1
    %p266 = por %p264, %p265
    %p268 = scmp.ne.s32.totalorder %s251, %s267
    %p269 = scmp.eq.s32.totalorder %s23, 0
    %p270 = por %p268, %p269
    %p271 = scmp.le.s32.totalorder 1, %s17
    %p272 = scmp.lt.s32.totalorder %s17, 3
    %p273 = pnand %p271, %p272
    %p274 = pneg %p273
    // Predicated region
    $region9: #{cnn_dqn_forward.1} parent=5 // pred_check
      _
    $region10: #{cnn_dqn_forward.1} parent=5 // pred_check_branch
      %276 = sbr.rel (%p273) target = $region12
    $region11: #{cnn_dqn_forward.1} parent=5 // pred_region
      %s277 = ssub.s32 %s17, 1
      // Predicated region
      $region13: #{cnn_dqn_forward.1} parent=11 // pred_check
        %p278 = pneg %p64
      $region14: #{cnn_dqn_forward.1} parent=11 // pred_check_branch
        %280 = sbr.rel (%p278) target = $region16
      $region15: #{cnn_dqn_forward.1} parent=11 // pred_region
        _
      $region16: #{cnn_dqn_forward.1} parent=11 // pred_fallthru
        _
      // Predicated region
      $region17: #{cnn_dqn_forward.1} parent=11 // pred_check
        %p281 = pneg %p85
      $region18: #{cnn_dqn_forward.1} parent=11 // pred_check_branch
        %283 = sbr.rel (%p281) target = $region20
      $region19: #{cnn_dqn_forward.1} parent=11 // pred_region
        _
      $region20: #{cnn_dqn_forward.1} parent=11 // pred_fallthru
        _
      // Predicated region
      $region21: #{cnn_dqn_forward.1} parent=11 // pred_check
        %p284 = pneg %p106
      $region22: #{cnn_dqn_forward.1} parent=11 // pred_check_branch
        %286 = sbr.rel (%p284) target = $region24
      $region23: #{cnn_dqn_forward.1} parent=11 // pred_region
        _
      $region24: #{cnn_dqn_forward.1} parent=11 // pred_fallthru
        _
      // Predicated region
      $region25: #{cnn_dqn_forward.1} parent=11 // pred_check
        %p287 = pneg %p127
      $region26: #{cnn_dqn_forward.1} parent=11 // pred_check_branch
        %289 = sbr.rel (%p287) target = $region28
      $region27: #{cnn_dqn_forward.1} parent=11 // pred_region
        _
      $region28: #{cnn_dqn_forward.1} parent=11 // pred_fallthru
        _
      // Predicated region
      $region29: #{cnn_dqn_forward.1} parent=11 // pred_check
        %p290 = pneg %p148
      $region30: #{cnn_dqn_forward.1} parent=11 // pred_check_branch
        %292 = sbr.rel (%p290) target = $region32
      $region31: #{cnn_dqn_forward.1} parent=11 // pred_region
        _
      $region32: #{cnn_dqn_forward.1} parent=11 // pred_fallthru
        _
      // Predicated region
      $region33: #{cnn_dqn_forward.1} parent=11 // pred_check
        %p293 = pneg %p169
      $region34: #{cnn_dqn_forward.1} parent=11 // pred_check_branch
        %295 = sbr.rel (%p293) target = $region36
      $region35: #{cnn_dqn_forward.1} parent=11 // pred_region
        _
      $region36: #{cnn_dqn_forward.1} parent=11 // pred_fallthru
        _
      // Predicated region
      $region37: #{cnn_dqn_forward.1} parent=11 // pred_check
        %p296 = pneg %p190
      $region38: #{cnn_dqn_forward.1} parent=11 // pred_check_branch
        %298 = sbr.rel (%p296) target = $region40
      $region39: #{cnn_dqn_forward.1} parent=11 // pred_region
        _
      $region40: #{cnn_dqn_forward.1} parent=11 // pred_fallthru
        _
      // Predicated region
      $region41: #{cnn_dqn_forward.1} parent=11 // pred_check
        %p299 = pneg %p211
      $region42: #{cnn_dqn_forward.1} parent=11 // pred_check_branch
        %301 = sbr.rel (%p299) target = $region44
      $region43: #{cnn_dqn_forward.1} parent=11 // pred_region
        _
      $region44: #{cnn_dqn_forward.1} parent=11 // pred_fallthru
        _
    $region12: #{cnn_dqn_forward.1} parent=5 // pred_fallthru
      _
    %p302 = scmp.lt.s32.totalorder %s17, 2
    // Predicated region
    $region45: #{cnn_dqn_forward.1} parent=5 // pred_check
      %p303 = pneg %p302
    $region46: #{cnn_dqn_forward.1} parent=5 // pred_check_branch
      %305 = sbr.rel (%p303) target = $region48
    $region47: #{cnn_dqn_forward.1} parent=5 // pred_region
      // Predicated region
      $region49: #{cnn_dqn_forward.1} parent=47 // pred_check
        %p306 = pneg %p37
      $region50: #{cnn_dqn_forward.1} parent=47 // pred_check_branch
        %308 = sbr.rel (%p306) target = $region52
      $region51: #{cnn_dqn_forward.1} parent=47 // pred_region
        %p309 = scmp.lt.s32.totalorder %s17, 1
        %s310 = scalar_select %p309, %s17, 1
        %s311 = smul.addr %s310, 280
        %s312 = smul.addr %s311, 8
        %s313 = scalar_lea.vmem %s0, %s312
      $region52: #{cnn_dqn_forward.1} parent=47 // pred_fallthru
        _
    $region48: #{cnn_dqn_forward.1} parent=5 // pred_fallthru
      _
    %p314 = scmp.le.s32.totalorder 1, %s17
    %p315 = scmp.lt.s32.totalorder %s17, 3
    %p316 = pnand %p314, %p315
    %p317 = pneg %p316
    // Predicated region
    $region53: #{cnn_dqn_forward.1} parent=5 // pred_check
      _
    $region54: #{cnn_dqn_forward.1} parent=5 // pred_check_branch
      %319 = sbr.rel (%p316) target = $region56
    $region55: #{cnn_dqn_forward.1} parent=5 // pred_region
      %s320 = ssub.s32 %s17, 1
      %p321 = scmp.lt.s32.totalorder %s22, 1
      %s322 = scalar_select %p321, %s22, 1
      %s323 = smul.addr %s322, 280
      %s324 = smul.addr %s323, 8
      %s325 = scalar_lea.vmem %s0, %s324
      %p326 = pneg %p43
      %p327 = pneg %p40
      %p328 = pneg %p64
      %p329 = pneg %p61
      %p330 = pneg %p85
      %p331 = pneg %p82
      %p332 = pneg %p106
      %p333 = pneg %p103
      %p334 = pneg %p127
      %p335 = pneg %p124
      %p336 = pneg %p148
      %p337 = pneg %p145
      %p338 = pneg %p169
      %p339 = pneg %p166
      %p340 = pneg %p190
      %p341 = pneg %p187
      %p342 = pneg %p211
      %p343 = pneg %p208
      %p344 = pneg %p237
      %p345 = pneg %p234
      %p346 = scmp.lt.s32.totalorder %s22, 1
      %s347 = scalar_select %p346, %s22, 1
      %s348 = smul.addr %s347, 8
      %s349 = scalar_lea.vmem %s9, %s348
      %p350 = pneg %p263
      %p351 = pneg %p260
      %p352 = scmp.lt.s32.totalorder %s22, 1
      %s353 = scalar_select %p352, %s22, 1
      %s354 = smul.addr %s353, 4
      %s355 = smul.addr %s354, 8
      %s356 = scalar_lea.vmem %s10, %s355
      %p357 = scmp.lt.s32.totalorder %s22, 1
      %s358 = scalar_select %p357, %s22, 1
      %s359 = smul.addr %s358, 280
      %s360 = smul.addr %s359, 8
      %s361 = scalar_lea.vmem %s0, %s360
      %p362 = scmp.lt.s32.totalorder %s22, 1
      %s363 = scalar_select %p362, %s22, 1
      %s364 = smul.addr %s363, 8
      %s365 = scalar_lea.vmem %s9, %s364
      %p366 = scmp.lt.s32.totalorder %s22, 1
      %s367 = scalar_select %p366, %s22, 1
      %s368 = smul.addr %s367, 4
      %s369 = smul.addr %s368, 8
      %s370 = scalar_lea.vmem %s10, %s369
      %v371 = vld [vmem:[%s361] sm:$0xff]
      %v372 = vld [vmem:[%s361 + $0x8] sm:$0xff]
      %v373 = vld [vmem:[%s361 + $0x10] sm:$0xff]
      %v374 = vld [vmem:[%s361 + $0x18] sm:$0xff]
      %v375 = vld [vmem:[%s361 + $0x20] sm:$0xff]
      %v376 = vld [vmem:[%s361 + $0x28] sm:$0xff]
      %v377 = vld [vmem:[%s361 + $0x30] sm:$0xff]
      %v378 = vld [vmem:[%s361 + $0x38] sm:$0xff]
      %v379 = vld [vmem:[%s361 + $0x40] sm:$0xff]
      %v380 = vld [vmem:[%s361 + $0x48] sm:$0xff]
      %v381 = vld [vmem:[%s361 + $0x50] sm:$0xff]
      %v382 = vld [vmem:[%s361 + $0x58] sm:$0xff]
      %v383 = vld [vmem:[%s361 + $0x60] sm:$0xff]
      %v384 = vld [vmem:[%s361 + $0x68] sm:$0xff]
      %v385 = vld [vmem:[%s361 + $0x70] sm:$0xff]
      %v386 = vld [vmem:[%s361 + $0x78] sm:$0xff]
      %v387 = vld [vmem:[%s361 + $0x80] sm:$0xff]
      %v388 = vld [vmem:[%s361 + $0x88] sm:$0xff]
      %v389 = vld [vmem:[%s361 + $0x90] sm:$0xff]
      %v390 = vld [vmem:[%s361 + $0x98] sm:$0xff]
      %v391 = vld [vmem:[%s361 + $0xa0] sm:$0xff]
      %v392 = vld [vmem:[%s361 + $0xa8] sm:$0xff]
      %v393 = vld [vmem:[%s361 + $0xb0] sm:$0xff]
      %v394 = vld [vmem:[%s361 + $0xb8] sm:$0xff]
      %v395 = vld [vmem:[%s361 + $0xc0] sm:$0xff]
      %v396 = vld [vmem:[%s361 + $0xc8] sm:$0xff]
      %v397 = vld [vmem:[%s361 + $0xd0] sm:$0xff]
      %v398 = vld [vmem:[%s361 + $0xd8] sm:$0xff]
      %v399 = vld [vmem:[%s361 + $0xe0] sm:$0xff]
      %v400 = vld [vmem:[%s361 + $0xe8] sm:$0xff]
      %v401 = vld [vmem:[%s361 + $0xf0] sm:$0xff]
      %v402 = vld [vmem:[%s361 + $0xf8] sm:$0xff]
      %v403 = vld [vmem:[%s361 + $0x100] sm:$0xff]
      %v404 = vld [vmem:[%s361 + $0x108] sm:$0xff]
      %v405 = vld [vmem:[%s361 + $0x110] sm:$0xff]
      %v406 = vld [vmem:[%s361 + $0x118] sm:$0xff]
      %v407 = vld [vmem:[%s361 + $0x120] sm:$0xff]
      %v408 = vld [vmem:[%s361 + $0x128] sm:$0xff]
      %v409 = vld [vmem:[%s361 + $0x130] sm:$0xff]
      %v410 = vld [vmem:[%s361 + $0x138] sm:$0xff]
      %v411 = vld [vmem:[%s361 + $0x140] sm:$0xff]
      %v412 = vld [vmem:[%s361 + $0x148] sm:$0xff]
      %v413 = vld [vmem:[%s361 + $0x150] sm:$0xff]
      %v414 = vld [vmem:[%s361 + $0x158] sm:$0xff]
      %v415 = vld [vmem:[%s361 + $0x160] sm:$0xff]
      %v416 = vld [vmem:[%s361 + $0x168] sm:$0xff]
      %v417 = vld [vmem:[%s361 + $0x170] sm:$0xff]
      %v418 = vld [vmem:[%s361 + $0x178] sm:$0xff]
      %v419 = vld [vmem:[%s361 + $0x180] sm:$0xff]
      %v420 = vld [vmem:[%s361 + $0x188] sm:$0xff]
      %v421 = vld [vmem:[%s361 + $0x190] sm:$0xff]
      %v422 = vld [vmem:[%s361 + $0x198] sm:$0xff]
      %v423 = vld [vmem:[%s361 + $0x1a0] sm:$0xff]
      %v424 = vld [vmem:[%s361 + $0x1a8] sm:$0xff]
      %v425 = vld [vmem:[%s361 + $0x1b0] sm:$0xff]
      %v426 = vld [vmem:[%s361 + $0x1b8] sm:$0xff]
      %v427 = vld [vmem:[%s361 + $0x1c0] sm:$0xff]
      %v428 = vld [vmem:[%s361 + $0x1c8] sm:$0xff]
      %v429 = vld [vmem:[%s361 + $0x1d0] sm:$0xff]
      %v430 = vld [vmem:[%s361 + $0x1d8] sm:$0xff]
      %v431 = vld [vmem:[%s361 + $0x1e0] sm:$0xff]
      %v432 = vld [vmem:[%s361 + $0x1e8] sm:$0xff]
      %v433 = vld [vmem:[%s361 + $0x1f0] sm:$0xff]
      %v434 = vld [vmem:[%s361 + $0x1f8] sm:$0xff]
      %v435 = vld [vmem:[%s361 + $0x200] sm:$0xff]
      %v436 = vld [vmem:[%s361 + $0x208] sm:$0xff]
      %v437 = vld [vmem:[%s361 + $0x210] sm:$0xff]
      %v438 = vld [vmem:[%s361 + $0x218] sm:$0xff]
      %v439 = vld [vmem:[%s361 + $0x220] sm:$0xff]
      %v440 = vld [vmem:[%s361 + $0x228] sm:$0xff]
      %v441 = vld [vmem:[%s361 + $0x230] sm:$0xff]
      %v442 = vld [vmem:[%s361 + $0x238] sm:$0xff]
      %v443 = vld [vmem:[%s361 + $0x240] sm:$0xff]
      %v444 = vld [vmem:[%s361 + $0x248] sm:$0xff]
      %v445 = vld [vmem:[%s361 + $0x250] sm:$0xff]
      %v446 = vld [vmem:[%s361 + $0x258] sm:$0xff]
      %v447 = vld [vmem:[%s361 + $0x260] sm:$0xff]
      %v448 = vld [vmem:[%s361 + $0x268] sm:$0xff]
      %v449 = vld [vmem:[%s361 + $0x270] sm:$0xff]
      %v450 = vld [vmem:[%s361 + $0x278] sm:$0xff]
      %v451 = vld [vmem:[%s361 + $0x280] sm:$0xff]
      %v452 = vld [vmem:[%s361 + $0x288] sm:$0xff]
      %v453 = vld [vmem:[%s361 + $0x290] sm:$0xff]
      %v454 = vld [vmem:[%s361 + $0x298] sm:$0xff]
      %v455 = vld [vmem:[%s361 + $0x2a0] sm:$0xff]
      %v456 = vld [vmem:[%s361 + $0x2a8] sm:$0xff]
      %v457 = vld [vmem:[%s361 + $0x2b0] sm:$0xff]
      %v458 = vld [vmem:[%s361 + $0x2b8] sm:$0xff]
      %v459 = vld [vmem:[%s361 + $0x2c0] sm:$0xff]
      %v460 = vld [vmem:[%s361 + $0x2c8] sm:$0xff]
      %v461 = vld [vmem:[%s361 + $0x2d0] sm:$0xff]
      %v462 = vld [vmem:[%s361 + $0x2d8] sm:$0xff]
      %v463 = vld [vmem:[%s361 + $0x2e0] sm:$0xff]
      %v464 = vld [vmem:[%s361 + $0x2e8] sm:$0xff]
      %v465 = vld [vmem:[%s361 + $0x2f0] sm:$0xff]
      %v466 = vld [vmem:[%s361 + $0x2f8] sm:$0xff]
      %v467 = vld [vmem:[%s361 + $0x300] sm:$0xff]
      %v468 = vld [vmem:[%s361 + $0x308] sm:$0xff]
      %v469 = vld [vmem:[%s361 + $0x310] sm:$0xff]
      %v470 = vld [vmem:[%s361 + $0x318] sm:$0xff]
      %v471 = vld [vmem:[%s361 + $0x320] sm:$0xff]
      %v472 = vld [vmem:[%s361 + $0x328] sm:$0xff]
      %v473 = vld [vmem:[%s361 + $0x330] sm:$0xff]
      %v474 = vld [vmem:[%s361 + $0x338] sm:$0xff]
      %v475 = vld [vmem:[%s361 + $0x340] sm:$0xff]
      %v476 = vld [vmem:[%s361 + $0x348] sm:$0xff]
      %v477 = vld [vmem:[%s361 + $0x350] sm:$0xff]
      %v478 = vld [vmem:[%s361 + $0x358] sm:$0xff]
      %v479 = vld [vmem:[%s361 + $0x360] sm:$0xff]
      %v480 = vld [vmem:[%s361 + $0x368] sm:$0xff]
      %v481 = vld [vmem:[%s361 + $0x370] sm:$0xff]
      %v482 = vld [vmem:[%s361 + $0x378] sm:$0xff]
      %v483 = vld [vmem:[%s361 + $0x380] sm:$0xff]
      %v484 = vld [vmem:[%s361 + $0x388] sm:$0xff]
      %v485 = vld [vmem:[%s361 + $0x390] sm:$0xff]
      %v486 = vld [vmem:[%s361 + $0x398] sm:$0xff]
      %v487 = vld [vmem:[%s361 + $0x3a0] sm:$0xff]
      %v488 = vld [vmem:[%s361 + $0x3a8] sm:$0xff]
      %v489 = vld [vmem:[%s361 + $0x3b0] sm:$0xff]
      %v490 = vld [vmem:[%s361 + $0x3b8] sm:$0xff]
      %v491 = vld [vmem:[%s361 + $0x3c0] sm:$0xff]
      %v492 = vld [vmem:[%s361 + $0x3c8] sm:$0xff]
      %v493 = vld [vmem:[%s361 + $0x3d0] sm:$0xff]
      %v494 = vld [vmem:[%s361 + $0x3d8] sm:$0xff]
      %v495 = vld [vmem:[%s361 + $0x3e0] sm:$0xff]
      %v496 = vld [vmem:[%s361 + $0x3e8] sm:$0xff]
      %v497 = vld [vmem:[%s361 + $0x3f0] sm:$0xff]
      %v498 = vld [vmem:[%s361 + $0x3f8] sm:$0xff]
      %v499 = vld [vmem:[%s361 + $0x400] sm:$0xff]
      %v500 = vld [vmem:[%s361 + $0x408] sm:$0xff]
      %v501 = vld [vmem:[%s361 + $0x410] sm:$0xff]
      %v502 = vld [vmem:[%s361 + $0x418] sm:$0xff]
      %v503 = vld [vmem:[%s361 + $0x420] sm:$0xff]
      %v504 = vld [vmem:[%s361 + $0x428] sm:$0xff]
      %v505 = vld [vmem:[%s361 + $0x430] sm:$0xff]
      %v506 = vld [vmem:[%s361 + $0x438] sm:$0xff]
      %v507 = vld [vmem:[%s361 + $0x440] sm:$0xff]
      %v508 = vld [vmem:[%s361 + $0x448] sm:$0xff]
      %v509 = vld [vmem:[%s361 + $0x450] sm:$0xff]
      %v510 = vld [vmem:[%s361 + $0x458] sm:$0xff]
      %v511 = vld [vmem:[%s361 + $0x460] sm:$0xff]
      %v512 = vld [vmem:[%s361 + $0x468] sm:$0xff]
      %v513 = vld [vmem:[%s361 + $0x470] sm:$0xff]
      %v514 = vld [vmem:[%s361 + $0x478] sm:$0xff]
      %v515 = vld [vmem:[%s361 + $0x480] sm:$0xff]
      %v516 = vld [vmem:[%s361 + $0x488] sm:$0xff]
      %v517 = vld [vmem:[%s361 + $0x490] sm:$0xff]
      %v518 = vld [vmem:[%s361 + $0x498] sm:$0xff]
      %v519 = vld [vmem:[%s361 + $0x4a0] sm:$0xff]
      %v520 = vld [vmem:[%s361 + $0x4a8] sm:$0xff]
      %v521 = vld [vmem:[%s361 + $0x4b0] sm:$0xff]
      %v522 = vld [vmem:[%s361 + $0x4b8] sm:$0xff]
      %v523 = vld [vmem:[%s361 + $0x4c0] sm:$0xff]
      %v524 = vld [vmem:[%s361 + $0x4c8] sm:$0xff]
      %v525 = vld [vmem:[%s361 + $0x4d0] sm:$0xff]
      %v526 = vld [vmem:[%s361 + $0x4d8] sm:$0xff]
      %v527 = vld [vmem:[%s361 + $0x4e0] sm:$0xff]
      %v528 = vld [vmem:[%s361 + $0x4e8] sm:$0xff]
      %v529 = vld [vmem:[%s361 + $0x4f0] sm:$0xff]
      %v530 = vld [vmem:[%s361 + $0x4f8] sm:$0xff]
      %v531 = vld [vmem:[%s361 + $0x500] sm:$0xff]
      %v532 = vld [vmem:[%s361 + $0x508] sm:$0xff]
      %v533 = vld [vmem:[%s361 + $0x510] sm:$0xff]
      %v534 = vld [vmem:[%s361 + $0x518] sm:$0xff]
      %v535 = vld [vmem:[%s361 + $0x520] sm:$0xff]
      %v536 = vld [vmem:[%s361 + $0x528] sm:$0xff]
      %v537 = vld [vmem:[%s361 + $0x530] sm:$0xff]
      %v538 = vld [vmem:[%s361 + $0x538] sm:$0xff]
      %v539 = vld [vmem:[%s361 + $0x540] sm:$0xff]
      %v540 = vld [vmem:[%s361 + $0x548] sm:$0xff]
      %v541 = vld [vmem:[%s361 + $0x550] sm:$0xff]
      %v542 = vld [vmem:[%s361 + $0x558] sm:$0xff]
      %v543 = vld [vmem:[%s361 + $0x560] sm:$0xff]
      %v544 = vld [vmem:[%s361 + $0x568] sm:$0xff]
      %v545 = vld [vmem:[%s361 + $0x570] sm:$0xff]
      %v546 = vld [vmem:[%s361 + $0x578] sm:$0xff]
      %v547 = vld [vmem:[%s361 + $0x580] sm:$0xff]
      %v548 = vld [vmem:[%s361 + $0x588] sm:$0xff]
      %v549 = vld [vmem:[%s361 + $0x590] sm:$0xff]
      %v550 = vld [vmem:[%s361 + $0x598] sm:$0xff]
      %v551 = vld [vmem:[%s361 + $0x5a0] sm:$0xff]
      %v552 = vld [vmem:[%s361 + $0x5a8] sm:$0xff]
      %v553 = vld [vmem:[%s361 + $0x5b0] sm:$0xff]
      %v554 = vld [vmem:[%s361 + $0x5b8] sm:$0xff]
      %v555 = vld [vmem:[%s361 + $0x5c0] sm:$0xff]
      %v556 = vld [vmem:[%s361 + $0x5c8] sm:$0xff]
      %v557 = vld [vmem:[%s361 + $0x5d0] sm:$0xff]
      %v558 = vld [vmem:[%s361 + $0x5d8] sm:$0xff]
      %v559 = vld [vmem:[%s361 + $0x5e0] sm:$0xff]
      %v560 = vld [vmem:[%s361 + $0x5e8] sm:$0xff]
      %v561 = vld [vmem:[%s361 + $0x5f0] sm:$0xff]
      %v562 = vld [vmem:[%s361 + $0x5f8] sm:$0xff]
      %v563 = vld [vmem:[%s361 + $0x600] sm:$0xff]
      %v564 = vld [vmem:[%s361 + $0x608] sm:$0xff]
      %v565 = vld [vmem:[%s361 + $0x610] sm:$0xff]
      %v566 = vld [vmem:[%s361 + $0x618] sm:$0xff]
      %v567 = vld [vmem:[%s361 + $0x620] sm:$0xff]
      %v568 = vld [vmem:[%s361 + $0x628] sm:$0xff]
      %v569 = vld [vmem:[%s361 + $0x630] sm:$0xff]
      %v570 = vld [vmem:[%s361 + $0x638] sm:$0xff]
      %v571 = vld [vmem:[%s361 + $0x640] sm:$0xff]
      %v572 = vld [vmem:[%s361 + $0x648] sm:$0xff]
      %v573 = vld [vmem:[%s361 + $0x650] sm:$0xff]
      %v574 = vld [vmem:[%s361 + $0x658] sm:$0xff]
      %v575 = vld [vmem:[%s361 + $0x660] sm:$0xff]
      %v576 = vld [vmem:[%s361 + $0x668] sm:$0xff]
      %v577 = vld [vmem:[%s361 + $0x670] sm:$0xff]
      %v578 = vld [vmem:[%s361 + $0x678] sm:$0xff]
      %v579 = vld [vmem:[%s361 + $0x680] sm:$0xff]
      %v580 = vld [vmem:[%s361 + $0x688] sm:$0xff]
      %v581 = vld [vmem:[%s361 + $0x690] sm:$0xff]
      %v582 = vld [vmem:[%s361 + $0x698] sm:$0xff]
      %v583 = vld [vmem:[%s361 + $0x6a0] sm:$0xff]
      %v584 = vld [vmem:[%s361 + $0x6a8] sm:$0xff]
      %v585 = vld [vmem:[%s361 + $0x6b0] sm:$0xff]
      %v586 = vld [vmem:[%s361 + $0x6b8] sm:$0xff]
      %v587 = vld [vmem:[%s361 + $0x6c0] sm:$0xff]
      %v588 = vld [vmem:[%s361 + $0x6c8] sm:$0xff]
      %v589 = vld [vmem:[%s361 + $0x6d0] sm:$0xff]
      %v590 = vld [vmem:[%s361 + $0x6d8] sm:$0xff]
      %v591 = vld [vmem:[%s361 + $0x6e0] sm:$0xff]
      %v592 = vld [vmem:[%s361 + $0x6e8] sm:$0xff]
      %v593 = vld [vmem:[%s361 + $0x6f0] sm:$0xff]
      %v594 = vld [vmem:[%s361 + $0x6f8] sm:$0xff]
      %v595 = vld [vmem:[%s361 + $0x700] sm:$0xff]
      %v596 = vld [vmem:[%s361 + $0x708] sm:$0xff]
      %v597 = vld [vmem:[%s361 + $0x710] sm:$0xff]
      %v598 = vld [vmem:[%s361 + $0x718] sm:$0xff]
      %v599 = vld [vmem:[%s361 + $0x720] sm:$0xff]
      %v600 = vld [vmem:[%s361 + $0x728] sm:$0xff]
      %v601 = vld [vmem:[%s361 + $0x730] sm:$0xff]
      %v602 = vld [vmem:[%s361 + $0x738] sm:$0xff]
      %v603 = vld [vmem:[%s361 + $0x740] sm:$0xff]
      %v604 = vld [vmem:[%s361 + $0x748] sm:$0xff]
      %v605 = vld [vmem:[%s361 + $0x750] sm:$0xff]
      %v606 = vld [vmem:[%s361 + $0x758] sm:$0xff]
      %v607 = vld [vmem:[%s361 + $0x760] sm:$0xff]
      %v608 = vld [vmem:[%s361 + $0x768] sm:$0xff]
      %v609 = vld [vmem:[%s361 + $0x770] sm:$0xff]
      %v610 = vld [vmem:[%s361 + $0x778] sm:$0xff]
      %v611 = vld [vmem:[%s361 + $0x780] sm:$0xff]
      %v612 = vld [vmem:[%s361 + $0x788] sm:$0xff]
      %v613 = vld [vmem:[%s361 + $0x790] sm:$0xff]
      %v614 = vld [vmem:[%s361 + $0x798] sm:$0xff]
      %v615 = vld [vmem:[%s361 + $0x7a0] sm:$0xff]
      %v616 = vld [vmem:[%s361 + $0x7a8] sm:$0xff]
      %v617 = vld [vmem:[%s361 + $0x7b0] sm:$0xff]
      %v618 = vld [vmem:[%s361 + $0x7b8] sm:$0xff]
      %v619 = vld [vmem:[%s361 + $0x7c0] sm:$0xff]
      %v620 = vld [vmem:[%s361 + $0x7c8] sm:$0xff]
      %v621 = vld [vmem:[%s361 + $0x7d0] sm:$0xff]
      %v622 = vld [vmem:[%s361 + $0x7d8] sm:$0xff]
      %v623 = vld [vmem:[%s361 + $0x7e0] sm:$0xff]
      %v624 = vld [vmem:[%s361 + $0x7e8] sm:$0xff]
      %v625 = vld [vmem:[%s361 + $0x7f0] sm:$0xff]
      %v626 = vld [vmem:[%s361 + $0x7f8] sm:$0xff]
      %v627 = vld [vmem:[%s361 + $0x800] sm:$0xff]
      %v628 = vld [vmem:[%s361 + $0x808] sm:$0xff]
      %v629 = vld [vmem:[%s361 + $0x810] sm:$0xff]
      %v630 = vld [vmem:[%s361 + $0x818] sm:$0xff]
      %v631 = vld [vmem:[%s361 + $0x820] sm:$0xff]
      %v632 = vld [vmem:[%s361 + $0x828] sm:$0xff]
      %v633 = vld [vmem:[%s361 + $0x830] sm:$0xff]
      %v634 = vld [vmem:[%s361 + $0x838] sm:$0xff]
      %v635 = vld [vmem:[%s361 + $0x840] sm:$0xff]
      %v636 = vld [vmem:[%s361 + $0x848] sm:$0xff]
      %v637 = vld [vmem:[%s361 + $0x850] sm:$0xff]
      %v638 = vld [vmem:[%s361 + $0x858] sm:$0xff]
      %v639 = vld [vmem:[%s361 + $0x860] sm:$0xff]
      %v640 = vld [vmem:[%s361 + $0x868] sm:$0xff]
      %v641 = vld [vmem:[%s361 + $0x870] sm:$0xff]
      %v642 = vld [vmem:[%s361 + $0x878] sm:$0xff]
      %v643 = vld [vmem:[%s361 + $0x880] sm:$0xff]
      %v644 = vld [vmem:[%s361 + $0x888] sm:$0xff]
      %v645 = vld [vmem:[%s361 + $0x890] sm:$0xff]
      %v646 = vld [vmem:[%s361 + $0x898] sm:$0xff]
      %v647 = vld [vmem:[%s361 + $0x8a0] sm:$0xff]
      %v648 = vld [vmem:[%s361 + $0x8a8] sm:$0xff]
      %v649 = vld [vmem:[%s361 + $0x8b0] sm:$0xff]
      %v650 = vld [vmem:[%s361 + $0x8b8] sm:$0xff]
      %v651 = vld [vmem:[%s1] sm:$0xff]
      %v652 = vld [vmem:[%s1 + $0x8] sm:$0xff]
      %v653 = vld [vmem:[%s1 + $0x10] sm:$0xff]
      %v654 = vld [vmem:[%s1 + $0x18] sm:$0xff]
      %v655 = vld [vmem:[%s1 + $0x20] sm:$0xff]
      %v656 = vld [vmem:[%s1 + $0x28] sm:$0xff]
      %v657 = vld [vmem:[%s1 + $0x30] sm:$0xff]
      %v658 = vld [vmem:[%s1 + $0x38] sm:$0xff]
      %v659 = vld [vmem:[%s1 + $0x40] sm:$0xff]
      %v660 = vld [vmem:[%s1 + $0x48] sm:$0xff]
      %v661 = vld [vmem:[%s1 + $0x50] sm:$0xff]
      %v662 = vld [vmem:[%s1 + $0x58] sm:$0xff]
      %v663 = vld [vmem:[%s1 + $0x60] sm:$0xff]
      %v664 = vld [vmem:[%s1 + $0x68] sm:$0xff]
      %v665 = vld [vmem:[%s1 + $0x70] sm:$0xff]
      %v666 = vld [vmem:[%s1 + $0x78] sm:$0xff]
      %v667 = vld [vmem:[%s1 + $0x80] sm:$0xff]
      %v668 = vld [vmem:[%s1 + $0x88] sm:$0xff]
      %v669 = vld [vmem:[%s1 + $0x90] sm:$0xff]
      %v670 = vld [vmem:[%s1 + $0x98] sm:$0xff]
      %v671 = vld [vmem:[%s1 + $0xa0] sm:$0xff]
      %v672 = vld [vmem:[%s1 + $0xa8] sm:$0xff]
      %v673 = vld [vmem:[%s1 + $0xb0] sm:$0xff]
      %v674 = vld [vmem:[%s1 + $0xb8] sm:$0xff]
      %v675 = vld [vmem:[%s1 + $0xc0] sm:$0xff]
      %v676 = vld [vmem:[%s1 + $0xc8] sm:$0xff]
      %v677 = vld [vmem:[%s1 + $0xd0] sm:$0xff]
      %v678 = vld [vmem:[%s1 + $0xd8] sm:$0xff]
      %v679 = vld [vmem:[%s1 + $0xe0] sm:$0xff]
      %v680 = vld [vmem:[%s1 + $0xe8] sm:$0xff]
      %v681 = vld [vmem:[%s1 + $0xf0] sm:$0xff]
      %v682 = vld [vmem:[%s1 + $0xf8] sm:$0xff]
      %v683 = vld [vmem:[%s1 + $0x100] sm:$0xff]
      %v684 = vld [vmem:[%s1 + $0x108] sm:$0xff]
      %v685 = vld [vmem:[%s1 + $0x110] sm:$0xff]
      %v686 = vld [vmem:[%s1 + $0x118] sm:$0xff]
      %v687 = vld [vmem:[%s1 + $0x120] sm:$0xff]
      %v688 = vld [vmem:[%s1 + $0x128] sm:$0xff]
      %v689 = vld [vmem:[%s1 + $0x130] sm:$0xff]
      %v690 = vld [vmem:[%s1 + $0x138] sm:$0xff]
      %v691 = vld [vmem:[%s1 + $0x140] sm:$0xff]
      %v692 = vld [vmem:[%s1 + $0x148] sm:$0xff]
      %v693 = vld [vmem:[%s1 + $0x150] sm:$0xff]
      %v694 = vld [vmem:[%s1 + $0x158] sm:$0xff]
      %v695 = vld [vmem:[%s1 + $0x160] sm:$0xff]
      %v696 = vld [vmem:[%s1 + $0x168] sm:$0xff]
      %v697 = vld [vmem:[%s1 + $0x170] sm:$0xff]
      %v698 = vld [vmem:[%s1 + $0x178] sm:$0xff]
      %v699 = vld [vmem:[%s1 + $0x180] sm:$0xff]
      %v700 = vld [vmem:[%s1 + $0x188] sm:$0xff]
      %v701 = vld [vmem:[%s1 + $0x190] sm:$0xff]
      %v702 = vld [vmem:[%s1 + $0x198] sm:$0xff]
      %v703 = vld [vmem:[%s1 + $0x1a0] sm:$0xff]
      %v704 = vld [vmem:[%s1 + $0x1a8] sm:$0xff]
      %v705 = vld [vmem:[%s1 + $0x1b0] sm:$0xff]
      %v706 = vld [vmem:[%s1 + $0x1b8] sm:$0xff]
      %v707 = vld [vmem:[%s1 + $0x1c0] sm:$0xff]
      %v708 = vld [vmem:[%s1 + $0x1c8] sm:$0xff]
      %v709 = vld [vmem:[%s1 + $0x1d0] sm:$0xff]
      %v710 = vld [vmem:[%s1 + $0x1d8] sm:$0xff]
      %v711 = vld [vmem:[%s1 + $0x1e0] sm:$0xff]
      %v712 = vld [vmem:[%s1 + $0x1e8] sm:$0xff]
      %v713 = vld [vmem:[%s1 + $0x1f0] sm:$0xff]
      %v714 = vld [vmem:[%s1 + $0x1f8] sm:$0xff]
      %v715 = vld [vmem:[%s2] sm:$0x1]
      %v717 = vlaneseq
      %v718 = vshrl.u32 %v717, 7
      %v719 = vsub.s32 0, %v718
      %v720 = vrot.slane %v715, %v719
      %722 = vmatprep.subr.mxu0 0.0
      %723 = vmatpush1.msra.mxu0 %v651
      %724 = vmatprep.subr.mxu0 0.0
      %725 = vmatpush1.msra.mxu0 %v652
      %726 = vmatprep.subr.mxu0 0.0
      %727 = vmatpush1.msra.mxu0 %v653
      %728 = vmatprep.subr.mxu0 0.0
      %729 = vmatpush1.msra.mxu0 %v654
      %730 = vmatprep.subr.mxu0 0.0
      %731 = vmatpush1.msra.mxu0 %v655
      %732 = vmatprep.subr.mxu0 0.0
      %733 = vmatpush1.msra.mxu0 %v656
      %734 = vmatprep.subr.mxu0 0.0
      %735 = vmatpush1.msra.mxu0 %v657
      %736 = vmatprep.subr.mxu0 0.0
      %737 = vmatpush1.msra.mxu0 %v658
      %738 = vmatprep.subr.mxu0 0.0
      %739 = vmatpush1.msra.mxu0 %v659
      %740 = vmatprep.subr.mxu0 0.0
      %741 = vmatpush1.msra.mxu0 %v660
      %742 = vmatprep.subr.mxu0 0.0
      %743 = vmatpush1.msra.mxu0 %v661
      %744 = vmatprep.subr.mxu0 0.0
      %745 = vmatpush1.msra.mxu0 %v662
      %746 = vmatprep.subr.mxu0 0.0
      %747 = vmatpush1.msra.mxu0 %v663
      %748 = vmatprep.subr.mxu0 0.0
      %749 = vmatpush1.msra.mxu0 %v664
      %750 = vmatprep.subr.mxu0 0.0
      %751 = vmatpush1.msra.mxu0 %v665
      %752 = vmatprep.subr.mxu0 0.0
      %753 = vmatpush1.msra.mxu0 %v666
      %754 = vmatprep.subr.mxu0 0.0
      %755 = vmatpush1.msra.mxu0 %v667
      %756 = vmatprep.subr.mxu0 0.0
      %757 = vmatpush1.msra.mxu0 %v668
      %758 = vmatprep.subr.mxu0 0.0
      %759 = vmatpush1.msra.mxu0 %v669
      %760 = vmatprep.subr.mxu0 0.0
      %761 = vmatpush1.msra.mxu0 %v670
      %762 = vmatprep.subr.mxu0 0.0
      %763 = vmatpush1.msra.mxu0 %v671
      %764 = vmatprep.subr.mxu0 0.0
      %765 = vmatpush1.msra.mxu0 %v672
      %766 = vmatprep.subr.mxu0 0.0
      %767 = vmatpush1.msra.mxu0 %v673
      %768 = vmatprep.subr.mxu0 0.0
      %769 = vmatpush1.msra.mxu0 %v674
      %770 = vmatprep.subr.mxu0 0.0
      %771 = vmatpush1.msra.mxu0 %v675
      %772 = vmatprep.subr.mxu0 0.0
      %773 = vmatpush1.msra.mxu0 %v676
      %774 = vmatprep.subr.mxu0 0.0
      %775 = vmatpush1.msra.mxu0 %v677
      %776 = vmatprep.subr.mxu0 0.0
      %777 = vmatpush1.msra.mxu0 %v678
      %778 = vmatprep.subr.mxu0 0.0
      %779 = vmatpush1.msra.mxu0 %v679
      %780 = vmatprep.subr.mxu0 0.0
      %781 = vmatpush1.msra.mxu0 %v680
      %782 = vmatprep.subr.mxu0 0.0
      %783 = vmatpush1.msra.mxu0 %v681
      %784 = vmatprep.subr.mxu0 0.0
      %785 = vmatpush1.msra.mxu0 %v682
      %786 = vmatprep.mubr.f32.mxu0 %v372
      %787 = vmatmul.mubr.f32.gmra.mrb[0].mxu0 %v371
      %v788 = vpop.f32.mrb[0].mxu0
      %v789 = vadd.f32 %v720, %v788
      %v790 = vpop.f32.mrb[0].mxu0
      %791 = vmatprep.mubr.f32.mxu0 %v376
      %792 = vmatmul.mubr.f32.gmra.mrb[0].mxu0 %v375
      %v793 = vpop.f32.mrb[0].mxu0
      %v794 = vadd.f32 %v720, %v793
      %v795 = vpop.f32.mrb[0].mxu0
      %796 = vmatprep.mubr.f32.mxu0 %v380
      %797 = vmatmul.mubr.f32.gmra.mrb[0].mxu0 %v379
      %v798 = vpop.f32.mrb[0].mxu0
      %v799 = vadd.f32 %v720, %v798
      %v800 = vpop.f32.mrb[0].mxu0
      %801 = vmatprep.mubr.f32.mxu0 %v384
      %802 = vmatmul.mubr.f32.gmra.mrb[0].mxu0 %v383
      %v803 = vpop.f32.mrb[0].mxu0
      %v804 = vadd.f32 %v720, %v803
      %v805 = vpop.f32.mrb[0].mxu0
      %806 = vmatprep.mubr.f32.mxu0 %v388
      %807 = vmatmul.mubr.f32.gmra.mrb[0].mxu0 %v387
      %v808 = vpop.f32.mrb[0].mxu0
      %v809 = vadd.f32 %v720, %v808
      %v810 = vpop.f32.mrb[0].mxu0
      %811 = vmatprep.mubr.f32.mxu0 %v392
      %812 = vmatmul.mubr.f32.gmra.mrb[0].mxu0 %v391
      %v813 = vpop.f32.mrb[0].mxu0
      %v814 = vadd.f32 %v720, %v813
      %v815 = vpop.f32.mrb[0].mxu0
      %816 = vmatprep.mubr.f32.mxu0 %v396
      %817 = vmatmul.mubr.f32.gmra.mrb[0].mxu0 %v395
      %v818 = vpop.f32.mrb[0].mxu0
      %v819 = vadd.f32 %v720, %v818
      %v820 = vpop.f32.mrb[0].mxu0
      %821 = vmatprep.mubr.f32.mxu0 %v400
      %822 = vmatmul.mubr.f32.gmra.mrb[0].mxu0 %v399
      %v823 = vpop.f32.mrb[0].mxu0
      %v824 = vadd.f32 %v720, %v823
      %v825 = vpop.f32.mrb[0].mxu0
      %826 = vmatprep.mubr.f32.mxu0 %v404
      %827 = vmatmul.mubr.f32.gmra.mrb[0].mxu0 %v403
      %v828 = vpop.f32.mrb[0].mxu0
      %v829 = vadd.f32 %v720, %v828
      %v830 = vpop.f32.mrb[0].mxu0
      %831 = vmatprep.mubr.f32.mxu0 %v408
      %832 = vmatmul.mubr.f32.gmra.mrb[0].mxu0 %v407
      %v833 = vpop.f32.mrb[0].mxu0
      %v834 = vadd.f32 %v720, %v833
      %v835 = vpop.f32.mrb[0].mxu0
      %836 = vmatprep.mubr.f32.mxu0 %v412
      %837 = vmatmul.mubr.f32.gmra.mrb[0].mxu0 %v411
      %v838 = vpop.f32.mrb[0].mxu0
      %v839 = vadd.f32 %v720, %v838
      %v840 = vpop.f32.mrb[0].mxu0
      %841 = vmatprep.mubr.f32.mxu0 %v416
      %842 = vmatmul.mubr.f32.gmra.mrb[0].mxu0 %v415
      %v843 = vpop.f32.mrb[0].mxu0
      %v844 = vadd.f32 %v720, %v843
      %v845 = vpop.f32.mrb[0].mxu0
      %846 = vmatprep.mubr.f32.mxu0 %v420
      %847 = vmatmul.mubr.f32.gmra.mrb[0].mxu0 %v419
      %v848 = vpop.f32.mrb[0].mxu0
      %v849 = vadd.f32 %v720, %v848
      %v850 = vpop.f32.mrb[0].mxu0
      %851 = vmatprep.mubr.f32.mxu0 %v424
      %852 = vmatmul.mubr.f32.gmra.mrb[0].mxu0 %v423
      %v853 = vpop.f32.mrb[0].mxu0
      %v854 = vadd.f32 %v720, %v853
      %v855 = vpop.f32.mrb[0].mxu0
      %856 = vmatprep.mubr.f32.mxu0 %v428
      %857 = vmatmul.mubr.f32.gmra.mrb[0].mxu0 %v427
      %v858 = vpop.f32.mrb[0].mxu0
      %v859 = vadd.f32 %v720, %v858
      %v860 = vpop.f32.mrb[0].mxu0
      %861 = vmatprep.mubr.f32.mxu0 %v432
      %862 = vmatmul.mubr.f32.gmra.mrb[0].mxu0 %v431
      %v863 = vpop.f32.mrb[0].mxu0
      %v864 = vadd.f32 %v720, %v863
      %v865 = vpop.f32.mrb[0].mxu0
      %866 = vmatprep.mubr.f32.mxu0 %v436
      %867 = vmatmul.mubr.f32.gmra.mrb[0].mxu0 %v435
      %v868 = vpop.f32.mrb[0].mxu0
      %v869 = vadd.f32 %v720, %v868
      %v870 = vpop.f32.mrb[0].mxu0
      %871 = vmatprep.mubr.f32.mxu0 %v440
      %872 = vmatmul.mubr.f32.gmra.mrb[0].mxu0 %v439
      %v873 = vpop.f32.mrb[0].mxu0
      %v874 = vadd.f32 %v720, %v873
      %v875 = vpop.f32.mrb[0].mxu0
      %876 = vmatprep.mubr.f32.mxu0 %v444
      %877 = vmatmul.mubr.f32.gmra.mrb[0].mxu0 %v443
      %v878 = vpop.f32.mrb[0].mxu0
      %v879 = vadd.f32 %v720, %v878
      %v880 = vpop.f32.mrb[0].mxu0
      %881 = vmatprep.mubr.f32.mxu0 %v448
      %882 = vmatmul.mubr.f32.gmra.mrb[0].mxu0 %v447
      %v883 = vpop.f32.mrb[0].mxu0
      %v884 = vadd.f32 %v720, %v883
      %v885 = vpop.f32.mrb[0].mxu0
      %886 = vmatprep.mubr.f32.mxu0 %v452
      %887 = vmatmul.mubr.f32.gmra.mrb[0].mxu0 %v451
      %v888 = vpop.f32.mrb[0].mxu0
      %v889 = vadd.f32 %v720, %v888
      %v890 = vpop.f32.mrb[0].mxu0
      %891 = vmatprep.mubr.f32.mxu0 %v456
      %892 = vmatmul.mubr.f32.gmra.mrb[0].mxu0 %v455
      %v893 = vpop.f32.mrb[0].mxu0
      %v894 = vadd.f32 %v720, %v893
      %v895 = vpop.f32.mrb[0].mxu0
      %896 = vmatprep.mubr.f32.mxu0 %v460
      %897 = vmatmul.mubr.f32.gmra.mrb[0].mxu0 %v459
      %v898 = vpop.f32.mrb[0].mxu0
      %v899 = vadd.f32 %v720, %v898
      %v900 = vpop.f32.mrb[0].mxu0
      %901 = vmatprep.mubr.f32.mxu0 %v464
      %902 = vmatmul.mubr.f32.gmra.mrb[0].mxu0 %v463
      %v903 = vpop.f32.mrb[0].mxu0
      %v904 = vadd.f32 %v720, %v903
      %v905 = vpop.f32.mrb[0].mxu0
      %906 = vmatprep.mubr.f32.mxu0 %v468
      %907 = vmatmul.mubr.f32.gmra.mrb[0].mxu0 %v467
      %v908 = vpop.f32.mrb[0].mxu0
      %v909 = vadd.f32 %v720, %v908
      %v910 = vpop.f32.mrb[0].mxu0
      %911 = vmatprep.mubr.f32.mxu0 %v472
      %912 = vmatmul.mubr.f32.gmra.mrb[0].mxu0 %v471
      %v913 = vpop.f32.mrb[0].mxu0
      %v914 = vadd.f32 %v720, %v913
      %v915 = vpop.f32.mrb[0].mxu0
      %916 = vmatprep.mubr.f32.mxu0 %v476
      %917 = vmatmul.mubr.f32.gmra.mrb[0].mxu0 %v475
      %v918 = vpop.f32.mrb[0].mxu0
      %v919 = vadd.f32 %v720, %v918
      %v920 = vpop.f32.mrb[0].mxu0
      %921 = vmatprep.mubr.f32.mxu0 %v480
      %922 = vmatmul.mubr.f32.gmra.mrb[0].mxu0 %v479
      %v923 = vpop.f32.mrb[0].mxu0
      %v924 = vadd.f32 %v720, %v923
      %v925 = vpop.f32.mrb[0].mxu0
      %926 = vmatprep.mubr.f32.mxu0 %v484
      %927 = vmatmul.mubr.f32.gmra.mrb[0].mxu0 %v483
      %v928 = vpop.f32.mrb[0].mxu0
      %v929 = vadd.f32 %v720, %v928
      %v930 = vpop.f32.mrb[0].mxu0
      %931 = vmatprep.mubr.f32.mxu0 %v488
      %932 = vmatmul.mubr.f32.gmra.mrb[0].mxu0 %v487
      %v933 = vpop.f32.mrb[0].mxu0
      %v934 = vadd.f32 %v720, %v933
      %v935 = vpop.f32.mrb[0].mxu0
      %936 = vmatprep.mubr.f32.mxu0 %v492
      %937 = vmatmul.mubr.f32.gmra.mrb[0].mxu0 %v491
      %v938 = vpop.f32.mrb[0].mxu0
      %v939 = vadd.f32 %v720, %v938
      %v940 = vpop.f32.mrb[0].mxu0
      %941 = vmatprep.mubr.f32.mxu0 %v496
      %942 = vmatmul.mubr.f32.gmra.mrb[0].mxu0 %v495
      %v943 = vpop.f32.mrb[0].mxu0
      %v944 = vadd.f32 %v720, %v943
      %v945 = vpop.f32.mrb[0].mxu0
      %946 = vmatprep.mubr.f32.mxu0 %v500
      %947 = vmatmul.mubr.f32.gmra.mrb[0].mxu0 %v499
      %v948 = vpop.f32.mrb[0].mxu0
      %v949 = vadd.f32 %v720, %v948
      %v950 = vpop.f32.mrb[0].mxu0
      %951 = vmatprep.mubr.f32.mxu0 %v504
      %952 = vmatmul.mubr.f32.gmra.mrb[0].mxu0 %v503
      %v953 = vpop.f32.mrb[0].mxu0
      %v954 = vadd.f32 %v720, %v953
      %v955 = vpop.f32.mrb[0].mxu0
      %956 = vmatprep.mubr.f32.mxu0 %v508
      %957 = vmatmul.mubr.f32.gmra.mrb[0].mxu0 %v507
      %v958 = vpop.f32.mrb[0].mxu0
      %v959 = vadd.f32 %v720, %v958
      %v960 = vpop.f32.mrb[0].mxu0
      %961 = vmatprep.mubr.f32.mxu0 %v512
      %962 = vmatmul.mubr.f32.gmra.mrb[0].mxu0 %v511
      %v963 = vpop.f32.mrb[0].mxu0
      %v964 = vadd.f32 %v720, %v963
      %v965 = vpop.f32.mrb[0].mxu0
      %966 = vmatprep.mubr.f32.mxu0 %v516
      %967 = vmatmul.mubr.f32.gmra.mrb[0].mxu0 %v515
      %v968 = vpop.f32.mrb[0].mxu0
      %v969 = vadd.f32 %v720, %v968
      %v970 = vpop.f32.mrb[0].mxu0
      %971 = vmatprep.mubr.f32.mxu0 %v520
      %972 = vmatmul.mubr.f32.gmra.mrb[0].mxu0 %v519
      %v973 = vpop.f32.mrb[0].mxu0
      %v974 = vadd.f32 %v720, %v973
      %v975 = vpop.f32.mrb[0].mxu0
      %976 = vmatprep.mubr.f32.mxu0 %v524
      %977 = vmatmul.mubr.f32.gmra.mrb[0].mxu0 %v523
      %v978 = vpop.f32.mrb[0].mxu0
      %v979 = vadd.f32 %v720, %v978
      %v980 = vpop.f32.mrb[0].mxu0
      %981 = vmatprep.mubr.f32.mxu0 %v528
      %982 = vmatmul.mubr.f32.gmra.mrb[0].mxu0 %v527
      %v983 = vpop.f32.mrb[0].mxu0
      %v984 = vadd.f32 %v720, %v983
      %v985 = vpop.f32.mrb[0].mxu0
      %986 = vmatprep.mubr.f32.mxu0 %v532
      %987 = vmatmul.mubr.f32.gmra.mrb[0].mxu0 %v531
      %v988 = vpop.f32.mrb[0].mxu0
      %v989 = vadd.f32 %v720, %v988
      %v990 = vpop.f32.mrb[0].mxu0
      %991 = vmatprep.mubr.f32.mxu0 %v536
      %992 = vmatmul.mubr.f32.gmra.mrb[0].mxu0 %v535
      %v993 = vpop.f32.mrb[0].mxu0
      %v994 = vadd.f32 %v720, %v993
      %v995 = vpop.f32.mrb[0].mxu0
      %996 = vmatprep.mubr.f32.mxu0 %v540
      %997 = vmatmul.mubr.f32.gmra.mrb[0].mxu0 %v539
      %v998 = vpop.f32.mrb[0].mxu0
      %v999 = vadd.f32 %v720, %v998
      %v1000 = vpop.f32.mrb[0].mxu0
      %1001 = vmatprep.mubr.f32.mxu0 %v544
      %1002 = vmatmul.mubr.f32.gmra.mrb[0].mxu0 %v543
      %v1003 = vpop.f32.mrb[0].mxu0
      %v1004 = vadd.f32 %v720, %v1003
      %v1005 = vpop.f32.mrb[0].mxu0
      %1006 = vmatprep.mubr.f32.mxu0 %v548
      %1007 = vmatmul.mubr.f32.gmra.mrb[0].mxu0 %v547
      %v1008 = vpop.f32.mrb[0].mxu0
      %v1009 = vadd.f32 %v720, %v1008
      %v1010 = vpop.f32.mrb[0].mxu0
      %1011 = vmatprep.mubr.f32.mxu0 %v552
      %1012 = vmatmul.mubr.f32.gmra.mrb[0].mxu0 %v551
      %v1013 = vpop.f32.mrb[0].mxu0
      %v1014 = vadd.f32 %v720, %v1013
      %v1015 = vpop.f32.mrb[0].mxu0
      %1016 = vmatprep.mubr.f32.mxu0 %v556
      %1017 = vmatmul.mubr.f32.gmra.mrb[0].mxu0 %v555
      %v1018 = vpop.f32.mrb[0].mxu0
      %v1019 = vadd.f32 %v720, %v1018
      %v1020 = vpop.f32.mrb[0].mxu0
      %1021 = vmatprep.mubr.f32.mxu0 %v560
      %1022 = vmatmul.mubr.f32.gmra.mrb[0].mxu0 %v559
      %v1023 = vpop.f32.mrb[0].mxu0
      %v1024 = vadd.f32 %v720, %v1023
      %v1025 = vpop.f32.mrb[0].mxu0
      %1026 = vmatprep.mubr.f32.mxu0 %v564
      %1027 = vmatmul.mubr.f32.gmra.mrb[0].mxu0 %v563
      %v1028 = vpop.f32.mrb[0].mxu0
      %v1029 = vadd.f32 %v720, %v1028
      %v1030 = vpop.f32.mrb[0].mxu0
      %1031 = vmatprep.mubr.f32.mxu0 %v568
      %1032 = vmatmul.mubr.f32.gmra.mrb[0].mxu0 %v567
      %v1033 = vpop.f32.mrb[0].mxu0
      %v1034 = vadd.f32 %v720, %v1033
      %v1035 = vpop.f32.mrb[0].mxu0
      %1036 = vmatprep.mubr.f32.mxu0 %v572
      %1037 = vmatmul.mubr.f32.gmra.mrb[0].mxu0 %v571
      %v1038 = vpop.f32.mrb[0].mxu0
      %v1039 = vadd.f32 %v720, %v1038
      %v1040 = vpop.f32.mrb[0].mxu0
      %1041 = vmatprep.mubr.f32.mxu0 %v576
      %1042 = vmatmul.mubr.f32.gmra.mrb[0].mxu0 %v575
      %v1043 = vpop.f32.mrb[0].mxu0
      %v1044 = vadd.f32 %v720, %v1043
      %v1045 = vpop.f32.mrb[0].mxu0
      %1046 = vmatprep.mubr.f32.mxu0 %v580
      %1047 = vmatmul.mubr.f32.gmra.mrb[0].mxu0 %v579
      %v1048 = vpop.f32.mrb[0].mxu0
      %v1049 = vadd.f32 %v720, %v1048
      %v1050 = vpop.f32.mrb[0].mxu0
      %1051 = vmatprep.mubr.f32.mxu0 %v584
      %1052 = vmatmul.mubr.f32.gmra.mrb[0].mxu0 %v583
      %v1053 = vpop.f32.mrb[0].mxu0
      %v1054 = vadd.f32 %v720, %v1053
      %v1055 = vpop.f32.mrb[0].mxu0
      %1056 = vmatprep.mubr.f32.mxu0 %v588
      %1057 = vmatmul.mubr.f32.gmra.mrb[0].mxu0 %v587
      %v1058 = vpop.f32.mrb[0].mxu0
      %v1059 = vadd.f32 %v720, %v1058
      %v1060 = vpop.f32.mrb[0].mxu0
      %1061 = vmatprep.mubr.f32.mxu0 %v592
      %1062 = vmatmul.mubr.f32.gmra.mrb[0].mxu0 %v591
      %v1063 = vpop.f32.mrb[0].mxu0
      %v1064 = vadd.f32 %v720, %v1063
      %v1065 = vpop.f32.mrb[0].mxu0
      %1066 = vmatprep.mubr.f32.mxu0 %v596
      %1067 = vmatmul.mubr.f32.gmra.mrb[0].mxu0 %v595
      %v1068 = vpop.f32.mrb[0].mxu0
      %v1069 = vadd.f32 %v720, %v1068
      %v1070 = vpop.f32.mrb[0].mxu0
      %1071 = vmatprep.mubr.f32.mxu0 %v600
      %1072 = vmatmul.mubr.f32.gmra.mrb[0].mxu0 %v599
      %v1073 = vpop.f32.mrb[0].mxu0
      %v1074 = vadd.f32 %v720, %v1073
      %v1075 = vpop.f32.mrb[0].mxu0
      %1076 = vmatprep.mubr.f32.mxu0 %v604
      %1077 = vmatmul.mubr.f32.gmra.mrb[0].mxu0 %v603
      %v1078 = vpop.f32.mrb[0].mxu0
      %v1079 = vadd.f32 %v720, %v1078
      %v1080 = vpop.f32.mrb[0].mxu0
      %1081 = vmatprep.mubr.f32.mxu0 %v608
      %1082 = vmatmul.mubr.f32.gmra.mrb[0].mxu0 %v607
      %v1083 = vpop.f32.mrb[0].mxu0
      %v1084 = vadd.f32 %v720, %v1083
      %v1085 = vpop.f32.mrb[0].mxu0
      %1086 = vmatprep.mubr.f32.mxu0 %v612
      %1087 = vmatmul.mubr.f32.gmra.mrb[0].mxu0 %v611
      %v1088 = vpop.f32.mrb[0].mxu0
      %v1089 = vadd.f32 %v720, %v1088
      %v1090 = vpop.f32.mrb[0].mxu0
      %1091 = vmatprep.mubr.f32.mxu0 %v616
      %1092 = vmatmul.mubr.f32.gmra.mrb[0].mxu0 %v615
      %v1093 = vpop.f32.mrb[0].mxu0
      %v1094 = vadd.f32 %v720, %v1093
      %v1095 = vpop.f32.mrb[0].mxu0
      %1096 = vmatprep.mubr.f32.mxu0 %v620
      %1097 = vmatmul.mubr.f32.gmra.mrb[0].mxu0 %v619
      %v1098 = vpop.f32.mrb[0].mxu0
      %v1099 = vadd.f32 %v720, %v1098
      %v1100 = vpop.f32.mrb[0].mxu0
      %1101 = vmatprep.mubr.f32.mxu0 %v624
      %1102 = vmatmul.mubr.f32.gmra.mrb[0].mxu0 %v623
      %v1103 = vpop.f32.mrb[0].mxu0
      %v1104 = vadd.f32 %v720, %v1103
      %v1105 = vpop.f32.mrb[0].mxu0
      %1106 = vmatprep.mubr.f32.mxu0 %v628
      %1107 = vmatmul.mubr.f32.gmra.mrb[0].mxu0 %v627
      %v1108 = vpop.f32.mrb[0].mxu0
      %v1109 = vadd.f32 %v720, %v1108
      %v1110 = vpop.f32.mrb[0].mxu0
      %1111 = vmatprep.mubr.f32.mxu0 %v632
      %1112 = vmatmul.mubr.f32.gmra.mrb[0].mxu0 %v631
      %v1113 = vpop.f32.mrb[0].mxu0
      %v1114 = vadd.f32 %v720, %v1113
      %v1115 = vpop.f32.mrb[0].mxu0
      %1116 = vmatprep.mubr.f32.mxu0 %v636
      %1117 = vmatmul.mubr.f32.gmra.mrb[0].mxu0 %v635
      %v1118 = vpop.f32.mrb[0].mxu0
      %v1119 = vadd.f32 %v720, %v1118
      %v1120 = vpop.f32.mrb[0].mxu0
      %1121 = vmatprep.mubr.f32.mxu0 %v640
      %1122 = vmatmul.mubr.f32.gmra.mrb[0].mxu0 %v639
      %v1123 = vpop.f32.mrb[0].mxu0
      %v1124 = vadd.f32 %v720, %v1123
      %v1125 = vpop.f32.mrb[0].mxu0
      %1126 = vmatprep.mubr.f32.mxu0 %v644
      %1127 = vmatmul.mubr.f32.gmra.mrb[0].mxu0 %v643
      %v1128 = vpop.f32.mrb[0].mxu0
      %v1129 = vadd.f32 %v720, %v1128
      %v1130 = vpop.f32.mrb[0].mxu0
      %1131 = vmatprep.mubr.f32.mxu0 %v648
      %1132 = vmatmul.mubr.f32.gmra.mrb[0].mxu0 %v647
      %v1133 = vpop.f32.mrb[0].mxu0
      %v1134 = vadd.f32 %v720, %v1133
      %v1135 = vpop.f32.mrb[0].mxu0
      %1136 = vdwg.mxu0
      %1137 = vmatprep.subr.mxu0 0.0
      %1138 = vmatpush1.msra.mxu0 %v683
      %1139 = vmatprep.subr.mxu0 0.0
      %1140 = vmatpush1.msra.mxu0 %v684
      %1141 = vmatprep.subr.mxu0 0.0
      %1142 = vmatpush1.msra.mxu0 %v685
      %1143 = vmatprep.subr.mxu0 0.0
      %1144 = vmatpush1.msra.mxu0 %v686
      %1145 = vmatprep.subr.mxu0 0.0
      %1146 = vmatpush1.msra.mxu0 %v687
      %1147 = vmatprep.subr.mxu0 0.0
      %1148 = vmatpush1.msra.mxu0 %v688
      %1149 = vmatprep.subr.mxu0 0.0
      %1150 = vmatpush1.msra.mxu0 %v689
      %1151 = vmatprep.subr.mxu0 0.0
      %1152 = vmatpush1.msra.mxu0 %v690
      %1153 = vmatprep.subr.mxu0 0.0
      %1154 = vmatpush1.msra.mxu0 %v691
      %1155 = vmatprep.subr.mxu0 0.0
      %1156 = vmatpush1.msra.mxu0 %v692
      %1157 = vmatprep.subr.mxu0 0.0
      %1158 = vmatpush1.msra.mxu0 %v693
      %1159 = vmatprep.subr.mxu0 0.0
      %1160 = vmatpush1.msra.mxu0 %v694
      %1161 = vmatprep.subr.mxu0 0.0
      %1162 = vmatpush1.msra.mxu0 %v695
      %1163 = vmatprep.subr.mxu0 0.0
      %1164 = vmatpush1.msra.mxu0 %v696
      %1165 = vmatprep.subr.mxu0 0.0
      %1166 = vmatpush1.msra.mxu0 %v697
      %1167 = vmatprep.subr.mxu0 0.0
      %1168 = vmatpush1.msra.mxu0 %v698
      %1169 = vmatprep.subr.mxu0 0.0
      %1170 = vmatpush1.msra.mxu0 %v699
      %1171 = vmatprep.subr.mxu0 0.0
      %1172 = vmatpush1.msra.mxu0 %v700
      %1173 = vmatprep.subr.mxu0 0.0
      %1174 = vmatpush1.msra.mxu0 %v701
      %1175 = vmatprep.subr.mxu0 0.0
      %1176 = vmatpush1.msra.mxu0 %v702
      %1177 = vmatprep.subr.mxu0 0.0
      %1178 = vmatpush1.msra.mxu0 %v703
      %1179 = vmatprep.subr.mxu0 0.0
      %1180 = vmatpush1.msra.mxu0 %v704
      %1181 = vmatprep.subr.mxu0 0.0
      %1182 = vmatpush1.msra.mxu0 %v705
      %1183 = vmatprep.subr.mxu0 0.0
      %1184 = vmatpush1.msra.mxu0 %v706
      %1185 = vmatprep.subr.mxu0 0.0
      %1186 = vmatpush1.msra.mxu0 %v707
      %1187 = vmatprep.subr.mxu0 0.0
      %1188 = vmatpush1.msra.mxu0 %v708
      %1189 = vmatprep.subr.mxu0 0.0
      %1190 = vmatpush1.msra.mxu0 %v709
      %1191 = vmatprep.subr.mxu0 0.0
      %1192 = vmatpush1.msra.mxu0 %v710
      %1193 = vmatprep.subr.mxu0 0.0
      %1194 = vmatpush1.msra.mxu0 %v711
      %1195 = vmatprep.subr.mxu0 0.0
      %1196 = vmatpush1.msra.mxu0 %v712
      %1197 = vmatprep.subr.mxu0 0.0
      %1198 = vmatpush1.msra.mxu0 %v713
      %1199 = vmatprep.subr.mxu0 0.0
      %1200 = vmatpush1.msra.mxu0 %v714
      %1201 = vmatprep.mubr.f32.mxu0 %v374
      %1202 = vmatmul.mubr.f32.gmra.mrb[0].mxu0 %v373
      %v1203 = vpop.f32.mrb[0].mxu0
      %v1204 = vadd.f32 %v789, %v1203
      %v1205 = vpop.f32.mrb[0].mxu0
      %1206 = vmatprep.mubr.f32.mxu0 %v378
      %1207 = vmatmul.mubr.f32.gmra.mrb[0].mxu0 %v377
      %v1208 = vpop.f32.mrb[0].mxu0
      %v1209 = vadd.f32 %v794, %v1208
      %v1210 = vpop.f32.mrb[0].mxu0
      %1211 = vmatprep.mubr.f32.mxu0 %v382
      %1212 = vmatmul.mubr.f32.gmra.mrb[0].mxu0 %v381
      %v1213 = vpop.f32.mrb[0].mxu0
      %v1214 = vadd.f32 %v799, %v1213
      %v1215 = vpop.f32.mrb[0].mxu0
      %1216 = vmatprep.mubr.f32.mxu0 %v386
      %1217 = vmatmul.mubr.f32.gmra.mrb[0].mxu0 %v385
      %v1218 = vpop.f32.mrb[0].mxu0
      %v1219 = vadd.f32 %v804, %v1218
      %v1220 = vpop.f32.mrb[0].mxu0
      %1221 = vmatprep.mubr.f32.mxu0 %v390
      %1222 = vmatmul.mubr.f32.gmra.mrb[0].mxu0 %v389
      %v1223 = vpop.f32.mrb[0].mxu0
      %v1224 = vadd.f32 %v809, %v1223
      %v1225 = vpop.f32.mrb[0].mxu0
      %1226 = vmatprep.mubr.f32.mxu0 %v394
      %1227 = vmatmul.mubr.f32.gmra.mrb[0].mxu0 %v393
      %v1228 = vpop.f32.mrb[0].mxu0
      %v1229 = vadd.f32 %v814, %v1228
      %v1230 = vpop.f32.mrb[0].mxu0
      %1231 = vmatprep.mubr.f32.mxu0 %v398
      %1232 = vmatmul.mubr.f32.gmra.mrb[0].mxu0 %v397
      %v1233 = vpop.f32.mrb[0].mxu0
      %v1234 = vadd.f32 %v819, %v1233
      %v1235 = vpop.f32.mrb[0].mxu0
      %1236 = vmatprep.mubr.f32.mxu0 %v402
      %1237 = vmatmul.mubr.f32.gmra.mrb[0].mxu0 %v401
      %v1238 = vpop.f32.mrb[0].mxu0
      %v1239 = vadd.f32 %v824, %v1238
      %v1240 = vpop.f32.mrb[0].mxu0
      %1241 = vmatprep.mubr.f32.mxu0 %v406
      %1242 = vmatmul.mubr.f32.gmra.mrb[0].mxu0 %v405
      %v1243 = vpop.f32.mrb[0].mxu0
      %v1244 = vadd.f32 %v829, %v1243
      %v1245 = vpop.f32.mrb[0].mxu0
      %1246 = vmatprep.mubr.f32.mxu0 %v410
      %1247 = vmatmul.mubr.f32.gmra.mrb[0].mxu0 %v409
      %v1248 = vpop.f32.mrb[0].mxu0
      %v1249 = vadd.f32 %v834, %v1248
      %v1250 = vpop.f32.mrb[0].mxu0
      %1251 = vmatprep.mubr.f32.mxu0 %v414
      %1252 = vmatmul.mubr.f32.gmra.mrb[0].mxu0 %v413
      %v1253 = vpop.f32.mrb[0].mxu0
      %v1254 = vadd.f32 %v839, %v1253
      %v1255 = vpop.f32.mrb[0].mxu0
      %1256 = vmatprep.mubr.f32.mxu0 %v418
      %1257 = vmatmul.mubr.f32.gmra.mrb[0].mxu0 %v417
      %v1258 = vpop.f32.mrb[0].mxu0
      %v1259 = vadd.f32 %v844, %v1258
      %v1260 = vpop.f32.mrb[0].mxu0
      %1261 = vmatprep.mubr.f32.mxu0 %v422
      %1262 = vmatmul.mubr.f32.gmra.mrb[0].mxu0 %v421
      %v1263 = vpop.f32.mrb[0].mxu0
      %v1264 = vadd.f32 %v849, %v1263
      %v1265 = vpop.f32.mrb[0].mxu0
      %1266 = vmatprep.mubr.f32.mxu0 %v426
      %1267 = vmatmul.mubr.f32.gmra.mrb[0].mxu0 %v425
      %v1268 = vpop.f32.mrb[0].mxu0
      %v1269 = vadd.f32 %v854, %v1268
      %v1270 = vpop.f32.mrb[0].mxu0
      %1271 = vmatprep.mubr.f32.mxu0 %v430
      %1272 = vmatmul.mubr.f32.gmra.mrb[0].mxu0 %v429
      %v1273 = vpop.f32.mrb[0].mxu0
      %v1274 = vadd.f32 %v859, %v1273
      %v1275 = vpop.f32.mrb[0].mxu0
      %1276 = vmatprep.mubr.f32.mxu0 %v434
      %1277 = vmatmul.mubr.f32.gmra.mrb[0].mxu0 %v433
      %v1278 = vpop.f32.mrb[0].mxu0
      %v1279 = vadd.f32 %v864, %v1278
      %v1280 = vpop.f32.mrb[0].mxu0
      %1281 = vmatprep.mubr.f32.mxu0 %v438
      %1282 = vmatmul.mubr.f32.gmra.mrb[0].mxu0 %v437
      %v1283 = vpop.f32.mrb[0].mxu0
      %v1284 = vadd.f32 %v869, %v1283
      %v1285 = vpop.f32.mrb[0].mxu0
      %1286 = vmatprep.mubr.f32.mxu0 %v442
      %1287 = vmatmul.mubr.f32.gmra.mrb[0].mxu0 %v441
      %v1288 = vpop.f32.mrb[0].mxu0
      %v1289 = vadd.f32 %v874, %v1288
      %v1290 = vpop.f32.mrb[0].mxu0
      %1291 = vmatprep.mubr.f32.mxu0 %v446
      %1292 = vmatmul.mubr.f32.gmra.mrb[0].mxu0 %v445
      %v1293 = vpop.f32.mrb[0].mxu0
      %v1294 = vadd.f32 %v879, %v1293
      %v1295 = vpop.f32.mrb[0].mxu0
      %1296 = vmatprep.mubr.f32.mxu0 %v450
      %1297 = vmatmul.mubr.f32.gmra.mrb[0].mxu0 %v449
      %v1298 = vpop.f32.mrb[0].mxu0
      %v1299 = vadd.f32 %v884, %v1298
      %v1300 = vpop.f32.mrb[0].mxu0
      %1301 = vmatprep.mubr.f32.mxu0 %v454
      %1302 = vmatmul.mubr.f32.gmra.mrb[0].mxu0 %v453
      %v1303 = vpop.f32.mrb[0].mxu0
      %v1304 = vadd.f32 %v889, %v1303
      %v1305 = vpop.f32.mrb[0].mxu0
      %1306 = vmatprep.mubr.f32.mxu0 %v458
      %1307 = vmatmul.mubr.f32.gmra.mrb[0].mxu0 %v457
      %v1308 = vpop.f32.mrb[0].mxu0
      %v1309 = vadd.f32 %v894, %v1308
      %v1310 = vpop.f32.mrb[0].mxu0
      %1311 = vmatprep.mubr.f32.mxu0 %v462
      %1312 = vmatmul.mubr.f32.gmra.mrb[0].mxu0 %v461
      %v1313 = vpop.f32.mrb[0].mxu0
      %v1314 = vadd.f32 %v899, %v1313
      %v1315 = vpop.f32.mrb[0].mxu0
      %1316 = vmatprep.mubr.f32.mxu0 %v466
      %1317 = vmatmul.mubr.f32.gmra.mrb[0].mxu0 %v465
      %v1318 = vpop.f32.mrb[0].mxu0
      %v1319 = vadd.f32 %v904, %v1318
      %v1320 = vpop.f32.mrb[0].mxu0
      %1321 = vmatprep.mubr.f32.mxu0 %v470
      %1322 = vmatmul.mubr.f32.gmra.mrb[0].mxu0 %v469
      %v1323 = vpop.f32.mrb[0].mxu0
      %v1324 = vadd.f32 %v909, %v1323
      %v1325 = vpop.f32.mrb[0].mxu0
      %1326 = vmatprep.mubr.f32.mxu0 %v474
      %1327 = vmatmul.mubr.f32.gmra.mrb[0].mxu0 %v473
      %v1328 = vpop.f32.mrb[0].mxu0
      %v1329 = vadd.f32 %v914, %v1328
      %v1330 = vpop.f32.mrb[0].mxu0
      %1331 = vmatprep.mubr.f32.mxu0 %v478
      %1332 = vmatmul.mubr.f32.gmra.mrb[0].mxu0 %v477
      %v1333 = vpop.f32.mrb[0].mxu0
      %v1334 = vadd.f32 %v919, %v1333
      %v1335 = vpop.f32.mrb[0].mxu0
      %1336 = vmatprep.mubr.f32.mxu0 %v482
      %1337 = vmatmul.mubr.f32.gmra.mrb[0].mxu0 %v481
      %v1338 = vpop.f32.mrb[0].mxu0
      %v1339 = vadd.f32 %v924, %v1338
      %v1340 = vpop.f32.mrb[0].mxu0
      %1341 = vmatprep.mubr.f32.mxu0 %v486
      %1342 = vmatmul.mubr.f32.gmra.mrb[0].mxu0 %v485
      %v1343 = vpop.f32.mrb[0].mxu0
      %v1344 = vadd.f32 %v929, %v1343
      %v1345 = vpop.f32.mrb[0].mxu0
      %1346 = vmatprep.mubr.f32.mxu0 %v490
      %1347 = vmatmul.mubr.f32.gmra.mrb[0].mxu0 %v489
      %v1348 = vpop.f32.mrb[0].mxu0
      %v1349 = vadd.f32 %v934, %v1348
      %v1350 = vpop.f32.mrb[0].mxu0
      %1351 = vmatprep.mubr.f32.mxu0 %v494
      %1352 = vmatmul.mubr.f32.gmra.mrb[0].mxu0 %v493
      %v1353 = vpop.f32.mrb[0].mxu0
      %v1354 = vadd.f32 %v939, %v1353
      %v1355 = vpop.f32.mrb[0].mxu0
      %1356 = vmatprep.mubr.f32.mxu0 %v498
      %1357 = vmatmul.mubr.f32.gmra.mrb[0].mxu0 %v497
      %v1358 = vpop.f32.mrb[0].mxu0
      %v1359 = vadd.f32 %v944, %v1358
      %v1360 = vpop.f32.mrb[0].mxu0
      %1361 = vmatprep.mubr.f32.mxu0 %v502
      %1362 = vmatmul.mubr.f32.gmra.mrb[0].mxu0 %v501
      %v1363 = vpop.f32.mrb[0].mxu0
      %v1364 = vadd.f32 %v949, %v1363
      %v1365 = vpop.f32.mrb[0].mxu0
      %1366 = vmatprep.mubr.f32.mxu0 %v506
      %1367 = vmatmul.mubr.f32.gmra.mrb[0].mxu0 %v505
      %v1368 = vpop.f32.mrb[0].mxu0
      %v1369 = vadd.f32 %v954, %v1368
      %v1370 = vpop.f32.mrb[0].mxu0
      %1371 = vmatprep.mubr.f32.mxu0 %v510
      %1372 = vmatmul.mubr.f32.gmra.mrb[0].mxu0 %v509
      %v1373 = vpop.f32.mrb[0].mxu0
      %v1374 = vadd.f32 %v959, %v1373
      %v1375 = vpop.f32.mrb[0].mxu0
      %1376 = vmatprep.mubr.f32.mxu0 %v514
      %1377 = vmatmul.mubr.f32.gmra.mrb[0].mxu0 %v513
      %v1378 = vpop.f32.mrb[0].mxu0
      %v1379 = vadd.f32 %v964, %v1378
      %v1380 = vpop.f32.mrb[0].mxu0
      %1381 = vmatprep.mubr.f32.mxu0 %v518
      %1382 = vmatmul.mubr.f32.gmra.mrb[0].mxu0 %v517
      %v1383 = vpop.f32.mrb[0].mxu0
      %v1384 = vadd.f32 %v969, %v1383
      %v1385 = vpop.f32.mrb[0].mxu0
      %1386 = vmatprep.mubr.f32.mxu0 %v522
      %1387 = vmatmul.mubr.f32.gmra.mrb[0].mxu0 %v521
      %v1388 = vpop.f32.mrb[0].mxu0
      %v1389 = vadd.f32 %v974, %v1388
      %v1390 = vpop.f32.mrb[0].mxu0
      %1391 = vmatprep.mubr.f32.mxu0 %v526
      %1392 = vmatmul.mubr.f32.gmra.mrb[0].mxu0 %v525
      %v1393 = vpop.f32.mrb[0].mxu0
      %v1394 = vadd.f32 %v979, %v1393
      %v1395 = vpop.f32.mrb[0].mxu0
      %1396 = vmatprep.mubr.f32.mxu0 %v530
      %1397 = vmatmul.mubr.f32.gmra.mrb[0].mxu0 %v529
      %v1398 = vpop.f32.mrb[0].mxu0
      %v1399 = vadd.f32 %v984, %v1398
      %v1400 = vpop.f32.mrb[0].mxu0
      %1401 = vmatprep.mubr.f32.mxu0 %v534
      %1402 = vmatmul.mubr.f32.gmra.mrb[0].mxu0 %v533
      %v1403 = vpop.f32.mrb[0].mxu0
      %v1404 = vadd.f32 %v989, %v1403
      %v1405 = vpop.f32.mrb[0].mxu0
      %1406 = vmatprep.mubr.f32.mxu0 %v538
      %1407 = vmatmul.mubr.f32.gmra.mrb[0].mxu0 %v537
      %v1408 = vpop.f32.mrb[0].mxu0
      %v1409 = vadd.f32 %v994, %v1408
      %v1410 = vpop.f32.mrb[0].mxu0
      %1411 = vmatprep.mubr.f32.mxu0 %v542
      %1412 = vmatmul.mubr.f32.gmra.mrb[0].mxu0 %v541
      %v1413 = vpop.f32.mrb[0].mxu0
      %v1414 = vadd.f32 %v999, %v1413
      %v1415 = vpop.f32.mrb[0].mxu0
      %1416 = vmatprep.mubr.f32.mxu0 %v546
      %1417 = vmatmul.mubr.f32.gmra.mrb[0].mxu0 %v545
      %v1418 = vpop.f32.mrb[0].mxu0
      %v1419 = vadd.f32 %v1004, %v1418
      %v1420 = vpop.f32.mrb[0].mxu0
      %1421 = vmatprep.mubr.f32.mxu0 %v550
      %1422 = vmatmul.mubr.f32.gmra.mrb[0].mxu0 %v549
      %v1423 = vpop.f32.mrb[0].mxu0
      %v1424 = vadd.f32 %v1009, %v1423
      %v1425 = vpop.f32.mrb[0].mxu0
      %1426 = vmatprep.mubr.f32.mxu0 %v554
      %1427 = vmatmul.mubr.f32.gmra.mrb[0].mxu0 %v553
      %v1428 = vpop.f32.mrb[0].mxu0
      %v1429 = vadd.f32 %v1014, %v1428
      %v1430 = vpop.f32.mrb[0].mxu0
      %1431 = vmatprep.mubr.f32.mxu0 %v558
      %1432 = vmatmul.mubr.f32.gmra.mrb[0].mxu0 %v557
      %v1433 = vpop.f32.mrb[0].mxu0
      %v1434 = vadd.f32 %v1019, %v1433
      %v1435 = vpop.f32.mrb[0].mxu0
      %1436 = vmatprep.mubr.f32.mxu0 %v562
      %1437 = vmatmul.mubr.f32.gmra.mrb[0].mxu0 %v561
      %v1438 = vpop.f32.mrb[0].mxu0
      %v1439 = vadd.f32 %v1024, %v1438
      %v1440 = vpop.f32.mrb[0].mxu0
      %1441 = vmatprep.mubr.f32.mxu0 %v566
      %1442 = vmatmul.mubr.f32.gmra.mrb[0].mxu0 %v565
      %v1443 = vpop.f32.mrb[0].mxu0
      %v1444 = vadd.f32 %v1029, %v1443
      %v1445 = vpop.f32.mrb[0].mxu0
      %1446 = vmatprep.mubr.f32.mxu0 %v570
      %1447 = vmatmul.mubr.f32.gmra.mrb[0].mxu0 %v569
      %v1448 = vpop.f32.mrb[0].mxu0
      %v1449 = vadd.f32 %v1034, %v1448
      %v1450 = vpop.f32.mrb[0].mxu0
      %1451 = vmatprep.mubr.f32.mxu0 %v574
      %1452 = vmatmul.mubr.f32.gmra.mrb[0].mxu0 %v573
      %v1453 = vpop.f32.mrb[0].mxu0
      %v1454 = vadd.f32 %v1039, %v1453
      %v1455 = vpop.f32.mrb[0].mxu0
      %1456 = vmatprep.mubr.f32.mxu0 %v578
      %1457 = vmatmul.mubr.f32.gmra.mrb[0].mxu0 %v577
      %v1458 = vpop.f32.mrb[0].mxu0
      %v1459 = vadd.f32 %v1044, %v1458
      %v1460 = vpop.f32.mrb[0].mxu0
      %1461 = vmatprep.mubr.f32.mxu0 %v582
      %1462 = vmatmul.mubr.f32.gmra.mrb[0].mxu0 %v581
      %v1463 = vpop.f32.mrb[0].mxu0
      %v1464 = vadd.f32 %v1049, %v1463
      %v1465 = vpop.f32.mrb[0].mxu0
      %1466 = vmatprep.mubr.f32.mxu0 %v586
      %1467 = vmatmul.mubr.f32.gmra.mrb[0].mxu0 %v585
      %v1468 = vpop.f32.mrb[0].mxu0
      %v1469 = vadd.f32 %v1054, %v1468
      %v1470 = vpop.f32.mrb[0].mxu0
      %1471 = vmatprep.mubr.f32.mxu0 %v590
      %1472 = vmatmul.mubr.f32.gmra.mrb[0].mxu0 %v589
      %v1473 = vpop.f32.mrb[0].mxu0
      %v1474 = vadd.f32 %v1059, %v1473
      %v1475 = vpop.f32.mrb[0].mxu0
      %1476 = vmatprep.mubr.f32.mxu0 %v594
      %1477 = vmatmul.mubr.f32.gmra.mrb[0].mxu0 %v593
      %v1478 = vpop.f32.mrb[0].mxu0
      %v1479 = vadd.f32 %v1064, %v1478
      %v1480 = vpop.f32.mrb[0].mxu0
      %1481 = vmatprep.mubr.f32.mxu0 %v598
      %1482 = vmatmul.mubr.f32.gmra.mrb[0].mxu0 %v597
      %v1483 = vpop.f32.mrb[0].mxu0
      %v1484 = vadd.f32 %v1069, %v1483
      %v1485 = vpop.f32.mrb[0].mxu0
      %1486 = vmatprep.mubr.f32.mxu0 %v602
      %1487 = vmatmul.mubr.f32.gmra.mrb[0].mxu0 %v601
      %v1488 = vpop.f32.mrb[0].mxu0
      %v1489 = vadd.f32 %v1074, %v1488
      %v1490 = vpop.f32.mrb[0].mxu0
      %1491 = vmatprep.mubr.f32.mxu0 %v606
      %1492 = vmatmul.mubr.f32.gmra.mrb[0].mxu0 %v605
      %v1493 = vpop.f32.mrb[0].mxu0
      %v1494 = vadd.f32 %v1079, %v1493
      %v1495 = vpop.f32.mrb[0].mxu0
      %1496 = vmatprep.mubr.f32.mxu0 %v610
      %1497 = vmatmul.mubr.f32.gmra.mrb[0].mxu0 %v609
      %v1498 = vpop.f32.mrb[0].mxu0
      %v1499 = vadd.f32 %v1084, %v1498
      %v1500 = vpop.f32.mrb[0].mxu0
      %1501 = vmatprep.mubr.f32.mxu0 %v614
      %1502 = vmatmul.mubr.f32.gmra.mrb[0].mxu0 %v613
      %v1503 = vpop.f32.mrb[0].mxu0
      %v1504 = vadd.f32 %v1089, %v1503
      %v1505 = vpop.f32.mrb[0].mxu0
      %1506 = vmatprep.mubr.f32.mxu0 %v618
      %1507 = vmatmul.mubr.f32.gmra.mrb[0].mxu0 %v617
      %v1508 = vpop.f32.mrb[0].mxu0
      %v1509 = vadd.f32 %v1094, %v1508
      %v1510 = vpop.f32.mrb[0].mxu0
      %1511 = vmatprep.mubr.f32.mxu0 %v622
      %1512 = vmatmul.mubr.f32.gmra.mrb[0].mxu0 %v621
      %v1513 = vpop.f32.mrb[0].mxu0
      %v1514 = vadd.f32 %v1099, %v1513
      %v1515 = vpop.f32.mrb[0].mxu0
      %1516 = vmatprep.mubr.f32.mxu0 %v626
      %1517 = vmatmul.mubr.f32.gmra.mrb[0].mxu0 %v625
      %v1518 = vpop.f32.mrb[0].mxu0
      %v1519 = vadd.f32 %v1104, %v1518
      %v1520 = vpop.f32.mrb[0].mxu0
      %1521 = vmatprep.mubr.f32.mxu0 %v630
      %1522 = vmatmul.mubr.f32.gmra.mrb[0].mxu0 %v629
      %v1523 = vpop.f32.mrb[0].mxu0
      %v1524 = vadd.f32 %v1109, %v1523
      %v1525 = vpop.f32.mrb[0].mxu0
      %1526 = vmatprep.mubr.f32.mxu0 %v634
      %1527 = vmatmul.mubr.f32.gmra.mrb[0].mxu0 %v633
      %v1528 = vpop.f32.mrb[0].mxu0
      %v1529 = vadd.f32 %v1114, %v1528
      %v1530 = vpop.f32.mrb[0].mxu0
      %1531 = vmatprep.mubr.f32.mxu0 %v638
      %1532 = vmatmul.mubr.f32.gmra.mrb[0].mxu0 %v637
      %v1533 = vpop.f32.mrb[0].mxu0
      %v1534 = vadd.f32 %v1119, %v1533
      %v1535 = vpop.f32.mrb[0].mxu0
      %1536 = vmatprep.mubr.f32.mxu0 %v642
      %1537 = vmatmul.mubr.f32.gmra.mrb[0].mxu0 %v641
      %v1538 = vpop.f32.mrb[0].mxu0
      %v1539 = vadd.f32 %v1124, %v1538
      %v1540 = vpop.f32.mrb[0].mxu0
      %1541 = vmatprep.mubr.f32.mxu0 %v646
      %1542 = vmatmul.mubr.f32.gmra.mrb[0].mxu0 %v645
      %v1543 = vpop.f32.mrb[0].mxu0
      %v1544 = vadd.f32 %v1129, %v1543
      %v1545 = vpop.f32.mrb[0].mxu0
      %1546 = vmatprep.mubr.f32.mxu0 %v650
      %1547 = vmatmul.mubr.f32.gmra.mrb[0].mxu0 %v649
      %v1548 = vpop.f32.mrb[0].mxu0
      %v1549 = vadd.f32 %v1134, %v1548
      %v1550 = vpop.f32.mrb[0].mxu0
      %1551 = vdwg.mxu0
      %v1552 = vmax.f32 %v1204, 0.0
      %v1553 = vmax.f32 %v1209, 0.0
      %v1554 = vmax.f32 %v1214, 0.0
      %v1555 = vmax.f32 %v1219, 0.0
      %v1556 = vmax.f32 %v1224, 0.0
      %v1557 = vmax.f32 %v1229, 0.0
      %v1558 = vmax.f32 %v1234, 0.0
      %v1559 = vmax.f32 %v1239, 0.0
      %v1560 = vmax.f32 %v1244, 0.0
      %v1561 = vmax.f32 %v1249, 0.0
      %v1562 = vmax.f32 %v1254, 0.0
      %v1563 = vmax.f32 %v1259, 0.0
      %v1564 = vmax.f32 %v1264, 0.0
      %v1565 = vmax.f32 %v1269, 0.0
      %v1566 = vmax.f32 %v1274, 0.0
      %v1567 = vmax.f32 %v1279, 0.0
      %v1568 = vmax.f32 %v1284, 0.0
      %v1569 = vmax.f32 %v1289, 0.0
      %v1570 = vmax.f32 %v1294, 0.0
      %v1571 = vmax.f32 %v1299, 0.0
      %v1572 = vmax.f32 %v1304, 0.0
      %v1573 = vmax.f32 %v1309, 0.0
      %v1574 = vmax.f32 %v1314, 0.0
      %v1575 = vmax.f32 %v1319, 0.0
      %v1576 = vmax.f32 %v1324, 0.0
      %v1577 = vmax.f32 %v1329, 0.0
      %v1578 = vmax.f32 %v1334, 0.0
      %v1579 = vmax.f32 %v1339, 0.0
      %v1580 = vmax.f32 %v1344, 0.0
      %v1581 = vmax.f32 %v1349, 0.0
      %v1582 = vmax.f32 %v1354, 0.0
      %v1583 = vmax.f32 %v1359, 0.0
      %v1584 = vmax.f32 %v1364, 0.0
      %v1585 = vmax.f32 %v1369, 0.0
      %v1586 = vmax.f32 %v1374, 0.0
      %v1587 = vmax.f32 %v1379, 0.0
      %v1588 = vmax.f32 %v1384, 0.0
      %v1589 = vmax.f32 %v1389, 0.0
      %v1590 = vmax.f32 %v1394, 0.0
      %v1591 = vmax.f32 %v1399, 0.0
      %v1592 = vmax.f32 %v1404, 0.0
      %v1593 = vmax.f32 %v1409, 0.0
      %v1594 = vmax.f32 %v1414, 0.0
      %v1595 = vmax.f32 %v1419, 0.0
      %v1596 = vmax.f32 %v1424, 0.0
      %v1597 = vmax.f32 %v1429, 0.0
      %v1598 = vmax.f32 %v1434, 0.0
      %v1599 = vmax.f32 %v1439, 0.0
      %v1600 = vmax.f32 %v1444, 0.0
      %v1601 = vmax.f32 %v1449, 0.0
      %v1602 = vmax.f32 %v1454, 0.0
      %v1603 = vmax.f32 %v1459, 0.0
      %v1604 = vmax.f32 %v1464, 0.0
      %v1605 = vmax.f32 %v1469, 0.0
      %v1606 = vmax.f32 %v1474, 0.0
      %v1607 = vmax.f32 %v1479, 0.0
      %v1608 = vmax.f32 %v1484, 0.0
      %v1609 = vmax.f32 %v1489, 0.0
      %v1610 = vmax.f32 %v1494, 0.0
      %v1611 = vmax.f32 %v1499, 0.0
      %v1612 = vmax.f32 %v1504, 0.0
      %v1613 = vmax.f32 %v1509, 0.0
      %v1614 = vmax.f32 %v1514, 0.0
      %v1615 = vmax.f32 %v1519, 0.0
      %v1616 = vmax.f32 %v1524, 0.0
      %v1617 = vmax.f32 %v1529, 0.0
      %v1618 = vmax.f32 %v1534, 0.0
      %v1619 = vmax.f32 %v1539, 0.0
      %v1620 = vmax.f32 %v1544, 0.0
      %v1621 = vmax.f32 %v1549, 0.0
      %vm1622 = vcmask 523264
      %1623 = vst.msk [vmem:[#allocation2] sm:$0xff] %vm1622, %v1552
      %1624 = vst.msk [vmem:[#allocation2 + $0x8] sm:$0xff] %vm1622, %v1553
      %1625 = vst.msk [vmem:[#allocation2 + $0x10] sm:$0xff] %vm1622, %v1554
      %1626 = vst.msk [vmem:[#allocation2 + $0x18] sm:$0xff] %vm1622, %v1555
      %1627 = vst.msk [vmem:[#allocation2 + $0x20] sm:$0xff] %vm1622, %v1556
      %1628 = vst.msk [vmem:[#allocation2 + $0x28] sm:$0xff] %vm1622, %v1557
      %1629 = vst.msk [vmem:[#allocation2 + $0x30] sm:$0xff] %vm1622, %v1558
      %1630 = vst.msk [vmem:[#allocation2 + $0x38] sm:$0xff] %vm1622, %v1559
      %1631 = vst.msk [vmem:[#allocation2 + $0x40] sm:$0xff] %vm1622, %v1560
      %1632 = vst.msk [vmem:[#allocation2 + $0x48] sm:$0xff] %vm1622, %v1561
      %1633 = vst.msk [vmem:[#allocation2 + $0x50] sm:$0xff] %vm1622, %v1562
      %1634 = vst.msk [vmem:[#allocation2 + $0x58] sm:$0xff] %vm1622, %v1563
      %1635 = vst.msk [vmem:[#allocation2 + $0x60] sm:$0xff] %vm1622, %v1564
      %1636 = vst.msk [vmem:[#allocation2 + $0x68] sm:$0xff] %vm1622, %v1565
      %1637 = vst.msk [vmem:[#allocation2 + $0x70] sm:$0xff] %vm1622, %v1566
      %1638 = vst.msk [vmem:[#allocation2 + $0x78] sm:$0xff] %vm1622, %v1567
      %1639 = vst.msk [vmem:[#allocation2 + $0x80] sm:$0xff] %vm1622, %v1568
      %1640 = vst.msk [vmem:[#allocation2 + $0x88] sm:$0xff] %vm1622, %v1569
      %1641 = vst.msk [vmem:[#allocation2 + $0x90] sm:$0xff] %vm1622, %v1570
      %1642 = vst.msk [vmem:[#allocation2 + $0x98] sm:$0xff] %vm1622, %v1571
      %1643 = vst.msk [vmem:[#allocation2 + $0xa0] sm:$0xff] %vm1622, %v1572
      %1644 = vst.msk [vmem:[#allocation2 + $0xa8] sm:$0xff] %vm1622, %v1573
      %1645 = vst.msk [vmem:[#allocation2 + $0xb0] sm:$0xff] %vm1622, %v1574
      %1646 = vst.msk [vmem:[#allocation2 + $0xb8] sm:$0xff] %vm1622, %v1575
      %1647 = vst.msk [vmem:[#allocation2 + $0xc0] sm:$0xff] %vm1622, %v1576
      %1648 = vst.msk [vmem:[#allocation2 + $0xc8] sm:$0xff] %vm1622, %v1577
      %1649 = vst.msk [vmem:[#allocation2 + $0xd0] sm:$0xff] %vm1622, %v1578
      %1650 = vst.msk [vmem:[#allocation2 + $0xd8] sm:$0xff] %vm1622, %v1579
      %1651 = vst.msk [vmem:[#allocation2 + $0xe0] sm:$0xff] %vm1622, %v1580
      %1652 = vst.msk [vmem:[#allocation2 + $0xe8] sm:$0xff] %vm1622, %v1581
      %1653 = vst.msk [vmem:[#allocation2 + $0xf0] sm:$0xff] %vm1622, %v1582
      %1654 = vst.msk [vmem:[#allocation2 + $0xf8] sm:$0xff] %vm1622, %v1583
      %1655 = vst.msk [vmem:[#allocation2 + $0x100] sm:$0xff] %vm1622, %v1584
      %1656 = vst.msk [vmem:[#allocation2 + $0x108] sm:$0xff] %vm1622, %v1585
      %1657 = vst.msk [vmem:[#allocation2 + $0x110] sm:$0xff] %vm1622, %v1586
      %1658 = vst.msk [vmem:[#allocation2 + $0x118] sm:$0xff] %vm1622, %v1587
      %1659 = vst.msk [vmem:[#allocation2 + $0x120] sm:$0xff] %vm1622, %v1588
      %1660 = vst.msk [vmem:[#allocation2 + $0x128] sm:$0xff] %vm1622, %v1589
      %1661 = vst.msk [vmem:[#allocation2 + $0x130] sm:$0xff] %vm1622, %v1590
      %1662 = vst.msk [vmem:[#allocation2 + $0x138] sm:$0xff] %vm1622, %v1591
      %1663 = vst.msk [vmem:[#allocation2 + $0x140] sm:$0xff] %vm1622, %v1592
      %1664 = vst.msk [vmem:[#allocation2 + $0x148] sm:$0xff] %vm1622, %v1593
      %1665 = vst.msk [vmem:[#allocation2 + $0x150] sm:$0xff] %vm1622, %v1594
      %1666 = vst.msk [vmem:[#allocation2 + $0x158] sm:$0xff] %vm1622, %v1595
      %1667 = vst.msk [vmem:[#allocation2 + $0x160] sm:$0xff] %vm1622, %v1596
      %1668 = vst.msk [vmem:[#allocation2 + $0x168] sm:$0xff] %vm1622, %v1597
      %1669 = vst.msk [vmem:[#allocation2 + $0x170] sm:$0xff] %vm1622, %v1598
      %1670 = vst.msk [vmem:[#allocation2 + $0x178] sm:$0xff] %vm1622, %v1599
      %1671 = vst.msk [vmem:[#allocation2 + $0x180] sm:$0xff] %vm1622, %v1600
      %1672 = vst.msk [vmem:[#allocation2 + $0x188] sm:$0xff] %vm1622, %v1601
      %1673 = vst.msk [vmem:[#allocation2 + $0x190] sm:$0xff] %vm1622, %v1602
      %1674 = vst.msk [vmem:[#allocation2 + $0x198] sm:$0xff] %vm1622, %v1603
      %1675 = vst.msk [vmem:[#allocation2 + $0x1a0] sm:$0xff] %vm1622, %v1604
      %1676 = vst.msk [vmem:[#allocation2 + $0x1a8] sm:$0xff] %vm1622, %v1605
      %1677 = vst.msk [vmem:[#allocation2 + $0x1b0] sm:$0xff] %vm1622, %v1606
      %1678 = vst.msk [vmem:[#allocation2 + $0x1b8] sm:$0xff] %vm1622, %v1607
      %1679 = vst.msk [vmem:[#allocation2 + $0x1c0] sm:$0xff] %vm1622, %v1608
      %1680 = vst.msk [vmem:[#allocation2 + $0x1c8] sm:$0xff] %vm1622, %v1609
      %1681 = vst.msk [vmem:[#allocation2 + $0x1d0] sm:$0xff] %vm1622, %v1610
      %1682 = vst.msk [vmem:[#allocation2 + $0x1d8] sm:$0xff] %vm1622, %v1611
      %1683 = vst.msk [vmem:[#allocation2 + $0x1e0] sm:$0xff] %vm1622, %v1612
      %1684 = vst.msk [vmem:[#allocation2 + $0x1e8] sm:$0xff] %vm1622, %v1613
      %1685 = vst.msk [vmem:[#allocation2 + $0x1f0] sm:$0xff] %vm1622, %v1614
      %1686 = vst.msk [vmem:[#allocation2 + $0x1f8] sm:$0xff] %vm1622, %v1615
      %1687 = vst.msk [vmem:[#allocation2 + $0x200] sm:$0xff] %vm1622, %v1616
      %1688 = vst.msk [vmem:[#allocation2 + $0x208] sm:$0xff] %vm1622, %v1617
      %1689 = vst.msk [vmem:[#allocation2 + $0x210] sm:$0xff] %vm1622, %v1618
      %1690 = vst.msk [vmem:[#allocation2 + $0x218] sm:$0xff] %vm1622, %v1619
      %1691 = vst.msk [vmem:[#allocation2 + $0x220] sm:$0xff] %vm1622, %v1620
      %1692 = vst.msk [vmem:[#allocation2 + $0x228] sm:$0xff] %vm1622, %v1621
      %v1693 = vld [vmem:[#allocation2] sm:$0xff]
      %v1694 = vld [vmem:[#allocation2 + $0x8] sm:$0xff]
      %v1695 = vld [vmem:[#allocation2 + $0x10] sm:$0xff]
      %v1696 = vld [vmem:[#allocation2 + $0x18] sm:$0xff]
      %v1697 = vld [vmem:[#allocation2 + $0x20] sm:$0xff]
      %v1698 = vld [vmem:[#allocation2 + $0x28] sm:$0xff]
      %1699 = vst.msk [vmem:[#allocation3] sm:$0xff] %vm1622, %v1693
      %1700 = vst.msk [vmem:[#allocation3 + $0x20] sm:$0xff] %vm1622, %v1694
      %1701 = vst.msk [vmem:[#allocation3 + $0x40] sm:$0xff] %vm1622, %v1695
      %1702 = vst.msk [vmem:[#allocation3 + $0x60] sm:$0xff] %vm1622, %v1696
      %1703 = vst.msk [vmem:[#allocation3 + $0x80] sm:$0xff] %vm1622, %v1697
      %1704 = vst.msk [vmem:[#allocation3 + $0xa0] sm:$0xff] %vm1622, %v1698
      %v1705 = vld [vmem:[#allocation2 + $0x8] sm:$0xff]
      %v1706 = vld [vmem:[#allocation2 + $0x10] sm:$0xff]
      %v1707 = vld [vmem:[#allocation2 + $0x18] sm:$0xff]
      %v1708 = vld [vmem:[#allocation2 + $0x20] sm:$0xff]
      %v1709 = vld [vmem:[#allocation2 + $0x28] sm:$0xff]
      %v1710 = vld [vmem:[#allocation2 + $0x30] sm:$0xff]
      %1717 = vrot.lane.b32.xlu0 %v1705, 64
      %v1718 = vpop.permute.xlu0 %1717
      %1719 = vrot.lane.b32.xlu0 %v1706, 64
      %v1720 = vpop.permute.xlu0 %1719
      %1721 = vrot.lane.b32.xlu0 %v1707, 64
      %v1722 = vpop.permute.xlu0 %1721
      %1723 = vrot.lane.b32.xlu0 %v1708, 64
      %v1724 = vpop.permute.xlu0 %1723
      %1725 = vrot.lane.b32.xlu0 %v1709, 64
      %v1726 = vpop.permute.xlu0 %1725
      %1727 = vrot.lane.b32.xlu0 %v1710, 64
      %v1728 = vpop.permute.xlu0 %1727
      %vm1735 = vcmask 1048064
      %1736 = vst.msk [vmem:[#allocation3] sm:$0xff] %vm1735, %v1718
      %1737 = vst.msk [vmem:[#allocation3 + $0x20] sm:$0xff] %vm1735, %v1720
      %1738 = vst.msk [vmem:[#allocation3 + $0x40] sm:$0xff] %vm1735, %v1722
      %1739 = vst.msk [vmem:[#allocation3 + $0x60] sm:$0xff] %vm1735, %v1724
      %1740 = vst.msk [vmem:[#allocation3 + $0x80] sm:$0xff] %vm1735, %v1726
      %1741 = vst.msk [vmem:[#allocation3 + $0xa0] sm:$0xff] %vm1735, %v1728
      %v1742 = vld [vmem:[#allocation2 + $0x38] sm:$0xff]
      %v1743 = vld [vmem:[#allocation2 + $0x40] sm:$0xff]
      %v1744 = vld [vmem:[#allocation2 + $0x48] sm:$0xff]
      %v1745 = vld [vmem:[#allocation2 + $0x50] sm:$0xff]
      %v1746 = vld [vmem:[#allocation2 + $0x58] sm:$0xff]
      %v1747 = vld [vmem:[#allocation2 + $0x60] sm:$0xff]
      %1748 = vst.msk [vmem:[#allocation3 + $0x8] sm:$0xff] %vm1622, %v1742
      %1749 = vst.msk [vmem:[#allocation3 + $0x28] sm:$0xff] %vm1622, %v1743
      %1750 = vst.msk [vmem:[#allocation3 + $0x48] sm:$0xff] %vm1622, %v1744
      %1751 = vst.msk [vmem:[#allocation3 + $0x68] sm:$0xff] %vm1622, %v1745
      %1752 = vst.msk [vmem:[#allocation3 + $0x88] sm:$0xff] %vm1622, %v1746
      %1753 = vst.msk [vmem:[#allocation3 + $0xa8] sm:$0xff] %vm1622, %v1747
      %v1754 = vld [vmem:[#allocation2 + $0x40] sm:$0xff]
      %v1755 = vld [vmem:[#allocation2 + $0x48] sm:$0xff]
      %v1756 = vld [vmem:[#allocation2 + $0x50] sm:$0xff]
      %v1757 = vld [vmem:[#allocation2 + $0x58] sm:$0xff]
      %v1758 = vld [vmem:[#allocation2 + $0x60] sm:$0xff]
      %v1759 = vld [vmem:[#allocation2 + $0x68] sm:$0xff]
      %1766 = vrot.lane.b32.xlu0 %v1754, 64
      %v1767 = vpop.permute.xlu0 %1766
      %1768 = vrot.lane.b32.xlu0 %v1755, 64
      %v1769 = vpop.permute.xlu0 %1768
      %1770 = vrot.lane.b32.xlu0 %v1756, 64
      %v1771 = vpop.permute.xlu0 %1770
      %1772 = vrot.lane.b32.xlu0 %v1757, 64
      %v1773 = vpop.permute.xlu0 %1772
      %1774 = vrot.lane.b32.xlu0 %v1758, 64
      %v1775 = vpop.permute.xlu0 %1774
      %1776 = vrot.lane.b32.xlu0 %v1759, 64
      %v1777 = vpop.permute.xlu0 %1776
      %1784 = vst.msk [vmem:[#allocation3 + $0x8] sm:$0xff] %vm1735, %v1767
      %1785 = vst.msk [vmem:[#allocation3 + $0x28] sm:$0xff] %vm1735, %v1769
      %1786 = vst.msk [vmem:[#allocation3 + $0x48] sm:$0xff] %vm1735, %v1771
      %1787 = vst.msk [vmem:[#allocation3 + $0x68] sm:$0xff] %vm1735, %v1773
      %1788 = vst.msk [vmem:[#allocation3 + $0x88] sm:$0xff] %vm1735, %v1775
      %1789 = vst.msk [vmem:[#allocation3 + $0xa8] sm:$0xff] %vm1735, %v1777
      %v1790 = vld [vmem:[#allocation2 + $0x70] sm:$0xff]
      %v1791 = vld [vmem:[#allocation2 + $0x78] sm:$0xff]
      %v1792 = vld [vmem:[#allocation2 + $0x80] sm:$0xff]
      %v1793 = vld [vmem:[#allocation2 + $0x88] sm:$0xff]
      %v1794 = vld [vmem:[#allocation2 + $0x90] sm:$0xff]
      %v1795 = vld [vmem:[#allocation2 + $0x98] sm:$0xff]
      %1796 = vst.msk [vmem:[#allocation3 + $0x10] sm:$0xff] %vm1622, %v1790
      %1797 = vst.msk [vmem:[#allocation3 + $0x30] sm:$0xff] %vm1622, %v1791
      %1798 = vst.msk [vmem:[#allocation3 + $0x50] sm:$0xff] %vm1622, %v1792
      %1799 = vst.msk [vmem:[#allocation3 + $0x70] sm:$0xff] %vm1622, %v1793
      %1800 = vst.msk [vmem:[#allocation3 + $0x90] sm:$0xff] %vm1622, %v1794
      %1801 = vst.msk [vmem:[#allocation3 + $0xb0] sm:$0xff] %vm1622, %v1795
      %v1802 = vld [vmem:[#allocation2 + $0x78] sm:$0xff]
      %v1803 = vld [vmem:[#allocation2 + $0x80] sm:$0xff]
      %v1804 = vld [vmem:[#allocation2 + $0x88] sm:$0xff]
      %v1805 = vld [vmem:[#allocation2 + $0x90] sm:$0xff]
      %v1806 = vld [vmem:[#allocation2 + $0x98] sm:$0xff]
      %v1807 = vld [vmem:[#allocation2 + $0xa0] sm:$0xff]
      %1814 = vrot.lane.b32.xlu0 %v1802, 64
      %v1815 = vpop.permute.xlu0 %1814
      %1816 = vrot.lane.b32.xlu0 %v1803, 64
      %v1817 = vpop.permute.xlu0 %1816
      %1818 = vrot.lane.b32.xlu0 %v1804, 64
      %v1819 = vpop.permute.xlu0 %1818
      %1820 = vrot.lane.b32.xlu0 %v1805, 64
      %v1821 = vpop.permute.xlu0 %1820
      %1822 = vrot.lane.b32.xlu0 %v1806, 64
      %v1823 = vpop.permute.xlu0 %1822
      %1824 = vrot.lane.b32.xlu0 %v1807, 64
      %v1825 = vpop.permute.xlu0 %1824
      %1832 = vst.msk [vmem:[#allocation3 + $0x10] sm:$0xff] %vm1735, %v1815
      %1833 = vst.msk [vmem:[#allocation3 + $0x30] sm:$0xff] %vm1735, %v1817
      %1834 = vst.msk [vmem:[#allocation3 + $0x50] sm:$0xff] %vm1735, %v1819
      %1835 = vst.msk [vmem:[#allocation3 + $0x70] sm:$0xff] %vm1735, %v1821
      %1836 = vst.msk [vmem:[#allocation3 + $0x90] sm:$0xff] %vm1735, %v1823
      %1837 = vst.msk [vmem:[#allocation3 + $0xb0] sm:$0xff] %vm1735, %v1825
      %v1838 = vld [vmem:[#allocation2 + $0xa8] sm:$0xff]
      %v1839 = vld [vmem:[#allocation2 + $0xb0] sm:$0xff]
      %v1840 = vld [vmem:[#allocation2 + $0xb8] sm:$0xff]
      %v1841 = vld [vmem:[#allocation2 + $0xc0] sm:$0xff]
      %v1842 = vld [vmem:[#allocation2 + $0xc8] sm:$0xff]
      %v1843 = vld [vmem:[#allocation2 + $0xd0] sm:$0xff]
      %1844 = vst.msk [vmem:[#allocation3 + $0x18] sm:$0xff] %vm1622, %v1838
      %1845 = vst.msk [vmem:[#allocation3 + $0x38] sm:$0xff] %vm1622, %v1839
      %1846 = vst.msk [vmem:[#allocation3 + $0x58] sm:$0xff] %vm1622, %v1840
      %1847 = vst.msk [vmem:[#allocation3 + $0x78] sm:$0xff] %vm1622, %v1841
      %1848 = vst.msk [vmem:[#allocation3 + $0x98] sm:$0xff] %vm1622, %v1842
      %1849 = vst.msk [vmem:[#allocation3 + $0xb8] sm:$0xff] %vm1622, %v1843
      %v1850 = vld [vmem:[#allocation2 + $0xb0] sm:$0xff]
      %v1851 = vld [vmem:[#allocation2 + $0xb8] sm:$0xff]
      %v1852 = vld [vmem:[#allocation2 + $0xc0] sm:$0xff]
      %v1853 = vld [vmem:[#allocation2 + $0xc8] sm:$0xff]
      %v1854 = vld [vmem:[#allocation2 + $0xd0] sm:$0xff]
      %v1855 = vld [vmem:[#allocation2 + $0xd8] sm:$0xff]
      %1862 = vrot.lane.b32.xlu0 %v1850, 64
      %v1863 = vpop.permute.xlu0 %1862
      %1864 = vrot.lane.b32.xlu0 %v1851, 64
      %v1865 = vpop.permute.xlu0 %1864
      %1866 = vrot.lane.b32.xlu0 %v1852, 64
      %v1867 = vpop.permute.xlu0 %1866
      %1868 = vrot.lane.b32.xlu0 %v1853, 64
      %v1869 = vpop.permute.xlu0 %1868
      %1870 = vrot.lane.b32.xlu0 %v1854, 64
      %v1871 = vpop.permute.xlu0 %1870
      %1872 = vrot.lane.b32.xlu0 %v1855, 64
      %v1873 = vpop.permute.xlu0 %1872
      %1880 = vst.msk [vmem:[#allocation3 + $0x18] sm:$0xff] %vm1735, %v1863
      %1881 = vst.msk [vmem:[#allocation3 + $0x38] sm:$0xff] %vm1735, %v1865
      %1882 = vst.msk [vmem:[#allocation3 + $0x58] sm:$0xff] %vm1735, %v1867
      %1883 = vst.msk [vmem:[#allocation3 + $0x78] sm:$0xff] %vm1735, %v1869
      %1884 = vst.msk [vmem:[#allocation3 + $0x98] sm:$0xff] %vm1735, %v1871
      %1885 = vst.msk [vmem:[#allocation3 + $0xb8] sm:$0xff] %vm1735, %v1873
      %v1886 = vld [vmem:[#allocation2 + $0x70] sm:$0xff]
      %v1887 = vld [vmem:[#allocation2 + $0x78] sm:$0xff]
      %v1888 = vld [vmem:[#allocation2 + $0x80] sm:$0xff]
      %v1889 = vld [vmem:[#allocation2 + $0x88] sm:$0xff]
      %v1890 = vld [vmem:[#allocation2 + $0x90] sm:$0xff]
      %v1891 = vld [vmem:[#allocation2 + $0x98] sm:$0xff]
      %1892 = vst.msk [vmem:[#allocation3 + $0xc0] sm:$0xff] %vm1622, %v1886
      %1893 = vst.msk [vmem:[#allocation3 + $0xe0] sm:$0xff] %vm1622, %v1887
      %1894 = vst.msk [vmem:[#allocation3 + $0x100] sm:$0xff] %vm1622, %v1888
      %1895 = vst.msk [vmem:[#allocation3 + $0x120] sm:$0xff] %vm1622, %v1889
      %1896 = vst.msk [vmem:[#allocation3 + $0x140] sm:$0xff] %vm1622, %v1890
      %1897 = vst.msk [vmem:[#allocation3 + $0x160] sm:$0xff] %vm1622, %v1891
      %v1898 = vld [vmem:[#allocation2 + $0x78] sm:$0xff]
      %v1899 = vld [vmem:[#allocation2 + $0x80] sm:$0xff]
      %v1900 = vld [vmem:[#allocation2 + $0x88] sm:$0xff]
      %v1901 = vld [vmem:[#allocation2 + $0x90] sm:$0xff]
      %v1902 = vld [vmem:[#allocation2 + $0x98] sm:$0xff]
      %v1903 = vld [vmem:[#allocation2 + $0xa0] sm:$0xff]
      %1910 = vrot.lane.b32.xlu0 %v1898, 64
      %v1911 = vpop.permute.xlu0 %1910
      %1912 = vrot.lane.b32.xlu0 %v1899, 64
      %v1913 = vpop.permute.xlu0 %1912
      %1914 = vrot.lane.b32.xlu0 %v1900, 64
      %v1915 = vpop.permute.xlu0 %1914
      %1916 = vrot.lane.b32.xlu0 %v1901, 64
      %v1917 = vpop.permute.xlu0 %1916
      %1918 = vrot.lane.b32.xlu0 %v1902, 64
      %v1919 = vpop.permute.xlu0 %1918
      %1920 = vrot.lane.b32.xlu0 %v1903, 64
      %v1921 = vpop.permute.xlu0 %1920
      %1928 = vst.msk [vmem:[#allocation3 + $0xc0] sm:$0xff] %vm1735, %v1911
      %1929 = vst.msk [vmem:[#allocation3 + $0xe0] sm:$0xff] %vm1735, %v1913
      %1930 = vst.msk [vmem:[#allocation3 + $0x100] sm:$0xff] %vm1735, %v1915
      %1931 = vst.msk [vmem:[#allocation3 + $0x120] sm:$0xff] %vm1735, %v1917
      %1932 = vst.msk [vmem:[#allocation3 + $0x140] sm:$0xff] %vm1735, %v1919
      %1933 = vst.msk [vmem:[#allocation3 + $0x160] sm:$0xff] %vm1735, %v1921
      %v1934 = vld [vmem:[#allocation2 + $0xa8] sm:$0xff]
      %v1935 = vld [vmem:[#allocation2 + $0xb0] sm:$0xff]
      %v1936 = vld [vmem:[#allocation2 + $0xb8] sm:$0xff]
      %v1937 = vld [vmem:[#allocation2 + $0xc0] sm:$0xff]
      %v1938 = vld [vmem:[#allocation2 + $0xc8] sm:$0xff]
      %v1939 = vld [vmem:[#allocation2 + $0xd0] sm:$0xff]
      %1940 = vst.msk [vmem:[#allocation3 + $0xc8] sm:$0xff] %vm1622, %v1934
      %1941 = vst.msk [vmem:[#allocation3 + $0xe8] sm:$0xff] %vm1622, %v1935
      %1942 = vst.msk [vmem:[#allocation3 + $0x108] sm:$0xff] %vm1622, %v1936
      %1943 = vst.msk [vmem:[#allocation3 + $0x128] sm:$0xff] %vm1622, %v1937
      %1944 = vst.msk [vmem:[#allocation3 + $0x148] sm:$0xff] %vm1622, %v1938
      %1945 = vst.msk [vmem:[#allocation3 + $0x168] sm:$0xff] %vm1622, %v1939
      %v1946 = vld [vmem:[#allocation2 + $0xb0] sm:$0xff]
      %v1947 = vld [vmem:[#allocation2 + $0xb8] sm:$0xff]
      %v1948 = vld [vmem:[#allocation2 + $0xc0] sm:$0xff]
      %v1949 = vld [vmem:[#allocation2 + $0xc8] sm:$0xff]
      %v1950 = vld [vmem:[#allocation2 + $0xd0] sm:$0xff]
      %v1951 = vld [vmem:[#allocation2 + $0xd8] sm:$0xff]
      %1958 = vrot.lane.b32.xlu0 %v1946, 64
      %v1959 = vpop.permute.xlu0 %1958
      %1960 = vrot.lane.b32.xlu0 %v1947, 64
      %v1961 = vpop.permute.xlu0 %1960
      %1962 = vrot.lane.b32.xlu0 %v1948, 64
      %v1963 = vpop.permute.xlu0 %1962
      %1964 = vrot.lane.b32.xlu0 %v1949, 64
      %v1965 = vpop.permute.xlu0 %1964
      %1966 = vrot.lane.b32.xlu0 %v1950, 64
      %v1967 = vpop.permute.xlu0 %1966
      %1968 = vrot.lane.b32.xlu0 %v1951, 64
      %v1969 = vpop.permute.xlu0 %1968
      %1976 = vst.msk [vmem:[#allocation3 + $0xc8] sm:$0xff] %vm1735, %v1959
      %1977 = vst.msk [vmem:[#allocation3 + $0xe8] sm:$0xff] %vm1735, %v1961
      %1978 = vst.msk [vmem:[#allocation3 + $0x108] sm:$0xff] %vm1735, %v1963
      %1979 = vst.msk [vmem:[#allocation3 + $0x128] sm:$0xff] %vm1735, %v1965
      %1980 = vst.msk [vmem:[#allocation3 + $0x148] sm:$0xff] %vm1735, %v1967
      %1981 = vst.msk [vmem:[#allocation3 + $0x168] sm:$0xff] %vm1735, %v1969
      %v1982 = vld [vmem:[#allocation2 + $0xe0] sm:$0xff]
      %v1983 = vld [vmem:[#allocation2 + $0xe8] sm:$0xff]
      %v1984 = vld [vmem:[#allocation2 + $0xf0] sm:$0xff]
      %v1985 = vld [vmem:[#allocation2 + $0xf8] sm:$0xff]
      %v1986 = vld [vmem:[#allocation2 + $0x100] sm:$0xff]
      %v1987 = vld [vmem:[#allocation2 + $0x108] sm:$0xff]
      %1988 = vst.msk [vmem:[#allocation3 + $0xd0] sm:$0xff] %vm1622, %v1982
      %1989 = vst.msk [vmem:[#allocation3 + $0xf0] sm:$0xff] %vm1622, %v1983
      %1990 = vst.msk [vmem:[#allocation3 + $0x110] sm:$0xff] %vm1622, %v1984
      %1991 = vst.msk [vmem:[#allocation3 + $0x130] sm:$0xff] %vm1622, %v1985
      %1992 = vst.msk [vmem:[#allocation3 + $0x150] sm:$0xff] %vm1622, %v1986
      %1993 = vst.msk [vmem:[#allocation3 + $0x170] sm:$0xff] %vm1622, %v1987
      %v1994 = vld [vmem:[#allocation2 + $0xe8] sm:$0xff]
      %v1995 = vld [vmem:[#allocation2 + $0xf0] sm:$0xff]
      %v1996 = vld [vmem:[#allocation2 + $0xf8] sm:$0xff]
      %v1997 = vld [vmem:[#allocation2 + $0x100] sm:$0xff]
      %v1998 = vld [vmem:[#allocation2 + $0x108] sm:$0xff]
      %v1999 = vld [vmem:[#allocation2 + $0x110] sm:$0xff]
      %2006 = vrot.lane.b32.xlu0 %v1994, 64
      %v2007 = vpop.permute.xlu0 %2006
      %2008 = vrot.lane.b32.xlu0 %v1995, 64
      %v2009 = vpop.permute.xlu0 %2008
      %2010 = vrot.lane.b32.xlu0 %v1996, 64
      %v2011 = vpop.permute.xlu0 %2010
      %2012 = vrot.lane.b32.xlu0 %v1997, 64
      %v2013 = vpop.permute.xlu0 %2012
      %2014 = vrot.lane.b32.xlu0 %v1998, 64
      %v2015 = vpop.permute.xlu0 %2014
      %2016 = vrot.lane.b32.xlu0 %v1999, 64
      %v2017 = vpop.permute.xlu0 %2016
      %2024 = vst.msk [vmem:[#allocation3 + $0xd0] sm:$0xff] %vm1735, %v2007
      %2025 = vst.msk [vmem:[#allocation3 + $0xf0] sm:$0xff] %vm1735, %v2009
      %2026 = vst.msk [vmem:[#allocation3 + $0x110] sm:$0xff] %vm1735, %v2011
      %2027 = vst.msk [vmem:[#allocation3 + $0x130] sm:$0xff] %vm1735, %v2013
      %2028 = vst.msk [vmem:[#allocation3 + $0x150] sm:$0xff] %vm1735, %v2015
      %2029 = vst.msk [vmem:[#allocation3 + $0x170] sm:$0xff] %vm1735, %v2017
      %v2030 = vld [vmem:[#allocation2 + $0x118] sm:$0xff]
      %v2031 = vld [vmem:[#allocation2 + $0x120] sm:$0xff]
      %v2032 = vld [vmem:[#allocation2 + $0x128] sm:$0xff]
      %v2033 = vld [vmem:[#allocation2 + $0x130] sm:$0xff]
      %v2034 = vld [vmem:[#allocation2 + $0x138] sm:$0xff]
      %v2035 = vld [vmem:[#allocation2 + $0x140] sm:$0xff]
      %2036 = vst.msk [vmem:[#allocation3 + $0xd8] sm:$0xff] %vm1622, %v2030
      %2037 = vst.msk [vmem:[#allocation3 + $0xf8] sm:$0xff] %vm1622, %v2031
      %2038 = vst.msk [vmem:[#allocation3 + $0x118] sm:$0xff] %vm1622, %v2032
      %2039 = vst.msk [vmem:[#allocation3 + $0x138] sm:$0xff] %vm1622, %v2033
      %2040 = vst.msk [vmem:[#allocation3 + $0x158] sm:$0xff] %vm1622, %v2034
      %2041 = vst.msk [vmem:[#allocation3 + $0x178] sm:$0xff] %vm1622, %v2035
      %v2042 = vld [vmem:[#allocation2 + $0x120] sm:$0xff]
      %v2043 = vld [vmem:[#allocation2 + $0x128] sm:$0xff]
      %v2044 = vld [vmem:[#allocation2 + $0x130] sm:$0xff]
      %v2045 = vld [vmem:[#allocation2 + $0x138] sm:$0xff]
      %v2046 = vld [vmem:[#allocation2 + $0x140] sm:$0xff]
      %v2047 = vld [vmem:[#allocation2 + $0x148] sm:$0xff]
      %2054 = vrot.lane.b32.xlu0 %v2042, 64
      %v2055 = vpop.permute.xlu0 %2054
      %2056 = vrot.lane.b32.xlu0 %v2043, 64
      %v2057 = vpop.permute.xlu0 %2056
      %2058 = vrot.lane.b32.xlu0 %v2044, 64
      %v2059 = vpop.permute.xlu0 %2058
      %2060 = vrot.lane.b32.xlu0 %v2045, 64
      %v2061 = vpop.permute.xlu0 %2060
      %2062 = vrot.lane.b32.xlu0 %v2046, 64
      %v2063 = vpop.permute.xlu0 %2062
      %2064 = vrot.lane.b32.xlu0 %v2047, 64
      %v2065 = vpop.permute.xlu0 %2064
      %2072 = vst.msk [vmem:[#allocation3 + $0xd8] sm:$0xff] %vm1735, %v2055
      %2073 = vst.msk [vmem:[#allocation3 + $0xf8] sm:$0xff] %vm1735, %v2057
      %2074 = vst.msk [vmem:[#allocation3 + $0x118] sm:$0xff] %vm1735, %v2059
      %2075 = vst.msk [vmem:[#allocation3 + $0x138] sm:$0xff] %vm1735, %v2061
      %2076 = vst.msk [vmem:[#allocation3 + $0x158] sm:$0xff] %vm1735, %v2063
      %2077 = vst.msk [vmem:[#allocation3 + $0x178] sm:$0xff] %vm1735, %v2065
      %v2078 = vld [vmem:[#allocation2 + $0xe0] sm:$0xff]
      %v2079 = vld [vmem:[#allocation2 + $0xe8] sm:$0xff]
      %v2080 = vld [vmem:[#allocation2 + $0xf0] sm:$0xff]
      %v2081 = vld [vmem:[#allocation2 + $0xf8] sm:$0xff]
      %v2082 = vld [vmem:[#allocation2 + $0x100] sm:$0xff]
      %v2083 = vld [vmem:[#allocation2 + $0x108] sm:$0xff]
      %2084 = vst.msk [vmem:[#allocation3 + $0x180] sm:$0xff] %vm1622, %v2078
      %2085 = vst.msk [vmem:[#allocation3 + $0x1a0] sm:$0xff] %vm1622, %v2079
      %2086 = vst.msk [vmem:[#allocation3 + $0x1c0] sm:$0xff] %vm1622, %v2080
      %2087 = vst.msk [vmem:[#allocation3 + $0x1e0] sm:$0xff] %vm1622, %v2081
      %2088 = vst.msk [vmem:[#allocation3 + $0x200] sm:$0xff] %vm1622, %v2082
      %2089 = vst.msk [vmem:[#allocation3 + $0x220] sm:$0xff] %vm1622, %v2083
      %v2090 = vld [vmem:[#allocation2 + $0xe8] sm:$0xff]
      %v2091 = vld [vmem:[#allocation2 + $0xf0] sm:$0xff]
      %v2092 = vld [vmem:[#allocation2 + $0xf8] sm:$0xff]
      %v2093 = vld [vmem:[#allocation2 + $0x100] sm:$0xff]
      %v2094 = vld [vmem:[#allocation2 + $0x108] sm:$0xff]
      %v2095 = vld [vmem:[#allocation2 + $0x110] sm:$0xff]
      %2102 = vrot.lane.b32.xlu0 %v2090, 64
      %v2103 = vpop.permute.xlu0 %2102
      %2104 = vrot.lane.b32.xlu0 %v2091, 64
      %v2105 = vpop.permute.xlu0 %2104
      %2106 = vrot.lane.b32.xlu0 %v2092, 64
      %v2107 = vpop.permute.xlu0 %2106
      %2108 = vrot.lane.b32.xlu0 %v2093, 64
      %v2109 = vpop.permute.xlu0 %2108
      %2110 = vrot.lane.b32.xlu0 %v2094, 64
      %v2111 = vpop.permute.xlu0 %2110
      %2112 = vrot.lane.b32.xlu0 %v2095, 64
      %v2113 = vpop.permute.xlu0 %2112
      %2120 = vst.msk [vmem:[#allocation3 + $0x180] sm:$0xff] %vm1735, %v2103
      %2121 = vst.msk [vmem:[#allocation3 + $0x1a0] sm:$0xff] %vm1735, %v2105
      %2122 = vst.msk [vmem:[#allocation3 + $0x1c0] sm:$0xff] %vm1735, %v2107
      %2123 = vst.msk [vmem:[#allocation3 + $0x1e0] sm:$0xff] %vm1735, %v2109
      %2124 = vst.msk [vmem:[#allocation3 + $0x200] sm:$0xff] %vm1735, %v2111
      %2125 = vst.msk [vmem:[#allocation3 + $0x220] sm:$0xff] %vm1735, %v2113
      %v2126 = vld [vmem:[#allocation2 + $0x118] sm:$0xff]
      %v2127 = vld [vmem:[#allocation2 + $0x120] sm:$0xff]
      %v2128 = vld [vmem:[#allocation2 + $0x128] sm:$0xff]
      %v2129 = vld [vmem:[#allocation2 + $0x130] sm:$0xff]
      %v2130 = vld [vmem:[#allocation2 + $0x138] sm:$0xff]
      %v2131 = vld [vmem:[#allocation2 + $0x140] sm:$0xff]
      %2132 = vst.msk [vmem:[#allocation3 + $0x188] sm:$0xff] %vm1622, %v2126
      %2133 = vst.msk [vmem:[#allocation3 + $0x1a8] sm:$0xff] %vm1622, %v2127
      %2134 = vst.msk [vmem:[#allocation3 + $0x1c8] sm:$0xff] %vm1622, %v2128
      %2135 = vst.msk [vmem:[#allocation3 + $0x1e8] sm:$0xff] %vm1622, %v2129
      %2136 = vst.msk [vmem:[#allocation3 + $0x208] sm:$0xff] %vm1622, %v2130
      %2137 = vst.msk [vmem:[#allocation3 + $0x228] sm:$0xff] %vm1622, %v2131
      %v2138 = vld [vmem:[#allocation2 + $0x120] sm:$0xff]
      %v2139 = vld [vmem:[#allocation2 + $0x128] sm:$0xff]
      %v2140 = vld [vmem:[#allocation2 + $0x130] sm:$0xff]
      %v2141 = vld [vmem:[#allocation2 + $0x138] sm:$0xff]
      %v2142 = vld [vmem:[#allocation2 + $0x140] sm:$0xff]
      %v2143 = vld [vmem:[#allocation2 + $0x148] sm:$0xff]
      %2150 = vrot.lane.b32.xlu0 %v2138, 64
      %v2151 = vpop.permute.xlu0 %2150
      %2152 = vrot.lane.b32.xlu0 %v2139, 64
      %v2153 = vpop.permute.xlu0 %2152
      %2154 = vrot.lane.b32.xlu0 %v2140, 64
      %v2155 = vpop.permute.xlu0 %2154
      %2156 = vrot.lane.b32.xlu0 %v2141, 64
      %v2157 = vpop.permute.xlu0 %2156
      %2158 = vrot.lane.b32.xlu0 %v2142, 64
      %v2159 = vpop.permute.xlu0 %2158
      %2160 = vrot.lane.b32.xlu0 %v2143, 64
      %v2161 = vpop.permute.xlu0 %2160
      %2168 = vst.msk [vmem:[#allocation3 + $0x188] sm:$0xff] %vm1735, %v2151
      %2169 = vst.msk [vmem:[#allocation3 + $0x1a8] sm:$0xff] %vm1735, %v2153
      %2170 = vst.msk [vmem:[#allocation3 + $0x1c8] sm:$0xff] %vm1735, %v2155
      %2171 = vst.msk [vmem:[#allocation3 + $0x1e8] sm:$0xff] %vm1735, %v2157
      %2172 = vst.msk [vmem:[#allocation3 + $0x208] sm:$0xff] %vm1735, %v2159
      %2173 = vst.msk [vmem:[#allocation3 + $0x228] sm:$0xff] %vm1735, %v2161
      %v2174 = vld [vmem:[#allocation2 + $0x150] sm:$0xff]
      %v2175 = vld [vmem:[#allocation2 + $0x158] sm:$0xff]
      %v2176 = vld [vmem:[#allocation2 + $0x160] sm:$0xff]
      %v2177 = vld [vmem:[#allocation2 + $0x168] sm:$0xff]
      %v2178 = vld [vmem:[#allocation2 + $0x170] sm:$0xff]
      %v2179 = vld [vmem:[#allocation2 + $0x178] sm:$0xff]
      %2180 = vst.msk [vmem:[#allocation3 + $0x190] sm:$0xff] %vm1622, %v2174
      %2181 = vst.msk [vmem:[#allocation3 + $0x1b0] sm:$0xff] %vm1622, %v2175
      %2182 = vst.msk [vmem:[#allocation3 + $0x1d0] sm:$0xff] %vm1622, %v2176
      %2183 = vst.msk [vmem:[#allocation3 + $0x1f0] sm:$0xff] %vm1622, %v2177
      %2184 = vst.msk [vmem:[#allocation3 + $0x210] sm:$0xff] %vm1622, %v2178
      %2185 = vst.msk [vmem:[#allocation3 + $0x230] sm:$0xff] %vm1622, %v2179
      %v2186 = vld [vmem:[#allocation2 + $0x158] sm:$0xff]
      %v2187 = vld [vmem:[#allocation2 + $0x160] sm:$0xff]
      %v2188 = vld [vmem:[#allocation2 + $0x168] sm:$0xff]
      %v2189 = vld [vmem:[#allocation2 + $0x170] sm:$0xff]
      %v2190 = vld [vmem:[#allocation2 + $0x178] sm:$0xff]
      %v2191 = vld [vmem:[#allocation2 + $0x180] sm:$0xff]
      %2198 = vrot.lane.b32.xlu0 %v2186, 64
      %v2199 = vpop.permute.xlu0 %2198
      %2200 = vrot.lane.b32.xlu0 %v2187, 64
      %v2201 = vpop.permute.xlu0 %2200
      %2202 = vrot.lane.b32.xlu0 %v2188, 64
      %v2203 = vpop.permute.xlu0 %2202
      %2204 = vrot.lane.b32.xlu0 %v2189, 64
      %v2205 = vpop.permute.xlu0 %2204
      %2206 = vrot.lane.b32.xlu0 %v2190, 64
      %v2207 = vpop.permute.xlu0 %2206
      %2208 = vrot.lane.b32.xlu0 %v2191, 64
      %v2209 = vpop.permute.xlu0 %2208
      %2216 = vst.msk [vmem:[#allocation3 + $0x190] sm:$0xff] %vm1735, %v2199
      %2217 = vst.msk [vmem:[#allocation3 + $0x1b0] sm:$0xff] %vm1735, %v2201
      %2218 = vst.msk [vmem:[#allocation3 + $0x1d0] sm:$0xff] %vm1735, %v2203
      %2219 = vst.msk [vmem:[#allocation3 + $0x1f0] sm:$0xff] %vm1735, %v2205
      %2220 = vst.msk [vmem:[#allocation3 + $0x210] sm:$0xff] %vm1735, %v2207
      %2221 = vst.msk [vmem:[#allocation3 + $0x230] sm:$0xff] %vm1735, %v2209
      %v2222 = vld [vmem:[#allocation2 + $0x188] sm:$0xff]
      %v2223 = vld [vmem:[#allocation2 + $0x190] sm:$0xff]
      %v2224 = vld [vmem:[#allocation2 + $0x198] sm:$0xff]
      %v2225 = vld [vmem:[#allocation2 + $0x1a0] sm:$0xff]
      %v2226 = vld [vmem:[#allocation2 + $0x1a8] sm:$0xff]
      %v2227 = vld [vmem:[#allocation2 + $0x1b0] sm:$0xff]
      %2228 = vst.msk [vmem:[#allocation3 + $0x198] sm:$0xff] %vm1622, %v2222
      %2229 = vst.msk [vmem:[#allocation3 + $0x1b8] sm:$0xff] %vm1622, %v2223
      %2230 = vst.msk [vmem:[#allocation3 + $0x1d8] sm:$0xff] %vm1622, %v2224
      %2231 = vst.msk [vmem:[#allocation3 + $0x1f8] sm:$0xff] %vm1622, %v2225
      %2232 = vst.msk [vmem:[#allocation3 + $0x218] sm:$0xff] %vm1622, %v2226
      %2233 = vst.msk [vmem:[#allocation3 + $0x238] sm:$0xff] %vm1622, %v2227
      %v2234 = vld [vmem:[#allocation2 + $0x190] sm:$0xff]
      %v2235 = vld [vmem:[#allocation2 + $0x198] sm:$0xff]
      %v2236 = vld [vmem:[#allocation2 + $0x1a0] sm:$0xff]
      %v2237 = vld [vmem:[#allocation2 + $0x1a8] sm:$0xff]
      %v2238 = vld [vmem:[#allocation2 + $0x1b0] sm:$0xff]
      %v2239 = vld [vmem:[#allocation2 + $0x1b8] sm:$0xff]
      %2246 = vrot.lane.b32.xlu0 %v2234, 64
      %v2247 = vpop.permute.xlu0 %2246
      %2248 = vrot.lane.b32.xlu0 %v2235, 64
      %v2249 = vpop.permute.xlu0 %2248
      %2250 = vrot.lane.b32.xlu0 %v2236, 64
      %v2251 = vpop.permute.xlu0 %2250
      %2252 = vrot.lane.b32.xlu0 %v2237, 64
      %v2253 = vpop.permute.xlu0 %2252
      %2254 = vrot.lane.b32.xlu0 %v2238, 64
      %v2255 = vpop.permute.xlu0 %2254
      %2256 = vrot.lane.b32.xlu0 %v2239, 64
      %v2257 = vpop.permute.xlu0 %2256
      %2264 = vst.msk [vmem:[#allocation3 + $0x198] sm:$0xff] %vm1735, %v2247
      %2265 = vst.msk [vmem:[#allocation3 + $0x1b8] sm:$0xff] %vm1735, %v2249
      %2266 = vst.msk [vmem:[#allocation3 + $0x1d8] sm:$0xff] %vm1735, %v2251
      %2267 = vst.msk [vmem:[#allocation3 + $0x1f8] sm:$0xff] %vm1735, %v2253
      %2268 = vst.msk [vmem:[#allocation3 + $0x218] sm:$0xff] %vm1735, %v2255
      %2269 = vst.msk [vmem:[#allocation3 + $0x238] sm:$0xff] %vm1735, %v2257
      %v2270 = vld [vmem:[#allocation2 + $0x150] sm:$0xff]
      %v2271 = vld [vmem:[#allocation2 + $0x158] sm:$0xff]
      %v2272 = vld [vmem:[#allocation2 + $0x160] sm:$0xff]
      %v2273 = vld [vmem:[#allocation2 + $0x168] sm:$0xff]
      %v2274 = vld [vmem:[#allocation2 + $0x170] sm:$0xff]
      %v2275 = vld [vmem:[#allocation2 + $0x178] sm:$0xff]
      %2276 = vst.msk [vmem:[#allocation3 + $0x240] sm:$0xff] %vm1622, %v2270
      %2277 = vst.msk [vmem:[#allocation3 + $0x260] sm:$0xff] %vm1622, %v2271
      %2278 = vst.msk [vmem:[#allocation3 + $0x280] sm:$0xff] %vm1622, %v2272
      %2279 = vst.msk [vmem:[#allocation3 + $0x2a0] sm:$0xff] %vm1622, %v2273
      %2280 = vst.msk [vmem:[#allocation3 + $0x2c0] sm:$0xff] %vm1622, %v2274
      %2281 = vst.msk [vmem:[#allocation3 + $0x2e0] sm:$0xff] %vm1622, %v2275
      %v2282 = vld [vmem:[#allocation2 + $0x158] sm:$0xff]
      %v2283 = vld [vmem:[#allocation2 + $0x160] sm:$0xff]
      %v2284 = vld [vmem:[#allocation2 + $0x168] sm:$0xff]
      %v2285 = vld [vmem:[#allocation2 + $0x170] sm:$0xff]
      %v2286 = vld [vmem:[#allocation2 + $0x178] sm:$0xff]
      %v2287 = vld [vmem:[#allocation2 + $0x180] sm:$0xff]
      %2294 = vrot.lane.b32.xlu0 %v2282, 64
      %v2295 = vpop.permute.xlu0 %2294
      %2296 = vrot.lane.b32.xlu0 %v2283, 64
      %v2297 = vpop.permute.xlu0 %2296
      %2298 = vrot.lane.b32.xlu0 %v2284, 64
      %v2299 = vpop.permute.xlu0 %2298
      %2300 = vrot.lane.b32.xlu0 %v2285, 64
      %v2301 = vpop.permute.xlu0 %2300
      %2302 = vrot.lane.b32.xlu0 %v2286, 64
      %v2303 = vpop.permute.xlu0 %2302
      %2304 = vrot.lane.b32.xlu0 %v2287, 64
      %v2305 = vpop.permute.xlu0 %2304
      %2312 = vst.msk [vmem:[#allocation3 + $0x240] sm:$0xff] %vm1735, %v2295
      %2313 = vst.msk [vmem:[#allocation3 + $0x260] sm:$0xff] %vm1735, %v2297
      %2314 = vst.msk [vmem:[#allocation3 + $0x280] sm:$0xff] %vm1735, %v2299
      %2315 = vst.msk [vmem:[#allocation3 + $0x2a0] sm:$0xff] %vm1735, %v2301
      %2316 = vst.msk [vmem:[#allocation3 + $0x2c0] sm:$0xff] %vm1735, %v2303
      %2317 = vst.msk [vmem:[#allocation3 + $0x2e0] sm:$0xff] %vm1735, %v2305
      %v2318 = vld [vmem:[#allocation2 + $0x188] sm:$0xff]
      %v2319 = vld [vmem:[#allocation2 + $0x190] sm:$0xff]
      %v2320 = vld [vmem:[#allocation2 + $0x198] sm:$0xff]
      %v2321 = vld [vmem:[#allocation2 + $0x1a0] sm:$0xff]
      %v2322 = vld [vmem:[#allocation2 + $0x1a8] sm:$0xff]
      %v2323 = vld [vmem:[#allocation2 + $0x1b0] sm:$0xff]
      %2324 = vst.msk [vmem:[#allocation3 + $0x248] sm:$0xff] %vm1622, %v2318
      %2325 = vst.msk [vmem:[#allocation3 + $0x268] sm:$0xff] %vm1622, %v2319
      %2326 = vst.msk [vmem:[#allocation3 + $0x288] sm:$0xff] %vm1622, %v2320
      %2327 = vst.msk [vmem:[#allocation3 + $0x2a8] sm:$0xff] %vm1622, %v2321
      %2328 = vst.msk [vmem:[#allocation3 + $0x2c8] sm:$0xff] %vm1622, %v2322
      %2329 = vst.msk [vmem:[#allocation3 + $0x2e8] sm:$0xff] %vm1622, %v2323
      %v2330 = vld [vmem:[#allocation2 + $0x190] sm:$0xff]
      %v2331 = vld [vmem:[#allocation2 + $0x198] sm:$0xff]
      %v2332 = vld [vmem:[#allocation2 + $0x1a0] sm:$0xff]
      %v2333 = vld [vmem:[#allocation2 + $0x1a8] sm:$0xff]
      %v2334 = vld [vmem:[#allocation2 + $0x1b0] sm:$0xff]
      %v2335 = vld [vmem:[#allocation2 + $0x1b8] sm:$0xff]
      %2342 = vrot.lane.b32.xlu0 %v2330, 64
      %v2343 = vpop.permute.xlu0 %2342
      %2344 = vrot.lane.b32.xlu0 %v2331, 64
      %v2345 = vpop.permute.xlu0 %2344
      %2346 = vrot.lane.b32.xlu0 %v2332, 64
      %v2347 = vpop.permute.xlu0 %2346
      %2348 = vrot.lane.b32.xlu0 %v2333, 64
      %v2349 = vpop.permute.xlu0 %2348
      %2350 = vrot.lane.b32.xlu0 %v2334, 64
      %v2351 = vpop.permute.xlu0 %2350
      %2352 = vrot.lane.b32.xlu0 %v2335, 64
      %v2353 = vpop.permute.xlu0 %2352
      %2360 = vst.msk [vmem:[#allocation3 + $0x248] sm:$0xff] %vm1735, %v2343
      %2361 = vst.msk [vmem:[#allocation3 + $0x268] sm:$0xff] %vm1735, %v2345
      %2362 = vst.msk [vmem:[#allocation3 + $0x288] sm:$0xff] %vm1735, %v2347
      %2363 = vst.msk [vmem:[#allocation3 + $0x2a8] sm:$0xff] %vm1735, %v2349
      %2364 = vst.msk [vmem:[#allocation3 + $0x2c8] sm:$0xff] %vm1735, %v2351
      %2365 = vst.msk [vmem:[#allocation3 + $0x2e8] sm:$0xff] %vm1735, %v2353
      %v2366 = vld [vmem:[#allocation2 + $0x1c0] sm:$0xff]
      %v2367 = vld [vmem:[#allocation2 + $0x1c8] sm:$0xff]
      %v2368 = vld [vmem:[#allocation2 + $0x1d0] sm:$0xff]
      %v2369 = vld [vmem:[#allocation2 + $0x1d8] sm:$0xff]
      %v2370 = vld [vmem:[#allocation2 + $0x1e0] sm:$0xff]
      %v2371 = vld [vmem:[#allocation2 + $0x1e8] sm:$0xff]
      %2372 = vst.msk [vmem:[#allocation3 + $0x250] sm:$0xff] %vm1622, %v2366
      %2373 = vst.msk [vmem:[#allocation3 + $0x270] sm:$0xff] %vm1622, %v2367
      %2374 = vst.msk [vmem:[#allocation3 + $0x290] sm:$0xff] %vm1622, %v2368
      %2375 = vst.msk [vmem:[#allocation3 + $0x2b0] sm:$0xff] %vm1622, %v2369
      %2376 = vst.msk [vmem:[#allocation3 + $0x2d0] sm:$0xff] %vm1622, %v2370
      %2377 = vst.msk [vmem:[#allocation3 + $0x2f0] sm:$0xff] %vm1622, %v2371
      %v2378 = vld [vmem:[#allocation2 + $0x1c8] sm:$0xff]
      %v2379 = vld [vmem:[#allocation2 + $0x1d0] sm:$0xff]
      %v2380 = vld [vmem:[#allocation2 + $0x1d8] sm:$0xff]
      %v2381 = vld [vmem:[#allocation2 + $0x1e0] sm:$0xff]
      %v2382 = vld [vmem:[#allocation2 + $0x1e8] sm:$0xff]
      %v2383 = vld [vmem:[#allocation2 + $0x1f0] sm:$0xff]
      %2390 = vrot.lane.b32.xlu0 %v2378, 64
      %v2391 = vpop.permute.xlu0 %2390
      %2392 = vrot.lane.b32.xlu0 %v2379, 64
      %v2393 = vpop.permute.xlu0 %2392
      %2394 = vrot.lane.b32.xlu0 %v2380, 64
      %v2395 = vpop.permute.xlu0 %2394
      %2396 = vrot.lane.b32.xlu0 %v2381, 64
      %v2397 = vpop.permute.xlu0 %2396
      %2398 = vrot.lane.b32.xlu0 %v2382, 64
      %v2399 = vpop.permute.xlu0 %2398
      %2400 = vrot.lane.b32.xlu0 %v2383, 64
      %v2401 = vpop.permute.xlu0 %2400
      %2408 = vst.msk [vmem:[#allocation3 + $0x250] sm:$0xff] %vm1735, %v2391
      %2409 = vst.msk [vmem:[#allocation3 + $0x270] sm:$0xff] %vm1735, %v2393
      %2410 = vst.msk [vmem:[#allocation3 + $0x290] sm:$0xff] %vm1735, %v2395
      %2411 = vst.msk [vmem:[#allocation3 + $0x2b0] sm:$0xff] %vm1735, %v2397
      %2412 = vst.msk [vmem:[#allocation3 + $0x2d0] sm:$0xff] %vm1735, %v2399
      %2413 = vst.msk [vmem:[#allocation3 + $0x2f0] sm:$0xff] %vm1735, %v2401
      %v2414 = vld [vmem:[#allocation2 + $0x1f8] sm:$0xff]
      %v2415 = vld [vmem:[#allocation2 + $0x200] sm:$0xff]
      %v2416 = vld [vmem:[#allocation2 + $0x208] sm:$0xff]
      %v2417 = vld [vmem:[#allocation2 + $0x210] sm:$0xff]
      %v2418 = vld [vmem:[#allocation2 + $0x218] sm:$0xff]
      %v2419 = vld [vmem:[#allocation2 + $0x220] sm:$0xff]
      %2420 = vst.msk [vmem:[#allocation3 + $0x258] sm:$0xff] %vm1622, %v2414
      %2421 = vst.msk [vmem:[#allocation3 + $0x278] sm:$0xff] %vm1622, %v2415
      %2422 = vst.msk [vmem:[#allocation3 + $0x298] sm:$0xff] %vm1622, %v2416
      %2423 = vst.msk [vmem:[#allocation3 + $0x2b8] sm:$0xff] %vm1622, %v2417
      %2424 = vst.msk [vmem:[#allocation3 + $0x2d8] sm:$0xff] %vm1622, %v2418
      %2425 = vst.msk [vmem:[#allocation3 + $0x2f8] sm:$0xff] %vm1622, %v2419
      %v2426 = vld [vmem:[#allocation2 + $0x200] sm:$0xff]
      %v2427 = vld [vmem:[#allocation2 + $0x208] sm:$0xff]
      %v2428 = vld [vmem:[#allocation2 + $0x210] sm:$0xff]
      %v2429 = vld [vmem:[#allocation2 + $0x218] sm:$0xff]
      %v2430 = vld [vmem:[#allocation2 + $0x220] sm:$0xff]
      %v2431 = vld [vmem:[#allocation2 + $0x228] sm:$0xff]
      %2438 = vrot.lane.b32.xlu0 %v2426, 64
      %v2439 = vpop.permute.xlu0 %2438
      %2440 = vrot.lane.b32.xlu0 %v2427, 64
      %v2441 = vpop.permute.xlu0 %2440
      %2442 = vrot.lane.b32.xlu0 %v2428, 64
      %v2443 = vpop.permute.xlu0 %2442
      %2444 = vrot.lane.b32.xlu0 %v2429, 64
      %v2445 = vpop.permute.xlu0 %2444
      %2446 = vrot.lane.b32.xlu0 %v2430, 64
      %v2447 = vpop.permute.xlu0 %2446
      %2448 = vrot.lane.b32.xlu0 %v2431, 64
      %v2449 = vpop.permute.xlu0 %2448
      %2456 = vst.msk [vmem:[#allocation3 + $0x258] sm:$0xff] %vm1735, %v2439
      %2457 = vst.msk [vmem:[#allocation3 + $0x278] sm:$0xff] %vm1735, %v2441
      %2458 = vst.msk [vmem:[#allocation3 + $0x298] sm:$0xff] %vm1735, %v2443
      %2459 = vst.msk [vmem:[#allocation3 + $0x2b8] sm:$0xff] %vm1735, %v2445
      %2460 = vst.msk [vmem:[#allocation3 + $0x2d8] sm:$0xff] %vm1735, %v2447
      %2461 = vst.msk [vmem:[#allocation3 + $0x2f8] sm:$0xff] %vm1735, %v2449
      %v2462 = vld [vmem:[#allocation3] sm:$0xff]
      %v2463 = vld [vmem:[#allocation3 + $0x8] sm:$0xff]
      %v2464 = vld [vmem:[#allocation3 + $0x10] sm:$0xff]
      %v2465 = vld [vmem:[#allocation3 + $0x18] sm:$0xff]
      %v2466 = vld [vmem:[#allocation3 + $0x20] sm:$0xff]
      %v2467 = vld [vmem:[#allocation3 + $0x28] sm:$0xff]
      %v2468 = vld [vmem:[#allocation3 + $0x30] sm:$0xff]
      %v2469 = vld [vmem:[#allocation3 + $0x38] sm:$0xff]
      %v2470 = vld [vmem:[#allocation3 + $0x40] sm:$0xff]
      %v2471 = vld [vmem:[#allocation3 + $0x48] sm:$0xff]
      %v2472 = vld [vmem:[#allocation3 + $0x50] sm:$0xff]
      %v2473 = vld [vmem:[#allocation3 + $0x58] sm:$0xff]
      %v2474 = vld [vmem:[#allocation3 + $0x60] sm:$0xff]
      %v2475 = vld [vmem:[#allocation3 + $0x68] sm:$0xff]
      %v2476 = vld [vmem:[#allocation3 + $0x70] sm:$0xff]
      %v2477 = vld [vmem:[#allocation3 + $0x78] sm:$0xff]
      %v2478 = vld [vmem:[#allocation3 + $0x80] sm:$0xff]
      %v2479 = vld [vmem:[#allocation3 + $0x88] sm:$0xff]
      %v2480 = vld [vmem:[#allocation3 + $0x90] sm:$0xff]
      %v2481 = vld [vmem:[#allocation3 + $0x98] sm:$0xff]
      %v2482 = vld [vmem:[#allocation3 + $0xa0] sm:$0xff]
      %v2483 = vld [vmem:[#allocation3 + $0xa8] sm:$0xff]
      %v2484 = vld [vmem:[#allocation3 + $0xb0] sm:$0xff]
      %v2485 = vld [vmem:[#allocation3 + $0xb8] sm:$0xff]
      %v2486 = vld [vmem:[#allocation3 + $0xc0] sm:$0xff]
      %v2487 = vld [vmem:[#allocation3 + $0xc8] sm:$0xff]
      %v2488 = vld [vmem:[#allocation3 + $0xd0] sm:$0xff]
      %v2489 = vld [vmem:[#allocation3 + $0xd8] sm:$0xff]
      %v2490 = vld [vmem:[#allocation3 + $0xe0] sm:$0xff]
      %v2491 = vld [vmem:[#allocation3 + $0xe8] sm:$0xff]
      %v2492 = vld [vmem:[#allocation3 + $0xf0] sm:$0xff]
      %v2493 = vld [vmem:[#allocation3 + $0xf8] sm:$0xff]
      %v2494 = vld [vmem:[#allocation3 + $0x100] sm:$0xff]
      %v2495 = vld [vmem:[#allocation3 + $0x108] sm:$0xff]
      %v2496 = vld [vmem:[#allocation3 + $0x110] sm:$0xff]
      %v2497 = vld [vmem:[#allocation3 + $0x118] sm:$0xff]
      %v2498 = vld [vmem:[#allocation3 + $0x120] sm:$0xff]
      %v2499 = vld [vmem:[#allocation3 + $0x128] sm:$0xff]
      %v2500 = vld [vmem:[#allocation3 + $0x130] sm:$0xff]
      %v2501 = vld [vmem:[#allocation3 + $0x138] sm:$0xff]
      %v2502 = vld [vmem:[#allocation3 + $0x140] sm:$0xff]
      %v2503 = vld [vmem:[#allocation3 + $0x148] sm:$0xff]
      %v2504 = vld [vmem:[#allocation3 + $0x150] sm:$0xff]
      %v2505 = vld [vmem:[#allocation3 + $0x158] sm:$0xff]
      %v2506 = vld [vmem:[#allocation3 + $0x160] sm:$0xff]
      %v2507 = vld [vmem:[#allocation3 + $0x168] sm:$0xff]
      %v2508 = vld [vmem:[#allocation3 + $0x170] sm:$0xff]
      %v2509 = vld [vmem:[#allocation3 + $0x178] sm:$0xff]
      %v2510 = vld [vmem:[#allocation3 + $0x180] sm:$0xff]
      %v2511 = vld [vmem:[#allocation3 + $0x188] sm:$0xff]
      %v2512 = vld [vmem:[#allocation3 + $0x190] sm:$0xff]
      %v2513 = vld [vmem:[#allocation3 + $0x198] sm:$0xff]
      %v2514 = vld [vmem:[#allocation3 + $0x1a0] sm:$0xff]
      %v2515 = vld [vmem:[#allocation3 + $0x1a8] sm:$0xff]
      %v2516 = vld [vmem:[#allocation3 + $0x1b0] sm:$0xff]
      %v2517 = vld [vmem:[#allocation3 + $0x1b8] sm:$0xff]
      %v2518 = vld [vmem:[#allocation3 + $0x1c0] sm:$0xff]
      %v2519 = vld [vmem:[#allocation3 + $0x1c8] sm:$0xff]
      %v2520 = vld [vmem:[#allocation3 + $0x1d0] sm:$0xff]
      %v2521 = vld [vmem:[#allocation3 + $0x1d8] sm:$0xff]
      %v2522 = vld [vmem:[#allocation3 + $0x1e0] sm:$0xff]
      %v2523 = vld [vmem:[#allocation3 + $0x1e8] sm:$0xff]
      %v2524 = vld [vmem:[#allocation3 + $0x1f0] sm:$0xff]
      %v2525 = vld [vmem:[#allocation3 + $0x1f8] sm:$0xff]
      %v2526 = vld [vmem:[#allocation3 + $0x200] sm:$0xff]
      %v2527 = vld [vmem:[#allocation3 + $0x208] sm:$0xff]
      %v2528 = vld [vmem:[#allocation3 + $0x210] sm:$0xff]
      %v2529 = vld [vmem:[#allocation3 + $0x218] sm:$0xff]
      %v2530 = vld [vmem:[#allocation3 + $0x220] sm:$0xff]
      %v2531 = vld [vmem:[#allocation3 + $0x228] sm:$0xff]
      %v2532 = vld [vmem:[#allocation3 + $0x230] sm:$0xff]
      %v2533 = vld [vmem:[#allocation3 + $0x238] sm:$0xff]
      %v2534 = vld [vmem:[#allocation3 + $0x240] sm:$0xff]
      %v2535 = vld [vmem:[#allocation3 + $0x248] sm:$0xff]
      %v2536 = vld [vmem:[#allocation3 + $0x250] sm:$0xff]
      %v2537 = vld [vmem:[#allocation3 + $0x258] sm:$0xff]
      %v2538 = vld [vmem:[#allocation3 + $0x260] sm:$0xff]
      %v2539 = vld [vmem:[#allocation3 + $0x268] sm:$0xff]
      %v2540 = vld [vmem:[#allocation3 + $0x270] sm:$0xff]
      %v2541 = vld [vmem:[#allocation3 + $0x278] sm:$0xff]
      %v2542 = vld [vmem:[#allocation3 + $0x280] sm:$0xff]
      %v2543 = vld [vmem:[#allocation3 + $0x288] sm:$0xff]
      %v2544 = vld [vmem:[#allocation3 + $0x290] sm:$0xff]
      %v2545 = vld [vmem:[#allocation3 + $0x298] sm:$0xff]
      %v2546 = vld [vmem:[#allocation3 + $0x2a0] sm:$0xff]
      %v2547 = vld [vmem:[#allocation3 + $0x2a8] sm:$0xff]
      %v2548 = vld [vmem:[#allocation3 + $0x2b0] sm:$0xff]
      %v2549 = vld [vmem:[#allocation3 + $0x2b8] sm:$0xff]
      %v2550 = vld [vmem:[#allocation3 + $0x2c0] sm:$0xff]
      %v2551 = vld [vmem:[#allocation3 + $0x2c8] sm:$0xff]
      %v2552 = vld [vmem:[#allocation3 + $0x2d0] sm:$0xff]
      %v2553 = vld [vmem:[#allocation3 + $0x2d8] sm:$0xff]
      %v2554 = vld [vmem:[#allocation3 + $0x2e0] sm:$0xff]
      %v2555 = vld [vmem:[#allocation3 + $0x2e8] sm:$0xff]
      %v2556 = vld [vmem:[#allocation3 + $0x2f0] sm:$0xff]
      %v2557 = vld [vmem:[#allocation3 + $0x2f8] sm:$0xff]
      %v2558 = vld [vmem:[%s3] sm:$0xff]
      %v2559 = vld [vmem:[%s3 + $0x8] sm:$0xff]
      %v2560 = vld [vmem:[%s3 + $0x10] sm:$0xff]
      %v2561 = vld [vmem:[%s3 + $0x18] sm:$0xff]
      %v2562 = vld [vmem:[%s3 + $0x20] sm:$0xff]
      %v2563 = vld [vmem:[%s3 + $0x28] sm:$0xff]
      %v2564 = vld [vmem:[%s3 + $0x30] sm:$0xff]
      %v2565 = vld [vmem:[%s3 + $0x38] sm:$0xff]
      %v2566 = vld [vmem:[%s3 + $0x40] sm:$0xff]
      %v2567 = vld [vmem:[%s3 + $0x48] sm:$0xff]
      %v2568 = vld [vmem:[%s3 + $0x50] sm:$0xff]
      %v2569 = vld [vmem:[%s3 + $0x58] sm:$0xff]
      %v2570 = vld [vmem:[%s3 + $0x60] sm:$0xff]
      %v2571 = vld [vmem:[%s3 + $0x68] sm:$0xff]
      %v2572 = vld [vmem:[%s3 + $0x70] sm:$0xff]
      %v2573 = vld [vmem:[%s3 + $0x78] sm:$0xff]
      %v2574 = vld [vmem:[%s3 + $0x80] sm:$0xff]
      %v2575 = vld [vmem:[%s3 + $0x88] sm:$0xff]
      %v2576 = vld [vmem:[%s3 + $0x90] sm:$0xff]
      %v2577 = vld [vmem:[%s3 + $0x98] sm:$0xff]
      %v2578 = vld [vmem:[%s3 + $0xa0] sm:$0xff]
      %v2579 = vld [vmem:[%s3 + $0xa8] sm:$0xff]
      %v2580 = vld [vmem:[%s3 + $0xb0] sm:$0xff]
      %v2581 = vld [vmem:[%s3 + $0xb8] sm:$0xff]
      %v2582 = vld [vmem:[%s3 + $0xc0] sm:$0xff]
      %v2583 = vld [vmem:[%s3 + $0xc8] sm:$0xff]
      %v2584 = vld [vmem:[%s3 + $0xd0] sm:$0xff]
      %v2585 = vld [vmem:[%s3 + $0xd8] sm:$0xff]
      %v2586 = vld [vmem:[%s3 + $0xe0] sm:$0xff]
      %v2587 = vld [vmem:[%s3 + $0xe8] sm:$0xff]
      %v2588 = vld [vmem:[%s3 + $0xf0] sm:$0xff]
      %v2589 = vld [vmem:[%s3 + $0xf8] sm:$0xff]
      %v2590 = vld [vmem:[%s3 + $0x100] sm:$0xff]
      %v2591 = vld [vmem:[%s3 + $0x108] sm:$0xff]
      %v2592 = vld [vmem:[%s3 + $0x110] sm:$0xff]
      %v2593 = vld [vmem:[%s3 + $0x118] sm:$0xff]
      %v2594 = vld [vmem:[%s3 + $0x120] sm:$0xff]
      %v2595 = vld [vmem:[%s3 + $0x128] sm:$0xff]
      %v2596 = vld [vmem:[%s3 + $0x130] sm:$0xff]
      %v2597 = vld [vmem:[%s3 + $0x138] sm:$0xff]
      %v2598 = vld [vmem:[%s3 + $0x140] sm:$0xff]
      %v2599 = vld [vmem:[%s3 + $0x148] sm:$0xff]
      %v2600 = vld [vmem:[%s3 + $0x150] sm:$0xff]
      %v2601 = vld [vmem:[%s3 + $0x158] sm:$0xff]
      %v2602 = vld [vmem:[%s3 + $0x160] sm:$0xff]
      %v2603 = vld [vmem:[%s3 + $0x168] sm:$0xff]
      %v2604 = vld [vmem:[%s3 + $0x170] sm:$0xff]
      %v2605 = vld [vmem:[%s3 + $0x178] sm:$0xff]
      %v2606 = vld [vmem:[%s3 + $0x180] sm:$0xff]
      %v2607 = vld [vmem:[%s3 + $0x188] sm:$0xff]
      %v2608 = vld [vmem:[%s3 + $0x190] sm:$0xff]
      %v2609 = vld [vmem:[%s3 + $0x198] sm:$0xff]
      %v2610 = vld [vmem:[%s3 + $0x1a0] sm:$0xff]
      %v2611 = vld [vmem:[%s3 + $0x1a8] sm:$0xff]
      %v2612 = vld [vmem:[%s3 + $0x1b0] sm:$0xff]
      %v2613 = vld [vmem:[%s3 + $0x1b8] sm:$0xff]
      %v2614 = vld [vmem:[%s3 + $0x1c0] sm:$0xff]
      %v2615 = vld [vmem:[%s3 + $0x1c8] sm:$0xff]
      %v2616 = vld [vmem:[%s3 + $0x1d0] sm:$0xff]
      %v2617 = vld [vmem:[%s3 + $0x1d8] sm:$0xff]
      %v2618 = vld [vmem:[%s3 + $0x1e0] sm:$0xff]
      %v2619 = vld [vmem:[%s3 + $0x1e8] sm:$0xff]
      %v2620 = vld [vmem:[%s3 + $0x1f0] sm:$0xff]
      %v2621 = vld [vmem:[%s3 + $0x1f8] sm:$0xff]
      %v2622 = vld [vmem:[%s4] sm:$0x1]
      %v2624 = vlaneseq
      %v2625 = vshrl.u32 %v2624, 7
      %v2626 = vsub.s32 0, %v2625
      %v2627 = vrot.slane %v2622, %v2626
      %2629 = vmatprep.subr.mxu0 0.0
      %2630 = vmatpush1.msra.mxu0 %v2558
      %2631 = vmatprep.subr.mxu0 0.0
      %2632 = vmatpush1.msra.mxu0 %v2559
      %2633 = vmatprep.subr.mxu0 0.0
      %2634 = vmatpush1.msra.mxu0 %v2560
      %2635 = vmatprep.subr.mxu0 0.0
      %2636 = vmatpush1.msra.mxu0 %v2561
      %2637 = vmatprep.subr.mxu0 0.0
      %2638 = vmatpush1.msra.mxu0 %v2562
      %2639 = vmatprep.subr.mxu0 0.0
      %2640 = vmatpush1.msra.mxu0 %v2563
      %2641 = vmatprep.subr.mxu0 0.0
      %2642 = vmatpush1.msra.mxu0 %v2564
      %2643 = vmatprep.subr.mxu0 0.0
      %2644 = vmatpush1.msra.mxu0 %v2565
      %2645 = vmatprep.subr.mxu0 0.0
      %2646 = vmatpush1.msra.mxu0 %v2566
      %2647 = vmatprep.subr.mxu0 0.0
      %2648 = vmatpush1.msra.mxu0 %v2567
      %2649 = vmatprep.subr.mxu0 0.0
      %2650 = vmatpush1.msra.mxu0 %v2568
      %2651 = vmatprep.subr.mxu0 0.0
      %2652 = vmatpush1.msra.mxu0 %v2569
      %2653 = vmatprep.subr.mxu0 0.0
      %2654 = vmatpush1.msra.mxu0 %v2570
      %2655 = vmatprep.subr.mxu0 0.0
      %2656 = vmatpush1.msra.mxu0 %v2571
      %2657 = vmatprep.subr.mxu0 0.0
      %2658 = vmatpush1.msra.mxu0 %v2572
      %2659 = vmatprep.subr.mxu0 0.0
      %2660 = vmatpush1.msra.mxu0 %v2573
      %2661 = vmatprep.subr.mxu0 0.0
      %2662 = vmatpush1.msra.mxu0 %v2574
      %2663 = vmatprep.subr.mxu0 0.0
      %2664 = vmatpush1.msra.mxu0 %v2575
      %2665 = vmatprep.subr.mxu0 0.0
      %2666 = vmatpush1.msra.mxu0 %v2576
      %2667 = vmatprep.subr.mxu0 0.0
      %2668 = vmatpush1.msra.mxu0 %v2577
      %2669 = vmatprep.subr.mxu0 0.0
      %2670 = vmatpush1.msra.mxu0 %v2578
      %2671 = vmatprep.subr.mxu0 0.0
      %2672 = vmatpush1.msra.mxu0 %v2579
      %2673 = vmatprep.subr.mxu0 0.0
      %2674 = vmatpush1.msra.mxu0 %v2580
      %2675 = vmatprep.subr.mxu0 0.0
      %2676 = vmatpush1.msra.mxu0 %v2581
      %2677 = vmatprep.subr.mxu0 0.0
      %2678 = vmatpush1.msra.mxu0 %v2582
      %2679 = vmatprep.subr.mxu0 0.0
      %2680 = vmatpush1.msra.mxu0 %v2583
      %2681 = vmatprep.subr.mxu0 0.0
      %2682 = vmatpush1.msra.mxu0 %v2584
      %2683 = vmatprep.subr.mxu0 0.0
      %2684 = vmatpush1.msra.mxu0 %v2585
      %2685 = vmatprep.subr.mxu0 0.0
      %2686 = vmatpush1.msra.mxu0 %v2586
      %2687 = vmatprep.subr.mxu0 0.0
      %2688 = vmatpush1.msra.mxu0 %v2587
      %2689 = vmatprep.subr.mxu0 0.0
      %2690 = vmatpush1.msra.mxu0 %v2588
      %2691 = vmatprep.subr.mxu0 0.0
      %2692 = vmatpush1.msra.mxu0 %v2589
      %2693 = vmatprep.mubr.f32.mxu0 %v2463
      %2694 = vmatmul.mubr.f32.gmra.mrb[0].mxu0 %v2462
      %v2695 = vpop.f32.mrb[0].mxu0
      %v2696 = vadd.f32 %v2627, %v2695
      %v2697 = vpop.f32.mrb[0].mxu0
      %2698 = vmatprep.mubr.f32.mxu0 %v2467
      %2699 = vmatmul.mubr.f32.gmra.mrb[0].mxu0 %v2466
      %v2700 = vpop.f32.mrb[0].mxu0
      %v2701 = vadd.f32 %v2627, %v2700
      %v2702 = vpop.f32.mrb[0].mxu0
      %2703 = vmatprep.mubr.f32.mxu0 %v2471
      %2704 = vmatmul.mubr.f32.gmra.mrb[0].mxu0 %v2470
      %v2705 = vpop.f32.mrb[0].mxu0
      %v2706 = vadd.f32 %v2627, %v2705
      %v2707 = vpop.f32.mrb[0].mxu0
      %2708 = vmatprep.mubr.f32.mxu0 %v2475
      %2709 = vmatmul.mubr.f32.gmra.mrb[0].mxu0 %v2474
      %v2710 = vpop.f32.mrb[0].mxu0
      %v2711 = vadd.f32 %v2627, %v2710
      %v2712 = vpop.f32.mrb[0].mxu0
      %2713 = vmatprep.mubr.f32.mxu0 %v2479
      %2714 = vmatmul.mubr.f32.gmra.mrb[0].mxu0 %v2478
      %v2715 = vpop.f32.mrb[0].mxu0
      %v2716 = vadd.f32 %v2627, %v2715
      %v2717 = vpop.f32.mrb[0].mxu0
      %2718 = vmatprep.mubr.f32.mxu0 %v2483
      %2719 = vmatmul.mubr.f32.gmra.mrb[0].mxu0 %v2482
      %v2720 = vpop.f32.mrb[0].mxu0
      %v2721 = vadd.f32 %v2627, %v2720
      %v2722 = vpop.f32.mrb[0].mxu0
      %2723 = vmatprep.mubr.f32.mxu0 %v2487
      %2724 = vmatmul.mubr.f32.gmra.mrb[0].mxu0 %v2486
      %v2725 = vpop.f32.mrb[0].mxu0
      %v2726 = vadd.f32 %v2627, %v2725
      %v2727 = vpop.f32.mrb[0].mxu0
      %2728 = vmatprep.mubr.f32.mxu0 %v2491
      %2729 = vmatmul.mubr.f32.gmra.mrb[0].mxu0 %v2490
      %v2730 = vpop.f32.mrb[0].mxu0
      %v2731 = vadd.f32 %v2627, %v2730
      %v2732 = vpop.f32.mrb[0].mxu0
      %2733 = vmatprep.mubr.f32.mxu0 %v2495
      %2734 = vmatmul.mubr.f32.gmra.mrb[0].mxu0 %v2494
      %v2735 = vpop.f32.mrb[0].mxu0
      %v2736 = vadd.f32 %v2627, %v2735
      %v2737 = vpop.f32.mrb[0].mxu0
      %2738 = vmatprep.mubr.f32.mxu0 %v2499
      %2739 = vmatmul.mubr.f32.gmra.mrb[0].mxu0 %v2498
      %v2740 = vpop.f32.mrb[0].mxu0
      %v2741 = vadd.f32 %v2627, %v2740
      %v2742 = vpop.f32.mrb[0].mxu0
      %2743 = vmatprep.mubr.f32.mxu0 %v2503
      %2744 = vmatmul.mubr.f32.gmra.mrb[0].mxu0 %v2502
      %v2745 = vpop.f32.mrb[0].mxu0
      %v2746 = vadd.f32 %v2627, %v2745
      %v2747 = vpop.f32.mrb[0].mxu0
      %2748 = vmatprep.mubr.f32.mxu0 %v2507
      %2749 = vmatmul.mubr.f32.gmra.mrb[0].mxu0 %v2506
      %v2750 = vpop.f32.mrb[0].mxu0
      %v2751 = vadd.f32 %v2627, %v2750
      %v2752 = vpop.f32.mrb[0].mxu0
      %2753 = vmatprep.mubr.f32.mxu0 %v2511
      %2754 = vmatmul.mubr.f32.gmra.mrb[0].mxu0 %v2510
      %v2755 = vpop.f32.mrb[0].mxu0
      %v2756 = vadd.f32 %v2627, %v2755
      %v2757 = vpop.f32.mrb[0].mxu0
      %2758 = vmatprep.mubr.f32.mxu0 %v2515
      %2759 = vmatmul.mubr.f32.gmra.mrb[0].mxu0 %v2514
      %v2760 = vpop.f32.mrb[0].mxu0
      %v2761 = vadd.f32 %v2627, %v2760
      %v2762 = vpop.f32.mrb[0].mxu0
      %2763 = vmatprep.mubr.f32.mxu0 %v2519
      %2764 = vmatmul.mubr.f32.gmra.mrb[0].mxu0 %v2518
      %v2765 = vpop.f32.mrb[0].mxu0
      %v2766 = vadd.f32 %v2627, %v2765
      %v2767 = vpop.f32.mrb[0].mxu0
      %2768 = vmatprep.mubr.f32.mxu0 %v2523
      %2769 = vmatmul.mubr.f32.gmra.mrb[0].mxu0 %v2522
      %v2770 = vpop.f32.mrb[0].mxu0
      %v2771 = vadd.f32 %v2627, %v2770
      %v2772 = vpop.f32.mrb[0].mxu0
      %2773 = vmatprep.mubr.f32.mxu0 %v2527
      %2774 = vmatmul.mubr.f32.gmra.mrb[0].mxu0 %v2526
      %v2775 = vpop.f32.mrb[0].mxu0
      %v2776 = vadd.f32 %v2627, %v2775
      %v2777 = vpop.f32.mrb[0].mxu0
      %2778 = vmatprep.mubr.f32.mxu0 %v2531
      %2779 = vmatmul.mubr.f32.gmra.mrb[0].mxu0 %v2530
      %v2780 = vpop.f32.mrb[0].mxu0
      %v2781 = vadd.f32 %v2627, %v2780
      %v2782 = vpop.f32.mrb[0].mxu0
      %2783 = vmatprep.mubr.f32.mxu0 %v2535
      %2784 = vmatmul.mubr.f32.gmra.mrb[0].mxu0 %v2534
      %v2785 = vpop.f32.mrb[0].mxu0
      %v2786 = vadd.f32 %v2627, %v2785
      %v2787 = vpop.f32.mrb[0].mxu0
      %2788 = vmatprep.mubr.f32.mxu0 %v2539
      %2789 = vmatmul.mubr.f32.gmra.mrb[0].mxu0 %v2538
      %v2790 = vpop.f32.mrb[0].mxu0
      %v2791 = vadd.f32 %v2627, %v2790
      %v2792 = vpop.f32.mrb[0].mxu0
      %2793 = vmatprep.mubr.f32.mxu0 %v2543
      %2794 = vmatmul.mubr.f32.gmra.mrb[0].mxu0 %v2542
      %v2795 = vpop.f32.mrb[0].mxu0
      %v2796 = vadd.f32 %v2627, %v2795
      %v2797 = vpop.f32.mrb[0].mxu0
      %2798 = vmatprep.mubr.f32.mxu0 %v2547
      %2799 = vmatmul.mubr.f32.gmra.mrb[0].mxu0 %v2546
      %v2800 = vpop.f32.mrb[0].mxu0
      %v2801 = vadd.f32 %v2627, %v2800
      %v2802 = vpop.f32.mrb[0].mxu0
      %2803 = vmatprep.mubr.f32.mxu0 %v2551
      %2804 = vmatmul.mubr.f32.gmra.mrb[0].mxu0 %v2550
      %v2805 = vpop.f32.mrb[0].mxu0
      %v2806 = vadd.f32 %v2627, %v2805
      %v2807 = vpop.f32.mrb[0].mxu0
      %2808 = vmatprep.mubr.f32.mxu0 %v2555
      %2809 = vmatmul.mubr.f32.gmra.mrb[0].mxu0 %v2554
      %v2810 = vpop.f32.mrb[0].mxu0
      %v2811 = vadd.f32 %v2627, %v2810
      %v2812 = vpop.f32.mrb[0].mxu0
      %2813 = vdwg.mxu0
      %2814 = vmatprep.subr.mxu0 0.0
      %2815 = vmatpush1.msra.mxu0 %v2590
      %2816 = vmatprep.subr.mxu0 0.0
      %2817 = vmatpush1.msra.mxu0 %v2591
      %2818 = vmatprep.subr.mxu0 0.0
      %2819 = vmatpush1.msra.mxu0 %v2592
      %2820 = vmatprep.subr.mxu0 0.0
      %2821 = vmatpush1.msra.mxu0 %v2593
      %2822 = vmatprep.subr.mxu0 0.0
      %2823 = vmatpush1.msra.mxu0 %v2594
      %2824 = vmatprep.subr.mxu0 0.0
      %2825 = vmatpush1.msra.mxu0 %v2595
      %2826 = vmatprep.subr.mxu0 0.0
      %2827 = vmatpush1.msra.mxu0 %v2596
      %2828 = vmatprep.subr.mxu0 0.0
      %2829 = vmatpush1.msra.mxu0 %v2597
      %2830 = vmatprep.subr.mxu0 0.0
      %2831 = vmatpush1.msra.mxu0 %v2598
      %2832 = vmatprep.subr.mxu0 0.0
      %2833 = vmatpush1.msra.mxu0 %v2599
      %2834 = vmatprep.subr.mxu0 0.0
      %2835 = vmatpush1.msra.mxu0 %v2600
      %2836 = vmatprep.subr.mxu0 0.0
      %2837 = vmatpush1.msra.mxu0 %v2601
      %2838 = vmatprep.subr.mxu0 0.0
      %2839 = vmatpush1.msra.mxu0 %v2602
      %2840 = vmatprep.subr.mxu0 0.0
      %2841 = vmatpush1.msra.mxu0 %v2603
      %2842 = vmatprep.subr.mxu0 0.0
      %2843 = vmatpush1.msra.mxu0 %v2604
      %2844 = vmatprep.subr.mxu0 0.0
      %2845 = vmatpush1.msra.mxu0 %v2605
      %2846 = vmatprep.subr.mxu0 0.0
      %2847 = vmatpush1.msra.mxu0 %v2606
      %2848 = vmatprep.subr.mxu0 0.0
      %2849 = vmatpush1.msra.mxu0 %v2607
      %2850 = vmatprep.subr.mxu0 0.0
      %2851 = vmatpush1.msra.mxu0 %v2608
      %2852 = vmatprep.subr.mxu0 0.0
      %2853 = vmatpush1.msra.mxu0 %v2609
      %2854 = vmatprep.subr.mxu0 0.0
      %2855 = vmatpush1.msra.mxu0 %v2610
      %2856 = vmatprep.subr.mxu0 0.0
      %2857 = vmatpush1.msra.mxu0 %v2611
      %2858 = vmatprep.subr.mxu0 0.0
      %2859 = vmatpush1.msra.mxu0 %v2612
      %2860 = vmatprep.subr.mxu0 0.0
      %2861 = vmatpush1.msra.mxu0 %v2613
      %2862 = vmatprep.subr.mxu0 0.0
      %2863 = vmatpush1.msra.mxu0 %v2614
      %2864 = vmatprep.subr.mxu0 0.0
      %2865 = vmatpush1.msra.mxu0 %v2615
      %2866 = vmatprep.subr.mxu0 0.0
      %2867 = vmatpush1.msra.mxu0 %v2616
      %2868 = vmatprep.subr.mxu0 0.0
      %2869 = vmatpush1.msra.mxu0 %v2617
      %2870 = vmatprep.subr.mxu0 0.0
      %2871 = vmatpush1.msra.mxu0 %v2618
      %2872 = vmatprep.subr.mxu0 0.0
      %2873 = vmatpush1.msra.mxu0 %v2619
      %2874 = vmatprep.subr.mxu0 0.0
      %2875 = vmatpush1.msra.mxu0 %v2620
      %2876 = vmatprep.subr.mxu0 0.0
      %2877 = vmatpush1.msra.mxu0 %v2621
      %2878 = vmatprep.mubr.f32.mxu0 %v2465
      %2879 = vmatmul.mubr.f32.gmra.mrb[0].mxu0 %v2464
      %v2880 = vpop.f32.mrb[0].mxu0
      %v2881 = vadd.f32 %v2696, %v2880
      %v2882 = vpop.f32.mrb[0].mxu0
      %2883 = vmatprep.mubr.f32.mxu0 %v2469
      %2884 = vmatmul.mubr.f32.gmra.mrb[0].mxu0 %v2468
      %v2885 = vpop.f32.mrb[0].mxu0
      %v2886 = vadd.f32 %v2701, %v2885
      %v2887 = vpop.f32.mrb[0].mxu0
      %2888 = vmatprep.mubr.f32.mxu0 %v2473
      %2889 = vmatmul.mubr.f32.gmra.mrb[0].mxu0 %v2472
      %v2890 = vpop.f32.mrb[0].mxu0
      %v2891 = vadd.f32 %v2706, %v2890
      %v2892 = vpop.f32.mrb[0].mxu0
      %2893 = vmatprep.mubr.f32.mxu0 %v2477
      %2894 = vmatmul.mubr.f32.gmra.mrb[0].mxu0 %v2476
      %v2895 = vpop.f32.mrb[0].mxu0
      %v2896 = vadd.f32 %v2711, %v2895
      %v2897 = vpop.f32.mrb[0].mxu0
      %2898 = vmatprep.mubr.f32.mxu0 %v2481
      %2899 = vmatmul.mubr.f32.gmra.mrb[0].mxu0 %v2480
      %v2900 = vpop.f32.mrb[0].mxu0
      %v2901 = vadd.f32 %v2716, %v2900
      %v2902 = vpop.f32.mrb[0].mxu0
      %2903 = vmatprep.mubr.f32.mxu0 %v2485
      %2904 = vmatmul.mubr.f32.gmra.mrb[0].mxu0 %v2484
      %v2905 = vpop.f32.mrb[0].mxu0
      %v2906 = vadd.f32 %v2721, %v2905
      %v2907 = vpop.f32.mrb[0].mxu0
      %2908 = vmatprep.mubr.f32.mxu0 %v2489
      %2909 = vmatmul.mubr.f32.gmra.mrb[0].mxu0 %v2488
      %v2910 = vpop.f32.mrb[0].mxu0
      %v2911 = vadd.f32 %v2726, %v2910
      %v2912 = vpop.f32.mrb[0].mxu0
      %2913 = vmatprep.mubr.f32.mxu0 %v2493
      %2914 = vmatmul.mubr.f32.gmra.mrb[0].mxu0 %v2492
      %v2915 = vpop.f32.mrb[0].mxu0
      %v2916 = vadd.f32 %v2731, %v2915
      %v2917 = vpop.f32.mrb[0].mxu0
      %2918 = vmatprep.mubr.f32.mxu0 %v2497
      %2919 = vmatmul.mubr.f32.gmra.mrb[0].mxu0 %v2496
      %v2920 = vpop.f32.mrb[0].mxu0
      %v2921 = vadd.f32 %v2736, %v2920
      %v2922 = vpop.f32.mrb[0].mxu0
      %2923 = vmatprep.mubr.f32.mxu0 %v2501
      %2924 = vmatmul.mubr.f32.gmra.mrb[0].mxu0 %v2500
      %v2925 = vpop.f32.mrb[0].mxu0
      %v2926 = vadd.f32 %v2741, %v2925
      %v2927 = vpop.f32.mrb[0].mxu0
      %2928 = vmatprep.mubr.f32.mxu0 %v2505
      %2929 = vmatmul.mubr.f32.gmra.mrb[0].mxu0 %v2504
      %v2930 = vpop.f32.mrb[0].mxu0
      %v2931 = vadd.f32 %v2746, %v2930
      %v2932 = vpop.f32.mrb[0].mxu0
      %2933 = vmatprep.mubr.f32.mxu0 %v2509
      %2934 = vmatmul.mubr.f32.gmra.mrb[0].mxu0 %v2508
      %v2935 = vpop.f32.mrb[0].mxu0
      %v2936 = vadd.f32 %v2751, %v2935
      %v2937 = vpop.f32.mrb[0].mxu0
      %2938 = vmatprep.mubr.f32.mxu0 %v2513
      %2939 = vmatmul.mubr.f32.gmra.mrb[0].mxu0 %v2512
      %v2940 = vpop.f32.mrb[0].mxu0
      %v2941 = vadd.f32 %v2756, %v2940
      %v2942 = vpop.f32.mrb[0].mxu0
      %2943 = vmatprep.mubr.f32.mxu0 %v2517
      %2944 = vmatmul.mubr.f32.gmra.mrb[0].mxu0 %v2516
      %v2945 = vpop.f32.mrb[0].mxu0
      %v2946 = vadd.f32 %v2761, %v2945
      %v2947 = vpop.f32.mrb[0].mxu0
      %2948 = vmatprep.mubr.f32.mxu0 %v2521
      %2949 = vmatmul.mubr.f32.gmra.mrb[0].mxu0 %v2520
      %v2950 = vpop.f32.mrb[0].mxu0
      %v2951 = vadd.f32 %v2766, %v2950
      %v2952 = vpop.f32.mrb[0].mxu0
      %2953 = vmatprep.mubr.f32.mxu0 %v2525
      %2954 = vmatmul.mubr.f32.gmra.mrb[0].mxu0 %v2524
      %v2955 = vpop.f32.mrb[0].mxu0
      %v2956 = vadd.f32 %v2771, %v2955
      %v2957 = vpop.f32.mrb[0].mxu0
      %2958 = vmatprep.mubr.f32.mxu0 %v2529
      %2959 = vmatmul.mubr.f32.gmra.mrb[0].mxu0 %v2528
      %v2960 = vpop.f32.mrb[0].mxu0
      %v2961 = vadd.f32 %v2776, %v2960
      %v2962 = vpop.f32.mrb[0].mxu0
      %2963 = vmatprep.mubr.f32.mxu0 %v2533
      %2964 = vmatmul.mubr.f32.gmra.mrb[0].mxu0 %v2532
      %v2965 = vpop.f32.mrb[0].mxu0
      %v2966 = vadd.f32 %v2781, %v2965
      %v2967 = vpop.f32.mrb[0].mxu0
      %2968 = vmatprep.mubr.f32.mxu0 %v2537
      %2969 = vmatmul.mubr.f32.gmra.mrb[0].mxu0 %v2536
      %v2970 = vpop.f32.mrb[0].mxu0
      %v2971 = vadd.f32 %v2786, %v2970
      %v2972 = vpop.f32.mrb[0].mxu0
      %2973 = vmatprep.mubr.f32.mxu0 %v2541
      %2974 = vmatmul.mubr.f32.gmra.mrb[0].mxu0 %v2540
      %v2975 = vpop.f32.mrb[0].mxu0
      %v2976 = vadd.f32 %v2791, %v2975
      %v2977 = vpop.f32.mrb[0].mxu0
      %2978 = vmatprep.mubr.f32.mxu0 %v2545
      %2979 = vmatmul.mubr.f32.gmra.mrb[0].mxu0 %v2544
      %v2980 = vpop.f32.mrb[0].mxu0
      %v2981 = vadd.f32 %v2796, %v2980
      %v2982 = vpop.f32.mrb[0].mxu0
      %2983 = vmatprep.mubr.f32.mxu0 %v2549
      %2984 = vmatmul.mubr.f32.gmra.mrb[0].mxu0 %v2548
      %v2985 = vpop.f32.mrb[0].mxu0
      %v2986 = vadd.f32 %v2801, %v2985
      %v2987 = vpop.f32.mrb[0].mxu0
      %2988 = vmatprep.mubr.f32.mxu0 %v2553
      %2989 = vmatmul.mubr.f32.gmra.mrb[0].mxu0 %v2552
      %v2990 = vpop.f32.mrb[0].mxu0
      %v2991 = vadd.f32 %v2806, %v2990
      %v2992 = vpop.f32.mrb[0].mxu0
      %2993 = vmatprep.mubr.f32.mxu0 %v2557
      %2994 = vmatmul.mubr.f32.gmra.mrb[0].mxu0 %v2556
      %v2995 = vpop.f32.mrb[0].mxu0
      %v2996 = vadd.f32 %v2811, %v2995
      %v2997 = vpop.f32.mrb[0].mxu0
      %2998 = vdwg.mxu0
      %v2999 = vmax.f32 %v2881, 0.0
      %v3000 = vmax.f32 %v2886, 0.0
      %v3001 = vmax.f32 %v2891, 0.0
      %v3002 = vmax.f32 %v2896, 0.0
      %v3003 = vmax.f32 %v2901, 0.0
      %v3004 = vmax.f32 %v2906, 0.0
      %v3005 = vmax.f32 %v2911, 0.0
      %v3006 = vmax.f32 %v2916, 0.0
      %v3007 = vmax.f32 %v2921, 0.0
      %v3008 = vmax.f32 %v2926, 0.0
      %v3009 = vmax.f32 %v2931, 0.0
      %v3010 = vmax.f32 %v2936, 0.0
      %v3011 = vmax.f32 %v2941, 0.0
      %v3012 = vmax.f32 %v2946, 0.0
      %v3013 = vmax.f32 %v2951, 0.0
      %v3014 = vmax.f32 %v2956, 0.0
      %v3015 = vmax.f32 %v2961, 0.0
      %v3016 = vmax.f32 %v2966, 0.0
      %v3017 = vmax.f32 %v2971, 0.0
      %v3018 = vmax.f32 %v2976, 0.0
      %v3019 = vmax.f32 %v2981, 0.0
      %v3020 = vmax.f32 %v2986, 0.0
      %v3021 = vmax.f32 %v2991, 0.0
      %v3022 = vmax.f32 %v2996, 0.0
      %3023 = vst.msk [vmem:[#allocation4] sm:$0xff] %vm1622, %v2999
      %3024 = vst.msk [vmem:[#allocation4 + $0x8] sm:$0xff] %vm1622, %v3000
      %3025 = vst.msk [vmem:[#allocation4 + $0x10] sm:$0xff] %vm1622, %v3001
      %3026 = vst.msk [vmem:[#allocation4 + $0x18] sm:$0xff] %vm1622, %v3002
      %3027 = vst.msk [vmem:[#allocation4 + $0x20] sm:$0xff] %vm1622, %v3003
      %3028 = vst.msk [vmem:[#allocation4 + $0x28] sm:$0xff] %vm1622, %v3004
      %3029 = vst.msk [vmem:[#allocation4 + $0x30] sm:$0xff] %vm1622, %v3005
      %3030 = vst.msk [vmem:[#allocation4 + $0x38] sm:$0xff] %vm1622, %v3006
      %3031 = vst.msk [vmem:[#allocation4 + $0x40] sm:$0xff] %vm1622, %v3007
      %3032 = vst.msk [vmem:[#allocation4 + $0x48] sm:$0xff] %vm1622, %v3008
      %3033 = vst.msk [vmem:[#allocation4 + $0x50] sm:$0xff] %vm1622, %v3009
      %3034 = vst.msk [vmem:[#allocation4 + $0x58] sm:$0xff] %vm1622, %v3010
      %3035 = vst.msk [vmem:[#allocation4 + $0x60] sm:$0xff] %vm1622, %v3011
      %3036 = vst.msk [vmem:[#allocation4 + $0x68] sm:$0xff] %vm1622, %v3012
      %3037 = vst.msk [vmem:[#allocation4 + $0x70] sm:$0xff] %vm1622, %v3013
      %3038 = vst.msk [vmem:[#allocation4 + $0x78] sm:$0xff] %vm1622, %v3014
      %3039 = vst.msk [vmem:[#allocation4 + $0x80] sm:$0xff] %vm1622, %v3015
      %3040 = vst.msk [vmem:[#allocation4 + $0x88] sm:$0xff] %vm1622, %v3016
      %3041 = vst.msk [vmem:[#allocation4 + $0x90] sm:$0xff] %vm1622, %v3017
      %3042 = vst.msk [vmem:[#allocation4 + $0x98] sm:$0xff] %vm1622, %v3018
      %3043 = vst.msk [vmem:[#allocation4 + $0xa0] sm:$0xff] %vm1622, %v3019
      %3044 = vst.msk [vmem:[#allocation4 + $0xa8] sm:$0xff] %vm1622, %v3020
      %3045 = vst.msk [vmem:[#allocation4 + $0xb0] sm:$0xff] %vm1622, %v3021
      %3046 = vst.msk [vmem:[#allocation4 + $0xb8] sm:$0xff] %vm1622, %v3022
      %v3047 = vld [vmem:[#allocation4] sm:$0xff]
      %v3048 = vld [vmem:[#allocation4 + $0x8] sm:$0xff]
      %v3049 = vld [vmem:[#allocation4 + $0x10] sm:$0xff]
      %v3050 = vld [vmem:[#allocation4 + $0x18] sm:$0xff]
      %3051 = vst.msk [vmem:[#allocation5] sm:$0xff] %vm1622, %v3047
      %3052 = vst.msk [vmem:[#allocation5 + $0x28] sm:$0xff] %vm1622, %v3048
      %3053 = vst.msk [vmem:[#allocation5 + $0x50] sm:$0xff] %vm1622, %v3049
      %3054 = vst.msk [vmem:[#allocation5 + $0x78] sm:$0xff] %vm1622, %v3050
      %v3055 = vld [vmem:[#allocation4 + $0x8] sm:$0xff]
      %v3056 = vld [vmem:[#allocation4 + $0x10] sm:$0xff]
      %v3057 = vld [vmem:[#allocation4 + $0x18] sm:$0xff]
      %v3058 = vld [vmem:[#allocation4 + $0x20] sm:$0xff]
      %3063 = vrot.lane.b32.xlu0 %v3055, 64
      %v3064 = vpop.permute.xlu0 %3063
      %3065 = vrot.lane.b32.xlu0 %v3056, 64
      %v3066 = vpop.permute.xlu0 %3065
      %3067 = vrot.lane.b32.xlu0 %v3057, 64
      %v3068 = vpop.permute.xlu0 %3067
      %3069 = vrot.lane.b32.xlu0 %v3058, 64
      %v3070 = vpop.permute.xlu0 %3069
      %3075 = vst.msk [vmem:[#allocation5] sm:$0xff] %vm1735, %v3064
      %3076 = vst.msk [vmem:[#allocation5 + $0x28] sm:$0xff] %vm1735, %v3066
      %3077 = vst.msk [vmem:[#allocation5 + $0x50] sm:$0xff] %vm1735, %v3068
      %3078 = vst.msk [vmem:[#allocation5 + $0x78] sm:$0xff] %vm1735, %v3070
      %v3079 = vld [vmem:[#allocation4 + $0x10] sm:$0xff]
      %v3080 = vld [vmem:[#allocation4 + $0x18] sm:$0xff]
      %v3081 = vld [vmem:[#allocation4 + $0x20] sm:$0xff]
      %v3082 = vld [vmem:[#allocation4 + $0x28] sm:$0xff]
      %3083 = vst.msk [vmem:[#allocation5 + $0x8] sm:$0xff] %vm1622, %v3079
      %3084 = vst.msk [vmem:[#allocation5 + $0x30] sm:$0xff] %vm1622, %v3080
      %3085 = vst.msk [vmem:[#allocation5 + $0x58] sm:$0xff] %vm1622, %v3081
      %3086 = vst.msk [vmem:[#allocation5 + $0x80] sm:$0xff] %vm1622, %v3082
      %v3087 = vld [vmem:[#allocation4 + $0x30] sm:$0xff]
      %v3088 = vld [vmem:[#allocation4 + $0x38] sm:$0xff]
      %v3089 = vld [vmem:[#allocation4 + $0x40] sm:$0xff]
      %v3090 = vld [vmem:[#allocation4 + $0x48] sm:$0xff]
      %3095 = vrot.lane.b32.xlu0 %v3087, 64
      %v3096 = vpop.permute.xlu0 %3095
      %3097 = vrot.lane.b32.xlu0 %v3088, 64
      %v3098 = vpop.permute.xlu0 %3097
      %3099 = vrot.lane.b32.xlu0 %v3089, 64
      %v3100 = vpop.permute.xlu0 %3099
      %3101 = vrot.lane.b32.xlu0 %v3090, 64
      %v3102 = vpop.permute.xlu0 %3101
      %3107 = vst.msk [vmem:[#allocation5 + $0x8] sm:$0xff] %vm1735, %v3096
      %3108 = vst.msk [vmem:[#allocation5 + $0x30] sm:$0xff] %vm1735, %v3098
      %3109 = vst.msk [vmem:[#allocation5 + $0x58] sm:$0xff] %vm1735, %v3100
      %3110 = vst.msk [vmem:[#allocation5 + $0x80] sm:$0xff] %vm1735, %v3102
      %v3111 = vld [vmem:[#allocation4 + $0x38] sm:$0xff]
      %v3112 = vld [vmem:[#allocation4 + $0x40] sm:$0xff]
      %v3113 = vld [vmem:[#allocation4 + $0x48] sm:$0xff]
      %v3114 = vld [vmem:[#allocation4 + $0x50] sm:$0xff]
      %3115 = vst.msk [vmem:[#allocation5 + $0x10] sm:$0xff] %vm1622, %v3111
      %3116 = vst.msk [vmem:[#allocation5 + $0x38] sm:$0xff] %vm1622, %v3112
      %3117 = vst.msk [vmem:[#allocation5 + $0x60] sm:$0xff] %vm1622, %v3113
      %3118 = vst.msk [vmem:[#allocation5 + $0x88] sm:$0xff] %vm1622, %v3114
      %v3119 = vld [vmem:[#allocation4 + $0x40] sm:$0xff]
      %v3120 = vld [vmem:[#allocation4 + $0x48] sm:$0xff]
      %v3121 = vld [vmem:[#allocation4 + $0x50] sm:$0xff]
      %v3122 = vld [vmem:[#allocation4 + $0x58] sm:$0xff]
      %3127 = vrot.lane.b32.xlu0 %v3119, 64
      %v3128 = vpop.permute.xlu0 %3127
      %3129 = vrot.lane.b32.xlu0 %v3120, 64
      %v3130 = vpop.permute.xlu0 %3129
      %3131 = vrot.lane.b32.xlu0 %v3121, 64
      %v3132 = vpop.permute.xlu0 %3131
      %3133 = vrot.lane.b32.xlu0 %v3122, 64
      %v3134 = vpop.permute.xlu0 %3133
      %3139 = vst.msk [vmem:[#allocation5 + $0x10] sm:$0xff] %vm1735, %v3128
      %3140 = vst.msk [vmem:[#allocation5 + $0x38] sm:$0xff] %vm1735, %v3130
      %3141 = vst.msk [vmem:[#allocation5 + $0x60] sm:$0xff] %vm1735, %v3132
      %3142 = vst.msk [vmem:[#allocation5 + $0x88] sm:$0xff] %vm1735, %v3134
      %v3143 = vld [vmem:[#allocation4 + $0x60] sm:$0xff]
      %v3144 = vld [vmem:[#allocation4 + $0x68] sm:$0xff]
      %v3145 = vld [vmem:[#allocation4 + $0x70] sm:$0xff]
      %v3146 = vld [vmem:[#allocation4 + $0x78] sm:$0xff]
      %3147 = vst.msk [vmem:[#allocation5 + $0x18] sm:$0xff] %vm1622, %v3143
      %3148 = vst.msk [vmem:[#allocation5 + $0x40] sm:$0xff] %vm1622, %v3144
      %3149 = vst.msk [vmem:[#allocation5 + $0x68] sm:$0xff] %vm1622, %v3145
      %3150 = vst.msk [vmem:[#allocation5 + $0x90] sm:$0xff] %vm1622, %v3146
      %v3151 = vld [vmem:[#allocation4 + $0x68] sm:$0xff]
      %v3152 = vld [vmem:[#allocation4 + $0x70] sm:$0xff]
      %v3153 = vld [vmem:[#allocation4 + $0x78] sm:$0xff]
      %v3154 = vld [vmem:[#allocation4 + $0x80] sm:$0xff]
      %3159 = vrot.lane.b32.xlu0 %v3151, 64
      %v3160 = vpop.permute.xlu0 %3159
      %3161 = vrot.lane.b32.xlu0 %v3152, 64
      %v3162 = vpop.permute.xlu0 %3161
      %3163 = vrot.lane.b32.xlu0 %v3153, 64
      %v3164 = vpop.permute.xlu0 %3163
      %3165 = vrot.lane.b32.xlu0 %v3154, 64
      %v3166 = vpop.permute.xlu0 %3165
      %3171 = vst.msk [vmem:[#allocation5 + $0x18] sm:$0xff] %vm1735, %v3160
      %3172 = vst.msk [vmem:[#allocation5 + $0x40] sm:$0xff] %vm1735, %v3162
      %3173 = vst.msk [vmem:[#allocation5 + $0x68] sm:$0xff] %vm1735, %v3164
      %3174 = vst.msk [vmem:[#allocation5 + $0x90] sm:$0xff] %vm1735, %v3166
      %v3175 = vld [vmem:[#allocation4 + $0x70] sm:$0xff]
      %v3176 = vld [vmem:[#allocation4 + $0x78] sm:$0xff]
      %v3177 = vld [vmem:[#allocation4 + $0x80] sm:$0xff]
      %v3178 = vld [vmem:[#allocation4 + $0x88] sm:$0xff]
      %3179 = vst.msk [vmem:[#allocation5 + $0x20] sm:$0xff] %vm1622, %v3175
      %3180 = vst.msk [vmem:[#allocation5 + $0x48] sm:$0xff] %vm1622, %v3176
      %3181 = vst.msk [vmem:[#allocation5 + $0x70] sm:$0xff] %vm1622, %v3177
      %3182 = vst.msk [vmem:[#allocation5 + $0x98] sm:$0xff] %vm1622, %v3178
      %v3183 = vld [vmem:[#allocation4 + $0x30] sm:$0xff]
      %v3184 = vld [vmem:[#allocation4 + $0x38] sm:$0xff]
      %v3185 = vld [vmem:[#allocation4 + $0x40] sm:$0xff]
      %v3186 = vld [vmem:[#allocation4 + $0x48] sm:$0xff]
      %3187 = vst.msk [vmem:[#allocation5 + $0xa0] sm:$0xff] %vm1622, %v3183
      %3188 = vst.msk [vmem:[#allocation5 + $0xc8] sm:$0xff] %vm1622, %v3184
      %3189 = vst.msk [vmem:[#allocation5 + $0xf0] sm:$0xff] %vm1622, %v3185
      %3190 = vst.msk [vmem:[#allocation5 + $0x118] sm:$0xff] %vm1622, %v3186
      %v3191 = vld [vmem:[#allocation4 + $0x38] sm:$0xff]
      %v3192 = vld [vmem:[#allocation4 + $0x40] sm:$0xff]
      %v3193 = vld [vmem:[#allocation4 + $0x48] sm:$0xff]
      %v3194 = vld [vmem:[#allocation4 + $0x50] sm:$0xff]
      %3199 = vrot.lane.b32.xlu0 %v3191, 64
      %v3200 = vpop.permute.xlu0 %3199
      %3201 = vrot.lane.b32.xlu0 %v3192, 64
      %v3202 = vpop.permute.xlu0 %3201
      %3203 = vrot.lane.b32.xlu0 %v3193, 64
      %v3204 = vpop.permute.xlu0 %3203
      %3205 = vrot.lane.b32.xlu0 %v3194, 64
      %v3206 = vpop.permute.xlu0 %3205
      %3211 = vst.msk [vmem:[#allocation5 + $0xa0] sm:$0xff] %vm1735, %v3200
      %3212 = vst.msk [vmem:[#allocation5 + $0xc8] sm:$0xff] %vm1735, %v3202
      %3213 = vst.msk [vmem:[#allocation5 + $0xf0] sm:$0xff] %vm1735, %v3204
      %3214 = vst.msk [vmem:[#allocation5 + $0x118] sm:$0xff] %vm1735, %v3206
      %v3215 = vld [vmem:[#allocation4 + $0x40] sm:$0xff]
      %v3216 = vld [vmem:[#allocation4 + $0x48] sm:$0xff]
      %v3217 = vld [vmem:[#allocation4 + $0x50] sm:$0xff]
      %v3218 = vld [vmem:[#allocation4 + $0x58] sm:$0xff]
      %3219 = vst.msk [vmem:[#allocation5 + $0xa8] sm:$0xff] %vm1622, %v3215
      %3220 = vst.msk [vmem:[#allocation5 + $0xd0] sm:$0xff] %vm1622, %v3216
      %3221 = vst.msk [vmem:[#allocation5 + $0xf8] sm:$0xff] %vm1622, %v3217
      %3222 = vst.msk [vmem:[#allocation5 + $0x120] sm:$0xff] %vm1622, %v3218
      %v3223 = vld [vmem:[#allocation4 + $0x60] sm:$0xff]
      %v3224 = vld [vmem:[#allocation4 + $0x68] sm:$0xff]
      %v3225 = vld [vmem:[#allocation4 + $0x70] sm:$0xff]
      %v3226 = vld [vmem:[#allocation4 + $0x78] sm:$0xff]
      %3231 = vrot.lane.b32.xlu0 %v3223, 64
      %v3232 = vpop.permute.xlu0 %3231
      %3233 = vrot.lane.b32.xlu0 %v3224, 64
      %v3234 = vpop.permute.xlu0 %3233
      %3235 = vrot.lane.b32.xlu0 %v3225, 64
      %v3236 = vpop.permute.xlu0 %3235
      %3237 = vrot.lane.b32.xlu0 %v3226, 64
      %v3238 = vpop.permute.xlu0 %3237
      %3243 = vst.msk [vmem:[#allocation5 + $0xa8] sm:$0xff] %vm1735, %v3232
      %3244 = vst.msk [vmem:[#allocation5 + $0xd0] sm:$0xff] %vm1735, %v3234
      %3245 = vst.msk [vmem:[#allocation5 + $0xf8] sm:$0xff] %vm1735, %v3236
      %3246 = vst.msk [vmem:[#allocation5 + $0x120] sm:$0xff] %vm1735, %v3238
      %v3247 = vld [vmem:[#allocation4 + $0x68] sm:$0xff]
      %v3248 = vld [vmem:[#allocation4 + $0x70] sm:$0xff]
      %v3249 = vld [vmem:[#allocation4 + $0x78] sm:$0xff]
      %v3250 = vld [vmem:[#allocation4 + $0x80] sm:$0xff]
      %3251 = vst.msk [vmem:[#allocation5 + $0xb0] sm:$0xff] %vm1622, %v3247
      %3252 = vst.msk [vmem:[#allocation5 + $0xd8] sm:$0xff] %vm1622, %v3248
      %3253 = vst.msk [vmem:[#allocation5 + $0x100] sm:$0xff] %vm1622, %v3249
      %3254 = vst.msk [vmem:[#allocation5 + $0x128] sm:$0xff] %vm1622, %v3250
      %v3255 = vld [vmem:[#allocation4 + $0x70] sm:$0xff]
      %v3256 = vld [vmem:[#allocation4 + $0x78] sm:$0xff]
      %v3257 = vld [vmem:[#allocation4 + $0x80] sm:$0xff]
      %v3258 = vld [vmem:[#allocation4 + $0x88] sm:$0xff]
      %3263 = vrot.lane.b32.xlu0 %v3255, 64
      %v3264 = vpop.permute.xlu0 %3263
      %3265 = vrot.lane.b32.xlu0 %v3256, 64
      %v3266 = vpop.permute.xlu0 %3265
      %3267 = vrot.lane.b32.xlu0 %v3257, 64
      %v3268 = vpop.permute.xlu0 %3267
      %3269 = vrot.lane.b32.xlu0 %v3258, 64
      %v3270 = vpop.permute.xlu0 %3269
      %3275 = vst.msk [vmem:[#allocation5 + $0xb0] sm:$0xff] %vm1735, %v3264
      %3276 = vst.msk [vmem:[#allocation5 + $0xd8] sm:$0xff] %vm1735, %v3266
      %3277 = vst.msk [vmem:[#allocation5 + $0x100] sm:$0xff] %vm1735, %v3268
      %3278 = vst.msk [vmem:[#allocation5 + $0x128] sm:$0xff] %vm1735, %v3270
      %v3279 = vld [vmem:[#allocation4 + $0x90] sm:$0xff]
      %v3280 = vld [vmem:[#allocation4 + $0x98] sm:$0xff]
      %v3281 = vld [vmem:[#allocation4 + $0xa0] sm:$0xff]
      %v3282 = vld [vmem:[#allocation4 + $0xa8] sm:$0xff]
      %3283 = vst.msk [vmem:[#allocation5 + $0xb8] sm:$0xff] %vm1622, %v3279
      %3284 = vst.msk [vmem:[#allocation5 + $0xe0] sm:$0xff] %vm1622, %v3280
      %3285 = vst.msk [vmem:[#allocation5 + $0x108] sm:$0xff] %vm1622, %v3281
      %3286 = vst.msk [vmem:[#allocation5 + $0x130] sm:$0xff] %vm1622, %v3282
      %v3287 = vld [vmem:[#allocation4 + $0x98] sm:$0xff]
      %v3288 = vld [vmem:[#allocation4 + $0xa0] sm:$0xff]
      %v3289 = vld [vmem:[#allocation4 + $0xa8] sm:$0xff]
      %v3290 = vld [vmem:[#allocation4 + $0xb0] sm:$0xff]
      %3295 = vrot.lane.b32.xlu0 %v3287, 64
      %v3296 = vpop.permute.xlu0 %3295
      %3297 = vrot.lane.b32.xlu0 %v3288, 64
      %v3298 = vpop.permute.xlu0 %3297
      %3299 = vrot.lane.b32.xlu0 %v3289, 64
      %v3300 = vpop.permute.xlu0 %3299
      %3301 = vrot.lane.b32.xlu0 %v3290, 64
      %v3302 = vpop.permute.xlu0 %3301
      %3307 = vst.msk [vmem:[#allocation5 + $0xb8] sm:$0xff] %vm1735, %v3296
      %3308 = vst.msk [vmem:[#allocation5 + $0xe0] sm:$0xff] %vm1735, %v3298
      %3309 = vst.msk [vmem:[#allocation5 + $0x108] sm:$0xff] %vm1735, %v3300
      %3310 = vst.msk [vmem:[#allocation5 + $0x130] sm:$0xff] %vm1735, %v3302
      %v3311 = vld [vmem:[#allocation4 + $0xa0] sm:$0xff]
      %v3312 = vld [vmem:[#allocation4 + $0xa8] sm:$0xff]
      %v3313 = vld [vmem:[#allocation4 + $0xb0] sm:$0xff]
      %v3314 = vld [vmem:[#allocation4 + $0xb8] sm:$0xff]
      %3315 = vst.msk [vmem:[#allocation5 + $0xc0] sm:$0xff] %vm1622, %v3311
      %3316 = vst.msk [vmem:[#allocation5 + $0xe8] sm:$0xff] %vm1622, %v3312
      %3317 = vst.msk [vmem:[#allocation5 + $0x110] sm:$0xff] %vm1622, %v3313
      %3318 = vst.msk [vmem:[#allocation5 + $0x138] sm:$0xff] %vm1622, %v3314
      %v3319 = vld [vmem:[#allocation5] sm:$0xff]
      %v3320 = vld [vmem:[#allocation5 + $0x8] sm:$0xff]
      %v3321 = vld [vmem:[#allocation5 + $0x10] sm:$0xff]
      %v3322 = vld [vmem:[#allocation5 + $0x18] sm:$0xff]
      %v3323 = vld [vmem:[#allocation5 + $0x20] sm:$0xff]
      %v3324 = vld [vmem:[#allocation5 + $0x28] sm:$0xff]
      %v3325 = vld [vmem:[#allocation5 + $0x30] sm:$0xff]
      %v3326 = vld [vmem:[#allocation5 + $0x38] sm:$0xff]
      %v3327 = vld [vmem:[#allocation5 + $0x40] sm:$0xff]
      %v3328 = vld [vmem:[#allocation5 + $0x48] sm:$0xff]
      %v3329 = vld [vmem:[#allocation5 + $0x50] sm:$0xff]
      %v3330 = vld [vmem:[#allocation5 + $0x58] sm:$0xff]
      %v3331 = vld [vmem:[#allocation5 + $0x60] sm:$0xff]
      %v3332 = vld [vmem:[#allocation5 + $0x68] sm:$0xff]
      %v3333 = vld [vmem:[#allocation5 + $0x70] sm:$0xff]
      %v3334 = vld [vmem:[#allocation5 + $0x78] sm:$0xff]
      %v3335 = vld [vmem:[#allocation5 + $0x80] sm:$0xff]
      %v3336 = vld [vmem:[#allocation5 + $0x88] sm:$0xff]
      %v3337 = vld [vmem:[#allocation5 + $0x90] sm:$0xff]
      %v3338 = vld [vmem:[#allocation5 + $0x98] sm:$0xff]
      %v3339 = vld [vmem:[#allocation5 + $0xa0] sm:$0xff]
      %v3340 = vld [vmem:[#allocation5 + $0xa8] sm:$0xff]
      %v3341 = vld [vmem:[#allocation5 + $0xb0] sm:$0xff]
      %v3342 = vld [vmem:[#allocation5 + $0xb8] sm:$0xff]
      %v3343 = vld [vmem:[#allocation5 + $0xc0] sm:$0xff]
      %v3344 = vld [vmem:[#allocation5 + $0xc8] sm:$0xff]
      %v3345 = vld [vmem:[#allocation5 + $0xd0] sm:$0xff]
      %v3346 = vld [vmem:[#allocation5 + $0xd8] sm:$0xff]
      %v3347 = vld [vmem:[#allocation5 + $0xe0] sm:$0xff]
      %v3348 = vld [vmem:[#allocation5 + $0xe8] sm:$0xff]
      %v3349 = vld [vmem:[#allocation5 + $0xf0] sm:$0xff]
      %v3350 = vld [vmem:[#allocation5 + $0xf8] sm:$0xff]
      %v3351 = vld [vmem:[#allocation5 + $0x100] sm:$0xff]
      %v3352 = vld [vmem:[#allocation5 + $0x108] sm:$0xff]
      %v3353 = vld [vmem:[#allocation5 + $0x110] sm:$0xff]
      %v3354 = vld [vmem:[#allocation5 + $0x118] sm:$0xff]
      %v3355 = vld [vmem:[#allocation5 + $0x120] sm:$0xff]
      %v3356 = vld [vmem:[#allocation5 + $0x128] sm:$0xff]
      %v3357 = vld [vmem:[#allocation5 + $0x130] sm:$0xff]
      %v3358 = vld [vmem:[#allocation5 + $0x138] sm:$0xff]
      %v3359 = vld [vmem:[%s5] sm:$0xff]
      %v3360 = vld [vmem:[%s5 + $0x8] sm:$0xff]
      %v3361 = vld [vmem:[%s5 + $0x10] sm:$0xff]
      %v3362 = vld [vmem:[%s5 + $0x18] sm:$0xff]
      %v3363 = vld [vmem:[%s5 + $0x20] sm:$0xff]
      %v3364 = vld [vmem:[%s5 + $0x28] sm:$0xff]
      %v3365 = vld [vmem:[%s5 + $0x30] sm:$0xff]
      %v3366 = vld [vmem:[%s5 + $0x38] sm:$0xff]
      %v3367 = vld [vmem:[%s5 + $0x40] sm:$0xff]
      %v3368 = vld [vmem:[%s5 + $0x48] sm:$0xff]
      %v3369 = vld [vmem:[%s5 + $0x50] sm:$0xff]
      %v3370 = vld [vmem:[%s5 + $0x58] sm:$0xff]
      %v3371 = vld [vmem:[%s5 + $0x60] sm:$0xff]
      %v3372 = vld [vmem:[%s5 + $0x68] sm:$0xff]
      %v3373 = vld [vmem:[%s5 + $0x70] sm:$0xff]
      %v3374 = vld [vmem:[%s5 + $0x78] sm:$0xff]
      %v3375 = vld [vmem:[%s5 + $0x80] sm:$0xff]
      %v3376 = vld [vmem:[%s5 + $0x88] sm:$0xff]
      %v3377 = vld [vmem:[%s5 + $0x90] sm:$0xff]
      %v3378 = vld [vmem:[%s5 + $0x98] sm:$0xff]
      %v3379 = vld [vmem:[%s5 + $0xa0] sm:$0xff]
      %v3380 = vld [vmem:[%s5 + $0xa8] sm:$0xff]
      %v3381 = vld [vmem:[%s5 + $0xb0] sm:$0xff]
      %v3382 = vld [vmem:[%s5 + $0xb8] sm:$0xff]
      %v3383 = vld [vmem:[%s5 + $0xc0] sm:$0xff]
      %v3384 = vld [vmem:[%s5 + $0xc8] sm:$0xff]
      %v3385 = vld [vmem:[%s5 + $0xd0] sm:$0xff]
      %v3386 = vld [vmem:[%s5 + $0xd8] sm:$0xff]
      %v3387 = vld [vmem:[%s5 + $0xe0] sm:$0xff]
      %v3388 = vld [vmem:[%s5 + $0xe8] sm:$0xff]
      %v3389 = vld [vmem:[%s5 + $0xf0] sm:$0xff]
      %v3390 = vld [vmem:[%s5 + $0xf8] sm:$0xff]
      %v3391 = vld [vmem:[%s5 + $0x100] sm:$0xff]
      %v3392 = vld [vmem:[%s5 + $0x108] sm:$0xff]
      %v3393 = vld [vmem:[%s5 + $0x110] sm:$0xff]
      %v3394 = vld [vmem:[%s5 + $0x118] sm:$0xff]
      %v3395 = vld [vmem:[%s5 + $0x120] sm:$0xff]
      %v3396 = vld [vmem:[%s5 + $0x128] sm:$0xff]
      %v3397 = vld [vmem:[%s5 + $0x130] sm:$0xff]
      %v3398 = vld [vmem:[%s5 + $0x138] sm:$0xff]
      %v3399 = vld [vmem:[%s5 + $0x140] sm:$0xff]
      %v3400 = vld [vmem:[%s5 + $0x148] sm:$0xff]
      %v3401 = vld [vmem:[%s5 + $0x150] sm:$0xff]
      %v3402 = vld [vmem:[%s5 + $0x158] sm:$0xff]
      %v3403 = vld [vmem:[%s5 + $0x160] sm:$0xff]
      %v3404 = vld [vmem:[%s5 + $0x168] sm:$0xff]
      %v3405 = vld [vmem:[%s5 + $0x170] sm:$0xff]
      %v3406 = vld [vmem:[%s5 + $0x178] sm:$0xff]
      %v3407 = vld [vmem:[%s5 + $0x180] sm:$0xff]
      %v3408 = vld [vmem:[%s5 + $0x188] sm:$0xff]
      %v3409 = vld [vmem:[%s5 + $0x190] sm:$0xff]
      %v3410 = vld [vmem:[%s5 + $0x198] sm:$0xff]
      %v3411 = vld [vmem:[%s5 + $0x1a0] sm:$0xff]
      %v3412 = vld [vmem:[%s5 + $0x1a8] sm:$0xff]
      %v3413 = vld [vmem:[%s5 + $0x1b0] sm:$0xff]
      %v3414 = vld [vmem:[%s5 + $0x1b8] sm:$0xff]
      %v3415 = vld [vmem:[%s5 + $0x1c0] sm:$0xff]
      %v3416 = vld [vmem:[%s5 + $0x1c8] sm:$0xff]
      %v3417 = vld [vmem:[%s5 + $0x1d0] sm:$0xff]
      %v3418 = vld [vmem:[%s5 + $0x1d8] sm:$0xff]
      %v3419 = vld [vmem:[%s5 + $0x1e0] sm:$0xff]
      %v3420 = vld [vmem:[%s5 + $0x1e8] sm:$0xff]
      %v3421 = vld [vmem:[%s5 + $0x1f0] sm:$0xff]
      %v3422 = vld [vmem:[%s5 + $0x1f8] sm:$0xff]
      %v3423 = vld [vmem:[%s5 + $0x200] sm:$0xff]
      %v3424 = vld [vmem:[%s5 + $0x208] sm:$0xff]
      %v3425 = vld [vmem:[%s5 + $0x210] sm:$0xff]
      %v3426 = vld [vmem:[%s5 + $0x218] sm:$0xff]
      %v3427 = vld [vmem:[%s5 + $0x220] sm:$0xff]
      %v3428 = vld [vmem:[%s5 + $0x228] sm:$0xff]
      %v3429 = vld [vmem:[%s5 + $0x230] sm:$0xff]
      %v3430 = vld [vmem:[%s5 + $0x238] sm:$0xff]
      %v3431 = vld [vmem:[%s6] sm:$0x1]
      %v3433 = vlaneseq
      %v3434 = vshrl.u32 %v3433, 7
      %v3435 = vsub.s32 0, %v3434
      %v3436 = vrot.slane %v3431, %v3435
      %v3439 = vsel %vm1622, %v3323, 0
      %v3442 = vsel %vm1622, %v3328, 0
      %v3445 = vsel %vm1622, %v3333, 0
      %v3448 = vsel %vm1622, %v3338, 0
      %v3451 = vsel %vm1622, %v3343, 0
      %v3454 = vsel %vm1622, %v3348, 0
      %v3457 = vsel %vm1622, %v3353, 0
      %v3460 = vsel %vm1622, %v3358, 0
      %3462 = vmatprep.subr.mxu0 0.0
      %3463 = vmatpush1.msra.mxu0 %v3359
      %3464 = vmatprep.subr.mxu0 0.0
      %3465 = vmatpush1.msra.mxu0 %v3360
      %3466 = vmatprep.subr.mxu0 0.0
      %3467 = vmatpush1.msra.mxu0 %v3361
      %3468 = vmatprep.subr.mxu0 0.0
      %3469 = vmatpush1.msra.mxu0 %v3362
      %3470 = vmatprep.subr.mxu0 0.0
      %3471 = vmatpush1.msra.mxu0 %v3363
      %3472 = vmatprep.subr.mxu0 0.0
      %3473 = vmatpush1.msra.mxu0 %v3364
      %3474 = vmatprep.subr.mxu0 0.0
      %3475 = vmatpush1.msra.mxu0 %v3365
      %3476 = vmatprep.subr.mxu0 0.0
      %3477 = vmatpush1.msra.mxu0 %v3366
      %3478 = vmatprep.subr.mxu0 0.0
      %3479 = vmatpush1.msra.mxu0 %v3367
      %3480 = vmatprep.subr.mxu0 0.0
      %3481 = vmatpush1.msra.mxu0 %v3368
      %3482 = vmatprep.subr.mxu0 0.0
      %3483 = vmatpush1.msra.mxu0 %v3369
      %3484 = vmatprep.subr.mxu0 0.0
      %3485 = vmatpush1.msra.mxu0 %v3370
      %3486 = vmatprep.subr.mxu0 0.0
      %3487 = vmatpush1.msra.mxu0 %v3371
      %3488 = vmatprep.subr.mxu0 0.0
      %3489 = vmatpush1.msra.mxu0 %v3372
      %3490 = vmatprep.subr.mxu0 0.0
      %3491 = vmatpush1.msra.mxu0 %v3373
      %3492 = vmatprep.subr.mxu0 0.0
      %3493 = vmatpush1.msra.mxu0 %v3374
      %3494 = vmatprep.subr.mxu0 0.0
      %3495 = vmatpush1.msra.mxu0 %v3375
      %3496 = vmatprep.subr.mxu0 0.0
      %3497 = vmatpush1.msra.mxu0 %v3376
      %3498 = vmatprep.subr.mxu0 0.0
      %3499 = vmatpush1.msra.mxu0 %v3377
      %3500 = vmatprep.subr.mxu0 0.0
      %3501 = vmatpush1.msra.mxu0 %v3378
      %3502 = vmatprep.subr.mxu0 0.0
      %3503 = vmatpush1.msra.mxu0 %v3379
      %3504 = vmatprep.subr.mxu0 0.0
      %3505 = vmatpush1.msra.mxu0 %v3380
      %3506 = vmatprep.subr.mxu0 0.0
      %3507 = vmatpush1.msra.mxu0 %v3381
      %3508 = vmatprep.subr.mxu0 0.0
      %3509 = vmatpush1.msra.mxu0 %v3382
      %3510 = vmatprep.subr.mxu0 0.0
      %3511 = vmatpush1.msra.mxu0 %v3383
      %3512 = vmatprep.subr.mxu0 0.0
      %3513 = vmatpush1.msra.mxu0 %v3384
      %3514 = vmatprep.subr.mxu0 0.0
      %3515 = vmatpush1.msra.mxu0 %v3385
      %3516 = vmatprep.subr.mxu0 0.0
      %3517 = vmatpush1.msra.mxu0 %v3386
      %3518 = vmatprep.subr.mxu0 0.0
      %3519 = vmatpush1.msra.mxu0 %v3387
      %3520 = vmatprep.subr.mxu0 0.0
      %3521 = vmatpush1.msra.mxu0 %v3388
      %3522 = vmatprep.subr.mxu0 0.0
      %3523 = vmatpush1.msra.mxu0 %v3389
      %3524 = vmatprep.subr.mxu0 0.0
      %3525 = vmatpush1.msra.mxu0 %v3390
      %3526 = vmatprep.mubr.f32.mxu0 %v3320
      %3527 = vmatmul.mubr.f32.gmra.mrb[0].mxu0 %v3319
      %v3528 = vpop.f32.mrb[0].mxu0
      %v3529 = vadd.f32 %v3436, %v3528
      %v3530 = vpop.f32.mrb[0].mxu0
      %3531 = vmatprep.mubr.f32.mxu0 %v3325
      %3532 = vmatmul.mubr.f32.gmra.mrb[0].mxu0 %v3324
      %v3533 = vpop.f32.mrb[0].mxu0
      %v3534 = vadd.f32 %v3436, %v3533
      %v3535 = vpop.f32.mrb[0].mxu0
      %3536 = vmatprep.mubr.f32.mxu0 %v3330
      %3537 = vmatmul.mubr.f32.gmra.mrb[0].mxu0 %v3329
      %v3538 = vpop.f32.mrb[0].mxu0
      %v3539 = vadd.f32 %v3436, %v3538
      %v3540 = vpop.f32.mrb[0].mxu0
      %3541 = vmatprep.mubr.f32.mxu0 %v3335
      %3542 = vmatmul.mubr.f32.gmra.mrb[0].mxu0 %v3334
      %v3543 = vpop.f32.mrb[0].mxu0
      %v3544 = vadd.f32 %v3436, %v3543
      %v3545 = vpop.f32.mrb[0].mxu0
      %3546 = vmatprep.mubr.f32.mxu0 %v3340
      %3547 = vmatmul.mubr.f32.gmra.mrb[0].mxu0 %v3339
      %v3548 = vpop.f32.mrb[0].mxu0
      %v3549 = vadd.f32 %v3436, %v3548
      %v3550 = vpop.f32.mrb[0].mxu0
      %3551 = vmatprep.mubr.f32.mxu0 %v3345
      %3552 = vmatmul.mubr.f32.gmra.mrb[0].mxu0 %v3344
      %v3553 = vpop.f32.mrb[0].mxu0
      %v3554 = vadd.f32 %v3436, %v3553
      %v3555 = vpop.f32.mrb[0].mxu0
      %3556 = vmatprep.mubr.f32.mxu0 %v3350
      %3557 = vmatmul.mubr.f32.gmra.mrb[0].mxu0 %v3349
      %v3558 = vpop.f32.mrb[0].mxu0
      %v3559 = vadd.f32 %v3436, %v3558
      %v3560 = vpop.f32.mrb[0].mxu0
      %3561 = vmatprep.mubr.f32.mxu0 %v3355
      %3562 = vmatmul.mubr.f32.gmra.mrb[0].mxu0 %v3354
      %v3563 = vpop.f32.mrb[0].mxu0
      %v3564 = vadd.f32 %v3436, %v3563
      %v3565 = vpop.f32.mrb[0].mxu0
      %3566 = vdwg.mxu0
      %3567 = vmatprep.subr.mxu0 0.0
      %3568 = vmatpush1.msra.mxu0 %v3391
      %3569 = vmatprep.subr.mxu0 0.0
      %3570 = vmatpush1.msra.mxu0 %v3392
      %3571 = vmatprep.subr.mxu0 0.0
      %3572 = vmatpush1.msra.mxu0 %v3393
      %3573 = vmatprep.subr.mxu0 0.0
      %3574 = vmatpush1.msra.mxu0 %v3394
      %3575 = vmatprep.subr.mxu0 0.0
      %3576 = vmatpush1.msra.mxu0 %v3395
      %3577 = vmatprep.subr.mxu0 0.0
      %3578 = vmatpush1.msra.mxu0 %v3396
      %3579 = vmatprep.subr.mxu0 0.0
      %3580 = vmatpush1.msra.mxu0 %v3397
      %3581 = vmatprep.subr.mxu0 0.0
      %3582 = vmatpush1.msra.mxu0 %v3398
      %3583 = vmatprep.subr.mxu0 0.0
      %3584 = vmatpush1.msra.mxu0 %v3399
      %3585 = vmatprep.subr.mxu0 0.0
      %3586 = vmatpush1.msra.mxu0 %v3400
      %3587 = vmatprep.subr.mxu0 0.0
      %3588 = vmatpush1.msra.mxu0 %v3401
      %3589 = vmatprep.subr.mxu0 0.0
      %3590 = vmatpush1.msra.mxu0 %v3402
      %3591 = vmatprep.subr.mxu0 0.0
      %3592 = vmatpush1.msra.mxu0 %v3403
      %3593 = vmatprep.subr.mxu0 0.0
      %3594 = vmatpush1.msra.mxu0 %v3404
      %3595 = vmatprep.subr.mxu0 0.0
      %3596 = vmatpush1.msra.mxu0 %v3405
      %3597 = vmatprep.subr.mxu0 0.0
      %3598 = vmatpush1.msra.mxu0 %v3406
      %3599 = vmatprep.subr.mxu0 0.0
      %3600 = vmatpush1.msra.mxu0 %v3407
      %3601 = vmatprep.subr.mxu0 0.0
      %3602 = vmatpush1.msra.mxu0 %v3408
      %3603 = vmatprep.subr.mxu0 0.0
      %3604 = vmatpush1.msra.mxu0 %v3409
      %3605 = vmatprep.subr.mxu0 0.0
      %3606 = vmatpush1.msra.mxu0 %v3410
      %3607 = vmatprep.subr.mxu0 0.0
      %3608 = vmatpush1.msra.mxu0 %v3411
      %3609 = vmatprep.subr.mxu0 0.0
      %3610 = vmatpush1.msra.mxu0 %v3412
      %3611 = vmatprep.subr.mxu0 0.0
      %3612 = vmatpush1.msra.mxu0 %v3413
      %3613 = vmatprep.subr.mxu0 0.0
      %3614 = vmatpush1.msra.mxu0 %v3414
      %3615 = vmatprep.subr.mxu0 0.0
      %3616 = vmatpush1.msra.mxu0 %v3415
      %3617 = vmatprep.subr.mxu0 0.0
      %3618 = vmatpush1.msra.mxu0 %v3416
      %3619 = vmatprep.subr.mxu0 0.0
      %3620 = vmatpush1.msra.mxu0 %v3417
      %3621 = vmatprep.subr.mxu0 0.0
      %3622 = vmatpush1.msra.mxu0 %v3418
      %3623 = vmatprep.subr.mxu0 0.0
      %3624 = vmatpush1.msra.mxu0 %v3419
      %3625 = vmatprep.subr.mxu0 0.0
      %3626 = vmatpush1.msra.mxu0 %v3420
      %3627 = vmatprep.subr.mxu0 0.0
      %3628 = vmatpush1.msra.mxu0 %v3421
      %3629 = vmatprep.subr.mxu0 0.0
      %3630 = vmatpush1.msra.mxu0 %v3422
      %3631 = vmatprep.mubr.f32.mxu0 %v3322
      %3632 = vmatmul.mubr.f32.gmra.mrb[0].mxu0 %v3321
      %v3633 = vpop.f32.mrb[0].mxu0
      %v3634 = vadd.f32 %v3529, %v3633
      %v3635 = vpop.f32.mrb[0].mxu0
      %3636 = vmatprep.mubr.f32.mxu0 %v3327
      %3637 = vmatmul.mubr.f32.gmra.mrb[0].mxu0 %v3326
      %v3638 = vpop.f32.mrb[0].mxu0
      %v3639 = vadd.f32 %v3534, %v3638
      %v3640 = vpop.f32.mrb[0].mxu0
      %3641 = vmatprep.mubr.f32.mxu0 %v3332
      %3642 = vmatmul.mubr.f32.gmra.mrb[0].mxu0 %v3331
      %v3643 = vpop.f32.mrb[0].mxu0
      %v3644 = vadd.f32 %v3539, %v3643
      %v3645 = vpop.f32.mrb[0].mxu0
      %3646 = vmatprep.mubr.f32.mxu0 %v3337
      %3647 = vmatmul.mubr.f32.gmra.mrb[0].mxu0 %v3336
      %v3648 = vpop.f32.mrb[0].mxu0
      %v3649 = vadd.f32 %v3544, %v3648
      %v3650 = vpop.f32.mrb[0].mxu0
      %3651 = vmatprep.mubr.f32.mxu0 %v3342
      %3652 = vmatmul.mubr.f32.gmra.mrb[0].mxu0 %v3341
      %v3653 = vpop.f32.mrb[0].mxu0
      %v3654 = vadd.f32 %v3549, %v3653
      %v3655 = vpop.f32.mrb[0].mxu0
      %3656 = vmatprep.mubr.f32.mxu0 %v3347
      %3657 = vmatmul.mubr.f32.gmra.mrb[0].mxu0 %v3346
      %v3658 = vpop.f32.mrb[0].mxu0
      %v3659 = vadd.f32 %v3554, %v3658
      %v3660 = vpop.f32.mrb[0].mxu0
      %3661 = vmatprep.mubr.f32.mxu0 %v3352
      %3662 = vmatmul.mubr.f32.gmra.mrb[0].mxu0 %v3351
      %v3663 = vpop.f32.mrb[0].mxu0
      %v3664 = vadd.f32 %v3559, %v3663
      %v3665 = vpop.f32.mrb[0].mxu0
      %3666 = vmatprep.mubr.f32.mxu0 %v3357
      %3667 = vmatmul.mubr.f32.gmra.mrb[0].mxu0 %v3356
      %v3668 = vpop.f32.mrb[0].mxu0
      %v3669 = vadd.f32 %v3564, %v3668
      %v3670 = vpop.f32.mrb[0].mxu0
      %3671 = vdwg.mxu0
      %3672 = vmatprep.subr.mxu0 0.0
      %3673 = vmatpush1.msra.mxu0 %v3423
      %3674 = vmatprep.subr.mxu0 0.0
      %3675 = vmatpush1.msra.mxu0 %v3424
      %3676 = vmatprep.subr.mxu0 0.0
      %3677 = vmatpush1.msra.mxu0 %v3425
      %3678 = vmatprep.subr.mxu0 0.0
      %3679 = vmatpush1.msra.mxu0 %v3426
      %3680 = vmatprep.subr.mxu0 0.0
      %3681 = vmatpush1.msra.mxu0 %v3427
      %3682 = vmatprep.subr.mxu0 0.0
      %3683 = vmatpush1.msra.mxu0 %v3428
      %3684 = vmatprep.subr.mxu0 0.0
      %3685 = vmatpush1.msra.mxu0 %v3429
      %3686 = vmatprep.subr.mxu0 0.0
      %3687 = vmatpush1.msra.mxu0 %v3430
      %3688 = vmatprep.subr.mxu0 0.0
      %3689 = vmatpush1.msra.mxu0 0.0
      %3690 = vmatprep.subr.mxu0 0.0
      %3691 = vmatpush1.msra.mxu0 0.0
      %3692 = vmatprep.subr.mxu0 0.0
      %3693 = vmatpush1.msra.mxu0 0.0
      %3694 = vmatprep.subr.mxu0 0.0
      %3695 = vmatpush1.msra.mxu0 0.0
      %3696 = vmatprep.subr.mxu0 0.0
      %3697 = vmatpush1.msra.mxu0 0.0
      %3698 = vmatprep.subr.mxu0 0.0
      %3699 = vmatpush1.msra.mxu0 0.0
      %3700 = vmatprep.subr.mxu0 0.0
      %3701 = vmatpush1.msra.mxu0 0.0
      %3702 = vmatprep.subr.mxu0 0.0
      %3703 = vmatpush1.msra.mxu0 0.0
      %3704 = vmatprep.subr.mxu0 0.0
      %3705 = vmatpush1.msra.mxu0 0.0
      %3706 = vmatprep.subr.mxu0 0.0
      %3707 = vmatpush1.msra.mxu0 0.0
      %3708 = vmatprep.subr.mxu0 0.0
      %3709 = vmatpush1.msra.mxu0 0.0
      %3710 = vmatprep.subr.mxu0 0.0
      %3711 = vmatpush1.msra.mxu0 0.0
      %3712 = vmatprep.subr.mxu0 0.0
      %3713 = vmatpush1.msra.mxu0 0.0
      %3714 = vmatprep.subr.mxu0 0.0
      %3715 = vmatpush1.msra.mxu0 0.0
      %3716 = vmatprep.subr.mxu0 0.0
      %3717 = vmatpush1.msra.mxu0 0.0
      %3718 = vmatprep.subr.mxu0 0.0
      %3719 = vmatpush1.msra.mxu0 0.0
      %3720 = vmatprep.subr.mxu0 0.0
      %3721 = vmatpush1.msra.mxu0 0.0
      %3722 = vmatprep.subr.mxu0 0.0
      %3723 = vmatpush1.msra.mxu0 0.0
      %3724 = vmatprep.subr.mxu0 0.0
      %3725 = vmatpush1.msra.mxu0 0.0
      %3726 = vmatprep.subr.mxu0 0.0
      %3727 = vmatpush1.msra.mxu0 0.0
      %3728 = vmatprep.subr.mxu0 0.0
      %3729 = vmatpush1.msra.mxu0 0.0
      %3730 = vmatprep.subr.mxu0 0.0
      %3731 = vmatpush1.msra.mxu0 0.0
      %3732 = vmatprep.subr.mxu0 0.0
      %3733 = vmatpush1.msra.mxu0 0.0
      %3734 = vmatprep.subr.mxu0 0.0
      %3735 = vmatpush1.msra.mxu0 0.0
      %3736 = vmatprep.mubr.f32.mxu0 0.0
      %3737 = vmatmul.mubr.f32.gmra.mrb[0].mxu0 %v3439
      %v3738 = vpop.f32.mrb[0].mxu0
      %v3739 = vadd.f32 %v3634, %v3738
      %v3740 = vpop.f32.mrb[0].mxu0
      %3741 = vmatprep.mubr.f32.mxu0 0.0
      %3742 = vmatmul.mubr.f32.gmra.mrb[0].mxu0 %v3442
      %v3743 = vpop.f32.mrb[0].mxu0
      %v3744 = vadd.f32 %v3639, %v3743
      %v3745 = vpop.f32.mrb[0].mxu0
      %3746 = vmatprep.mubr.f32.mxu0 0.0
      %3747 = vmatmul.mubr.f32.gmra.mrb[0].mxu0 %v3445
      %v3748 = vpop.f32.mrb[0].mxu0
      %v3749 = vadd.f32 %v3644, %v3748
      %v3750 = vpop.f32.mrb[0].mxu0
      %3751 = vmatprep.mubr.f32.mxu0 0.0
      %3752 = vmatmul.mubr.f32.gmra.mrb[0].mxu0 %v3448
      %v3753 = vpop.f32.mrb[0].mxu0
      %v3754 = vadd.f32 %v3649, %v3753
      %v3755 = vpop.f32.mrb[0].mxu0
      %3756 = vmatprep.mubr.f32.mxu0 0.0
      %3757 = vmatmul.mubr.f32.gmra.mrb[0].mxu0 %v3451
      %v3758 = vpop.f32.mrb[0].mxu0
      %v3759 = vadd.f32 %v3654, %v3758
      %v3760 = vpop.f32.mrb[0].mxu0
      %3761 = vmatprep.mubr.f32.mxu0 0.0
      %3762 = vmatmul.mubr.f32.gmra.mrb[0].mxu0 %v3454
      %v3763 = vpop.f32.mrb[0].mxu0
      %v3764 = vadd.f32 %v3659, %v3763
      %v3765 = vpop.f32.mrb[0].mxu0
      %3766 = vmatprep.mubr.f32.mxu0 0.0
      %3767 = vmatmul.mubr.f32.gmra.mrb[0].mxu0 %v3457
      %v3768 = vpop.f32.mrb[0].mxu0
      %v3769 = vadd.f32 %v3664, %v3768
      %v3770 = vpop.f32.mrb[0].mxu0
      %3771 = vmatprep.mubr.f32.mxu0 0.0
      %3772 = vmatmul.mubr.f32.gmra.mrb[0].mxu0 %v3460
      %v3773 = vpop.f32.mrb[0].mxu0
      %v3774 = vadd.f32 %v3669, %v3773
      %v3775 = vpop.f32.mrb[0].mxu0
      %3776 = vdwg.mxu0
      %v3777 = vmax.f32 %v3739, 0.0
      %v3778 = vmax.f32 %v3744, 0.0
      %v3779 = vmax.f32 %v3749, 0.0
      %v3780 = vmax.f32 %v3754, 0.0
      %v3781 = vmax.f32 %v3759, 0.0
      %v3782 = vmax.f32 %v3764, 0.0
      %v3783 = vmax.f32 %v3769, 0.0
      %v3784 = vmax.f32 %v3774, 0.0
      %3785 = vst.msk [vmem:[#allocation6] sm:$0xff] %vm1622, %v3777
      %3786 = vst.msk [vmem:[#allocation6 + $0x8] sm:$0xff] %vm1622, %v3778
      %3787 = vst.msk [vmem:[#allocation6 + $0x10] sm:$0xff] %vm1622, %v3779
      %3788 = vst.msk [vmem:[#allocation6 + $0x18] sm:$0xff] %vm1622, %v3780
      %3789 = vst.msk [vmem:[#allocation6 + $0x20] sm:$0xff] %vm1622, %v3781
      %3790 = vst.msk [vmem:[#allocation6 + $0x28] sm:$0xff] %vm1622, %v3782
      %3791 = vst.msk [vmem:[#allocation6 + $0x30] sm:$0xff] %vm1622, %v3783
      %3792 = vst.msk [vmem:[#allocation6 + $0x38] sm:$0xff] %vm1622, %v3784
      %v3793 = vld [vmem:[#allocation6] sm:$0xff]
      %3794 = vst.msk [vmem:[%s370] sm:$0xff] %vm1622, %v3793
      %v3795 = vld [vmem:[#allocation6 + $0x8] sm:$0xff]
      %3797 = vrot.lane.b32.xlu0 %v3795, 64
      %v3798 = vpop.permute.xlu0 %3797
      %3800 = vst.msk [vmem:[%s370] sm:$0xff] %vm1735, %v3798
      %v3801 = vld [vmem:[#allocation6 + $0x10] sm:$0xff]
      %3802 = vst.msk [vmem:[%s370 + $0x8] sm:$0xff] %vm1622, %v3801
      %v3803 = vld [vmem:[#allocation6 + $0x18] sm:$0xff]
      %3805 = vrot.lane.b32.xlu0 %v3803, 64
      %v3806 = vpop.permute.xlu0 %3805
      %3808 = vst.msk [vmem:[%s370 + $0x8] sm:$0xff] %vm1735, %v3806
      %v3809 = vld [vmem:[#allocation6 + $0x20] sm:$0xff]
      %3810 = vst.msk [vmem:[%s370 + $0x10] sm:$0xff] %vm1622, %v3809
      %v3811 = vld [vmem:[#allocation6 + $0x28] sm:$0xff]
      %3813 = vrot.lane.b32.xlu0 %v3811, 64
      %v3814 = vpop.permute.xlu0 %3813
      %3816 = vst.msk [vmem:[%s370 + $0x10] sm:$0xff] %vm1735, %v3814
      %v3817 = vld [vmem:[#allocation6 + $0x30] sm:$0xff]
      %3818 = vst.msk [vmem:[%s370 + $0x18] sm:$0xff] %vm1622, %v3817
      %v3819 = vld [vmem:[#allocation6 + $0x38] sm:$0xff]
      %3821 = vrot.lane.b32.xlu0 %v3819, 64
      %v3822 = vpop.permute.xlu0 %3821
      %3824 = vst.msk [vmem:[%s370 + $0x18] sm:$0xff] %vm1735, %v3822
      %v3825 = vld [vmem:[%s370] sm:$0xff]
      %v3826 = vld [vmem:[%s370 + $0x8] sm:$0xff]
      %v3827 = vld [vmem:[%s370 + $0x10] sm:$0xff]
      %v3828 = vld [vmem:[%s370 + $0x18] sm:$0xff]
      %v3829 = vld [vmem:[%s7] sm:$0xff]
      %v3830 = vld [vmem:[%s7 + $0x8] sm:$0xff]
      %v3831 = vld [vmem:[%s7 + $0x10] sm:$0xff]
      %v3832 = vld [vmem:[%s7 + $0x18] sm:$0xff]
      %v3833 = vld [vmem:[%s7 + $0x20] sm:$0xff]
      %v3834 = vld [vmem:[%s7 + $0x28] sm:$0xff]
      %v3835 = vld [vmem:[%s7 + $0x30] sm:$0xff]
      %v3836 = vld [vmem:[%s7 + $0x38] sm:$0xff]
      %v3837 = vld [vmem:[%s7 + $0x40] sm:$0xff]
      %v3838 = vld [vmem:[%s7 + $0x48] sm:$0xff]
      %v3839 = vld [vmem:[%s7 + $0x50] sm:$0xff]
      %v3840 = vld [vmem:[%s7 + $0x58] sm:$0xff]
      %v3841 = vld [vmem:[%s7 + $0x60] sm:$0xff]
      %v3842 = vld [vmem:[%s7 + $0x68] sm:$0xff]
      %v3843 = vld [vmem:[%s7 + $0x70] sm:$0xff]
      %v3844 = vld [vmem:[%s7 + $0x78] sm:$0xff]
      %v3845 = vld [vmem:[%s7 + $0x80] sm:$0xff]
      %v3846 = vld [vmem:[%s7 + $0x88] sm:$0xff]
      %v3847 = vld [vmem:[%s7 + $0x90] sm:$0xff]
      %v3848 = vld [vmem:[%s7 + $0x98] sm:$0xff]
      %v3849 = vld [vmem:[%s7 + $0xa0] sm:$0xff]
      %v3850 = vld [vmem:[%s7 + $0xa8] sm:$0xff]
      %v3851 = vld [vmem:[%s7 + $0xb0] sm:$0xff]
      %v3852 = vld [vmem:[%s7 + $0xb8] sm:$0xff]
      %v3853 = vld [vmem:[%s7 + $0xc0] sm:$0xff]
      %v3854 = vld [vmem:[%s7 + $0xc8] sm:$0xff]
      %v3855 = vld [vmem:[%s7 + $0xd0] sm:$0xff]
      %v3856 = vld [vmem:[%s7 + $0xd8] sm:$0xff]
      %v3857 = vld [vmem:[%s7 + $0xe0] sm:$0xff]
      %v3858 = vld [vmem:[%s7 + $0xe8] sm:$0xff]
      %v3859 = vld [vmem:[%s7 + $0xf0] sm:$0xff]
      %v3860 = vld [vmem:[%s7 + $0xf8] sm:$0xff]
      %v3861 = vld [vmem:[%s7 + $0x100] sm:$0xff]
      %v3862 = vld [vmem:[%s7 + $0x108] sm:$0xff]
      %v3863 = vld [vmem:[%s7 + $0x110] sm:$0xff]
      %v3864 = vld [vmem:[%s7 + $0x118] sm:$0xff]
      %v3865 = vld [vmem:[%s7 + $0x120] sm:$0xff]
      %v3866 = vld [vmem:[%s7 + $0x128] sm:$0xff]
      %v3867 = vld [vmem:[%s7 + $0x130] sm:$0xff]
      %v3868 = vld [vmem:[%s7 + $0x138] sm:$0xff]
      %v3869 = vld [vmem:[%s7 + $0x140] sm:$0xff]
      %v3870 = vld [vmem:[%s7 + $0x148] sm:$0xff]
      %v3871 = vld [vmem:[%s7 + $0x150] sm:$0xff]
      %v3872 = vld [vmem:[%s7 + $0x158] sm:$0xff]
      %v3873 = vld [vmem:[%s7 + $0x160] sm:$0xff]
      %v3874 = vld [vmem:[%s7 + $0x168] sm:$0xff]
      %v3875 = vld [vmem:[%s7 + $0x170] sm:$0xff]
      %v3876 = vld [vmem:[%s7 + $0x178] sm:$0xff]
      %v3877 = vld [vmem:[%s7 + $0x180] sm:$0xff]
      %v3878 = vld [vmem:[%s7 + $0x188] sm:$0xff]
      %v3879 = vld [vmem:[%s7 + $0x190] sm:$0xff]
      %v3880 = vld [vmem:[%s7 + $0x198] sm:$0xff]
      %v3881 = vld [vmem:[%s7 + $0x1a0] sm:$0xff]
      %v3882 = vld [vmem:[%s7 + $0x1a8] sm:$0xff]
      %v3883 = vld [vmem:[%s7 + $0x1b0] sm:$0xff]
      %v3884 = vld [vmem:[%s7 + $0x1b8] sm:$0xff]
      %v3885 = vld [vmem:[%s7 + $0x1c0] sm:$0xff]
      %v3886 = vld [vmem:[%s7 + $0x1c8] sm:$0xff]
      %v3887 = vld [vmem:[%s7 + $0x1d0] sm:$0xff]
      %v3888 = vld [vmem:[%s7 + $0x1d8] sm:$0xff]
      %v3889 = vld [vmem:[%s7 + $0x1e0] sm:$0xff]
      %v3890 = vld [vmem:[%s7 + $0x1e8] sm:$0xff]
      %v3891 = vld [vmem:[%s7 + $0x1f0] sm:$0xff]
      %v3892 = vld [vmem:[%s7 + $0x1f8] sm:$0xff]
      %v3893 = vld [vmem:[%s8] sm:$0x1]
      %v3895 = vlaneseq
      %v3896 = vshrl.u32 %v3895, 7
      %v3897 = vsub.s32 0, %v3896
      %v3898 = vrot.slane %v3893, %v3897
      %3900 = vmatprep.subr.mxu0 0.0
      %3901 = vmatpush1.msra.mxu0 %v3829
      %3902 = vmatprep.subr.mxu0 0.0
      %3903 = vmatpush1.msra.mxu0 %v3830
      %3904 = vmatprep.subr.mxu0 0.0
      %3905 = vmatpush1.msra.mxu0 %v3831
      %3906 = vmatprep.subr.mxu0 0.0
      %3907 = vmatpush1.msra.mxu0 %v3832
      %3908 = vmatprep.subr.mxu0 0.0
      %3909 = vmatpush1.msra.mxu0 %v3833
      %3910 = vmatprep.subr.mxu0 0.0
      %3911 = vmatpush1.msra.mxu0 %v3834
      %3912 = vmatprep.subr.mxu0 0.0
      %3913 = vmatpush1.msra.mxu0 %v3835
      %3914 = vmatprep.subr.mxu0 0.0
      %3915 = vmatpush1.msra.mxu0 %v3836
      %3916 = vmatprep.subr.mxu0 0.0
      %3917 = vmatpush1.msra.mxu0 %v3837
      %3918 = vmatprep.subr.mxu0 0.0
      %3919 = vmatpush1.msra.mxu0 %v3838
      %3920 = vmatprep.subr.mxu0 0.0
      %3921 = vmatpush1.msra.mxu0 %v3839
      %3922 = vmatprep.subr.mxu0 0.0
      %3923 = vmatpush1.msra.mxu0 %v3840
      %3924 = vmatprep.subr.mxu0 0.0
      %3925 = vmatpush1.msra.mxu0 %v3841
      %3926 = vmatprep.subr.mxu0 0.0
      %3927 = vmatpush1.msra.mxu0 %v3842
      %3928 = vmatprep.subr.mxu0 0.0
      %3929 = vmatpush1.msra.mxu0 %v3843
      %3930 = vmatprep.subr.mxu0 0.0
      %3931 = vmatpush1.msra.mxu0 %v3844
      %3932 = vmatprep.subr.mxu0 0.0
      %3933 = vmatpush1.msra.mxu0 %v3845
      %3934 = vmatprep.subr.mxu0 0.0
      %3935 = vmatpush1.msra.mxu0 %v3846
      %3936 = vmatprep.subr.mxu0 0.0
      %3937 = vmatpush1.msra.mxu0 %v3847
      %3938 = vmatprep.subr.mxu0 0.0
      %3939 = vmatpush1.msra.mxu0 %v3848
      %3940 = vmatprep.subr.mxu0 0.0
      %3941 = vmatpush1.msra.mxu0 %v3849
      %3942 = vmatprep.subr.mxu0 0.0
      %3943 = vmatpush1.msra.mxu0 %v3850
      %3944 = vmatprep.subr.mxu0 0.0
      %3945 = vmatpush1.msra.mxu0 %v3851
      %3946 = vmatprep.subr.mxu0 0.0
      %3947 = vmatpush1.msra.mxu0 %v3852
      %3948 = vmatprep.subr.mxu0 0.0
      %3949 = vmatpush1.msra.mxu0 %v3853
      %3950 = vmatprep.subr.mxu0 0.0
      %3951 = vmatpush1.msra.mxu0 %v3854
      %3952 = vmatprep.subr.mxu0 0.0
      %3953 = vmatpush1.msra.mxu0 %v3855
      %3954 = vmatprep.subr.mxu0 0.0
      %3955 = vmatpush1.msra.mxu0 %v3856
      %3956 = vmatprep.subr.mxu0 0.0
      %3957 = vmatpush1.msra.mxu0 %v3857
      %3958 = vmatprep.subr.mxu0 0.0
      %3959 = vmatpush1.msra.mxu0 %v3858
      %3960 = vmatprep.subr.mxu0 0.0
      %3961 = vmatpush1.msra.mxu0 %v3859
      %3962 = vmatprep.subr.mxu0 0.0
      %3963 = vmatpush1.msra.mxu0 %v3860
      %3964 = vmatprep.mubr.f32.mxu0 %v3826
      %3965 = vmatmul.mubr.f32.gmra.mrb[0].mxu0 %v3825
      %v3966 = vpop.f32.mrb[0].mxu0
      %v3967 = vadd.f32 %v3898, %v3966
      %v3968 = vpop.f32.mrb[0].mxu0
      %3969 = vdwg.mxu0
      %3970 = vmatprep.subr.mxu0 0.0
      %3971 = vmatpush1.msra.mxu0 %v3861
      %3972 = vmatprep.subr.mxu0 0.0
      %3973 = vmatpush1.msra.mxu0 %v3862
      %3974 = vmatprep.subr.mxu0 0.0
      %3975 = vmatpush1.msra.mxu0 %v3863
      %3976 = vmatprep.subr.mxu0 0.0
      %3977 = vmatpush1.msra.mxu0 %v3864
      %3978 = vmatprep.subr.mxu0 0.0
      %3979 = vmatpush1.msra.mxu0 %v3865
      %3980 = vmatprep.subr.mxu0 0.0
      %3981 = vmatpush1.msra.mxu0 %v3866
      %3982 = vmatprep.subr.mxu0 0.0
      %3983 = vmatpush1.msra.mxu0 %v3867
      %3984 = vmatprep.subr.mxu0 0.0
      %3985 = vmatpush1.msra.mxu0 %v3868
      %3986 = vmatprep.subr.mxu0 0.0
      %3987 = vmatpush1.msra.mxu0 %v3869
      %3988 = vmatprep.subr.mxu0 0.0
      %3989 = vmatpush1.msra.mxu0 %v3870
      %3990 = vmatprep.subr.mxu0 0.0
      %3991 = vmatpush1.msra.mxu0 %v3871
      %3992 = vmatprep.subr.mxu0 0.0
      %3993 = vmatpush1.msra.mxu0 %v3872
      %3994 = vmatprep.subr.mxu0 0.0
      %3995 = vmatpush1.msra.mxu0 %v3873
      %3996 = vmatprep.subr.mxu0 0.0
      %3997 = vmatpush1.msra.mxu0 %v3874
      %3998 = vmatprep.subr.mxu0 0.0
      %3999 = vmatpush1.msra.mxu0 %v3875
      %4000 = vmatprep.subr.mxu0 0.0
      %4001 = vmatpush1.msra.mxu0 %v3876
      %4002 = vmatprep.subr.mxu0 0.0
      %4003 = vmatpush1.msra.mxu0 %v3877
      %4004 = vmatprep.subr.mxu0 0.0
      %4005 = vmatpush1.msra.mxu0 %v3878
      %4006 = vmatprep.subr.mxu0 0.0
      %4007 = vmatpush1.msra.mxu0 %v3879
      %4008 = vmatprep.subr.mxu0 0.0
      %4009 = vmatpush1.msra.mxu0 %v3880
      %4010 = vmatprep.subr.mxu0 0.0
      %4011 = vmatpush1.msra.mxu0 %v3881
      %4012 = vmatprep.subr.mxu0 0.0
      %4013 = vmatpush1.msra.mxu0 %v3882
      %4014 = vmatprep.subr.mxu0 0.0
      %4015 = vmatpush1.msra.mxu0 %v3883
      %4016 = vmatprep.subr.mxu0 0.0
      %4017 = vmatpush1.msra.mxu0 %v3884
      %4018 = vmatprep.subr.mxu0 0.0
      %4019 = vmatpush1.msra.mxu0 %v3885
      %4020 = vmatprep.subr.mxu0 0.0
      %4021 = vmatpush1.msra.mxu0 %v3886
      %4022 = vmatprep.subr.mxu0 0.0
      %4023 = vmatpush1.msra.mxu0 %v3887
      %4024 = vmatprep.subr.mxu0 0.0
      %4025 = vmatpush1.msra.mxu0 %v3888
      %4026 = vmatprep.subr.mxu0 0.0
      %4027 = vmatpush1.msra.mxu0 %v3889
      %4028 = vmatprep.subr.mxu0 0.0
      %4029 = vmatpush1.msra.mxu0 %v3890
      %4030 = vmatprep.subr.mxu0 0.0
      %4031 = vmatpush1.msra.mxu0 %v3891
      %4032 = vmatprep.subr.mxu0 0.0
      %4033 = vmatpush1.msra.mxu0 %v3892
      %4034 = vmatprep.mubr.f32.mxu0 %v3828
      %4035 = vmatmul.mubr.f32.gmra.mrb[0].mxu0 %v3827
      %v4036 = vpop.f32.mrb[0].mxu0
      %v4037 = vadd.f32 %v3967, %v4036
      %v4038 = vpop.f32.mrb[0].mxu0
      %4039 = vdwg.mxu0
      %4040 = vst [vmem:[%s365] sm:$0xff] %v4037
      %p4041 = scmp.lt.s32.totalorder %s22, 1
      %s4042 = scalar_select %p4041, %s22, 1
      %s4043 = smul.addr %s4042, 8
      %s4044 = scalar_lea.vmem %s9, %s4043
      %p4045 = scmp.lt.s32.totalorder %s22, 1
      %s4046 = scalar_select %p4045, %s22, 1
      %s4047 = smul.addr %s4046, 4
      %s4048 = smul.addr %s4047, 8
      %s4049 = scalar_lea.vmem %s10, %s4048
      // Predicated region
      $region57: #{cnn_dqn_forward.1} parent=55 // pred_check
        %p4050 = pneg %p234
      $region58: #{cnn_dqn_forward.1} parent=55 // pred_check_branch
        %4052 = sbr.rel (%p4050) target = $region60
      $region59: #{cnn_dqn_forward.1} parent=55 // pred_region
        _
      $region60: #{cnn_dqn_forward.1} parent=55 // pred_fallthru
        _
      // Predicated region
      $region61: #{cnn_dqn_forward.1} parent=55 // pred_check
        %p4053 = pneg %p260
      $region62: #{cnn_dqn_forward.1} parent=55 // pred_check_branch
        %4055 = sbr.rel (%p4053) target = $region64
      $region63: #{cnn_dqn_forward.1} parent=55 // pred_region
        _
      $region64: #{cnn_dqn_forward.1} parent=55 // pred_fallthru
        _
    $region56: #{cnn_dqn_forward.1} parent=5 // pred_fallthru
      _
    %p4056 = scmp.le.s32.totalorder 2, %s17
    // Predicated region
    $region65: #{cnn_dqn_forward.1} parent=5 // pred_check
      %p4057 = pneg %p4056
    $region66: #{cnn_dqn_forward.1} parent=5 // pred_check_branch
      %4059 = sbr.rel (%p4057) target = $region68
    $region67: #{cnn_dqn_forward.1} parent=5 // pred_region
      %s4060 = ssub.s32 %s17, 2
      // Predicated region
      $region69: #{cnn_dqn_forward.1} parent=67 // pred_check
        %p4061 = pneg %p240
      $region70: #{cnn_dqn_forward.1} parent=67 // pred_check_branch
        %4063 = sbr.rel (%p4061) target = $region72
      $region71: #{cnn_dqn_forward.1} parent=67 // pred_region
        %p4064 = scmp.lt.s32.totalorder %s23, 1
        %s4065 = scalar_select %p4064, %s23, 1
        %s4066 = smul.addr %s4065, 8
        %s4067 = scalar_lea.vmem %s9, %s4066
      $region72: #{cnn_dqn_forward.1} parent=67 // pred_fallthru
        _
      // Predicated region
      $region73: #{cnn_dqn_forward.1} parent=67 // pred_check
        %p4068 = pneg %p266
      $region74: #{cnn_dqn_forward.1} parent=67 // pred_check_branch
        %4070 = sbr.rel (%p4068) target = $region76
      $region75: #{cnn_dqn_forward.1} parent=67 // pred_region
        %p4071 = scmp.lt.s32.totalorder %s23, 1
        %s4072 = scalar_select %p4071, %s23, 1
        %s4073 = smul.addr %s4072, 4
        %s4074 = smul.addr %s4073, 8
        %s4075 = scalar_lea.vmem %s10, %s4074
      $region76: #{cnn_dqn_forward.1} parent=67 // pred_fallthru
        _
    $region68: #{cnn_dqn_forward.1} parent=5 // pred_fallthru
      _
  $region6: #{cnn_dqn_forward.1} parent=0 // loop_footer
    %s21 = sadd.s32 1, %s17
  $region7: #{cnn_dqn_forward.1} parent=0 // loop_footer_branch
    %16 = sbr.rel target = $region3
  $region8: #{cnn_dqn_forward.1} parent=0 // loop_exit
    _

</llo_original>
